<compile_context>
chip_gen: v7x
topology: tpu7x:2x2x1
jax: 0.10.0
libtpu: 0.0.40
codegen_flags: <defaults>
</compile_context>

<pallas_src>
import functools

import numpy as np
import jax
import jax.numpy as jnp
from jax.experimental import pallas as pl
from jax.experimental.pallas import tpu as pltpu


_TB = 32                      # batch tile (multiple of 8); keep B/_TB even on v7x
_MXU_DTYPE = jnp.float32      # matmul operand dtype (see TODO above)


# ----------------------------------------------------------------------------
# Fused forward kernel (one batch tile of `tb` images per grid step)
# ----------------------------------------------------------------------------
def _fused_cnn_kernel(lhs1_ref, wb1_ref, b1_ref, wb2_ref, b2_ref,
                      f1_ref, fb1_ref, fw2_ref, fb2_ref, fw3_ref, fb3_ref,
                      o_ref, *, tb):
    f32 = jnp.float32
    h7 = 7 * tb        # rows per pooled-row-parity block
    h14 = 14 * tb

    # ---- Conv1 (5x5 valid) + bias + ReLU + MaxPool(2,2), fully fused -------
    # One (tb*28, 512) @ (512, 256) matmul.  K = 5 kernel rows x 96 (cin,w) [pad 512];
    # N = 2 pool-col parities x 128 (cout x padded width 16).  Rows ordered (p, e, u, b)
    # where conv-output row oh = 4u + 2e + p.
    conv1 = jnp.dot(lhs1_ref[...], wb1_ref[...], preferred_element_type=f32)  # (28tb, 256)
    r1 = jnp.maximum(conv1[:h14, :], conv1[h14:, :])      # pool over row parity   (14tb, 256)
    c1 = jnp.maximum(r1[:, :128], r1[:, 128:])            # pool over col parity   (14tb, 128)
    pooled1 = jnp.maximum(c1 + b1_ref[...], 0.0)          # bias+ReLU (commutes with max)

    # pooled1 rows ordered (e, u, b): e = pooled-row parity, u = pooled_row // 2.
    p1e = pooled1[:h7, :]                                  # even pooled rows  (7tb, 128)
    p1o = pooled1[h7:, :]                                  # odd pooled rows   (7tb, 128)
    zrow = jnp.zeros((tb, 128), f32)

    # ---- Conv2 (3x3, pad=1) + bias + ReLU + MaxPool(2,2), fully fused ------
    # LHS rows ordered (p2, q3, b); kernel rows K-merged (3 x 128 = 384).
    # Height padding = the zero row-blocks; width padding = the zero lanes of pooled1.
    lhs_k0 = jnp.concatenate([zrow, p1o[:6 * tb, :], p1e], axis=0)     # input row oh2-1
    lhs_k1 = pooled1                                                   # input row oh2
    lhs_k2 = jnp.concatenate([p1o, p1e[tb:, :], zrow], axis=0)         # input row oh2+1
    lhs2 = jnp.concatenate([lhs_k0, lhs_k1, lhs_k2],
                           axis=1).astype(wb2_ref.dtype)               # (14tb, 384)

    conv2 = jnp.dot(lhs2, wb2_ref[...], preferred_element_type=f32)    # (14tb, 256)
    r2 = jnp.maximum(conv2[:h7, :], conv2[h7:, :])         # pool over row parity   (7tb, 256)
    c2 = jnp.maximum(r2[:, :128], r2[:, 128:])             # pool over col parity   (7tb, 128)
    pooled2 = jnp.maximum(c2 + b2_ref[...], 0.0)           # rows (q3, b), lanes cout*7+ow3

    # ---- Dense head 784 -> 64 -> 32 -> 10 (NCHW flatten folded into f1) ----
    feat = jnp.concatenate([pooled2[q * tb:(q + 1) * tb, :] for q in range(7)],
                           axis=1).astype(f1_ref.dtype)    # (tb, 896), aligned slabs only
    h1 = jnp.maximum(jnp.dot(feat, f1_ref[...], preferred_element_type=f32)
                     + fb1_ref[...], 0.0)                  # (tb, 64)
    h2 = jnp.maximum(jnp.dot(h1.astype(fw2_ref.dtype), fw2_ref[...],
                             preferred_element_type=f32) + fb2_ref[...], 0.0)   # (tb, 32)
    logits = (jnp.dot(h2.astype(fw3_ref.dtype), fw3_ref[...],
                      preferred_element_type=f32) + fb3_ref[...])                # (tb, 128)
    o_ref[...] = logits.astype(o_ref.dtype)                # lane-dense store


# ----------------------------------------------------------------------------
# Wrapper: cheap HBM-side layout work (im2row for conv1) + one pallas_call
# ----------------------------------------------------------------------------
def example_model_forward(x_nchw, ops, *, tb=_TB):
    """Fused Pallas forward.  x_nchw: (B, 3, 32, 32) f32 -> (B, 10) logits (f32)."""
    assert tb % 8 == 0
    B = x_nchw.shape[0]
    nt = -(-B // tb)
    Bp = nt * tb
    if Bp != B:
        x_nchw = jnp.pad(x_nchw, ((0, Bp - B), (0, 0), (0, 0), (0, 0)))

    # Wrapper-side conv1 "im2row" (HBM-bandwidth only, ~4.7x the raw image bytes):
    # per image, input row r becomes a 96-lane (cin, w) vector; for each conv-output
    # row oh the 5 needed input rows are laid out along K (480 -> padded 512).
    xr = x_nchw.transpose(0, 2, 1, 3).reshape(Bp, 32, 96)
    win = jnp.stack([xr[:, i:i + 28, :] for i in range(5)], axis=2)     # (Bp, 28, 5, 96)
    lhs = jnp.pad(win.reshape(Bp, 28, 480), ((0, 0), (0, 0), (0, 32)))  # K 480 -> 512
    # conv1 output row oh = 4u + 2e + p; order rows (tile, p, e, u, b) so that every
    # downstream pooling / conv2-shift / FC gather is an aligned whole-tile slab.
    lhs = lhs.reshape(nt, tb, 7, 2, 2, 512).transpose(0, 4, 3, 2, 1, 5)
    lhs = lhs.reshape(Bp * 28, 512).astype(ops["wb1"].dtype)

    out = pl.pallas_call(
        functools.partial(_fused_cnn_kernel, tb=tb),
        out_shape=jax.ShapeDtypeStruct((Bp, 128), jnp.float32),   # lane-dense logits slab
        grid=(nt,),
        in_specs=[
            pl.BlockSpec((tb * 28, 512), lambda t: (t, 0)),   # conv1 im2row LHS tile
            pl.BlockSpec((512, 256), lambda t: (0, 0)),       # conv1 banded W (K+parity merged)
            pl.BlockSpec((1, 128), lambda t: (0, 0)),         # conv1 bias row
            pl.BlockSpec((384, 256), lambda t: (0, 0)),       # conv2 banded W (K+parity merged)
            pl.BlockSpec((1, 128), lambda t: (0, 0)),         # conv2 bias row
            pl.BlockSpec((896, 64), lambda t: (0, 0)),        # fc1 (NCHW flatten folded in)
            pl.BlockSpec((1, 64), lambda t: (0, 0)),          # fc1 bias
            pl.BlockSpec((64, 32), lambda t: (0, 0)),         # fc2 W
            pl.BlockSpec((1, 32), lambda t: (0, 0)),          # fc2 bias
            pl.BlockSpec((32, 128), lambda t: (0, 0)),        # fc3 W (N padded 10 -> 128)
            pl.BlockSpec((1, 128), lambda t: (0, 0)),         # fc3 bias (padded)
        ],
        out_specs=pl.BlockSpec((tb, 128), lambda t: (t, 0)),
        compiler_params=pltpu.CompilerParams(
            dimension_semantics=("parallel",)),               # megacore sharding on v7x
    )(lhs, ops["wb1"], ops["b1row"], ops["wb2"], ops["b2row"],
      ops["f1"], ops["fb1"], ops["fw2"], ops["fb2"], ops["fw3"], ops["fb3"])
    return out[:B, :10]


# ----------------------------------------------------------------------------
# Parameters (PyTorch layouts) and one-time kernel-operand construction
# ----------------------------------------------------------------------------
def init_params(key):
    """PyTorch-like uniform(-1/sqrt(fan_in), +1/sqrt(fan_in)) init."""
    ks = jax.random.split(key, 10)

    def unif(k, shape, fan_in):
        bound = 1.0 / np.sqrt(float(fan_in))
        return jax.random.uniform(k, shape, jnp.float32, -bound, bound)

    return {
        "w1": unif(ks[0], (8, 3, 5, 5), 75),   "b1": unif(ks[1], (8,), 75),
        "w2": unif(ks[2], (16, 8, 3, 3), 72),  "b2": unif(ks[3], (16,), 72),
        "fw1": unif(ks[4], (784, 64), 784),    "fb1": unif(ks[5], (64,), 784),
        "fw2": unif(ks[6], (64, 32), 64),      "fb2": unif(ks[7], (32,), 64),
        "fw3": unif(ks[8], (32, 10), 32),      "fb3": unif(ks[9], (10,), 32),
    }


def build_kernel_operands(params):
    """Host-side (one-time) banded conv weights, fused-flatten fc1, padded fc3."""
    w1 = np.asarray(params["w1"], np.float32)      # (8, 3, 5, 5)  OIHW
    b1 = np.asarray(params["b1"], np.float32)
    w2 = np.asarray(params["w2"], np.float32)      # (16, 8, 3, 3)
    b2 = np.asarray(params["b2"], np.float32)
    fw1 = np.asarray(params["fw1"], np.float32)    # (784, 64) == torch weight.T

    # Conv1: K = kernel_row*96 + cin*32 + iw (480 -> pad 512);
    #        N = pool_col_parity*128 + cout*16 + (pooled_col + 1); pad lanes stay 0.
    wb1 = np.zeros((512, 256), np.float32)
    for i in range(5):
        for j in range(5):
            for s in range(2):
                for ow2 in range(14):
                    iw = 2 * ow2 + s + j
                    for cin in range(3):
                        wb1[i * 96 + cin * 32 + iw,
                            s * 128 + ow2 + 1: s * 128 + 128: 16] = w1[:, cin, i, j]
    b1row = np.zeros((1, 128), np.float32)
    for cout in range(8):
        b1row[0, cout * 16 + 1: cout * 16 + 15] = b1[cout]

    # Conv2: K = kernel_row*128 + cin*16 + (in_col + 1) (width pad = zero lanes of pooled1);
    #        N = pool_col_parity*128 + cout*7 + pooled_col; lanes 112..127 of each half = 0.
    wb2 = np.zeros((384, 256), np.float32)
    for i2 in range(3):
        for j2 in range(3):
            for s2 in range(2):
                for ow3 in range(7):
                    iw2 = 2 * ow3 + s2 + j2 - 1            # -1..14 -> lane offset iw2+1
                    for cin2 in range(8):
                        wb2[i2 * 128 + cin2 * 16 + iw2 + 1,
                            s2 * 128 + ow3: s2 * 128 + 112: 7] = w2[:, cin2, i2, j2]
    b2row = np.zeros((1, 128), np.float32)
    for cout in range(16):
        b2row[0, cout * 7: cout * 7 + 7] = b2[cout]

    # fc1 with the PyTorch NCHW flatten folded in: one 128-row K block per pooled row q3
    # (rows 112..127 of each block match pooled2's zero pad lanes and stay zero).
    f1 = np.zeros((896, 64), np.float32)
    fw1r = fw1.reshape(16, 7, 7, 64)                       # (cout2, q3, ow3, n)
    for q3 in range(7):
        f1[q3 * 128: q3 * 128 + 112, :] = fw1r[:, q3, :, :].reshape(112, 64)

    fw3 = np.zeros((32, 128), np.float32)                  # N padded 10 -> 128
    fw3[:, :10] = np.asarray(params["fw3"], np.float32)
    fb3 = np.zeros((1, 128), np.float32)
    fb3[0, :10] = np.asarray(params["fb3"], np.float32)

    md = _MXU_DTYPE
    return {
        "wb1": jnp.asarray(wb1, md), "b1row": jnp.asarray(b1row),
        "wb2": jnp.asarray(wb2, md), "b2row": jnp.asarray(b2row),
        "f1": jnp.asarray(f1, md),
        "fb1": jnp.asarray(np.asarray(params["fb1"], np.float32).reshape(1, 64)),
        "fw2": jnp.asarray(np.asarray(params["fw2"], np.float32), md),
        "fb2": jnp.asarray(np.asarray(params["fb2"], np.float32).reshape(1, 32)),
        "fw3": jnp.asarray(fw3, md),
        "fb3": jnp.asarray(fb3),
    }


# ----------------------------------------------------------------------------
# Pure-JAX reference (identical semantics) for validation
# ----------------------------------------------------------------------------
def reference_forward(x_nchw, params):
    def conv(x, w, b, pad):
        y = jax.lax.conv_general_dilated(
            x, w, window_strides=(1, 1), padding=[(pad, pad), (pad, pad)],
            dimension_numbers=("NCHW", "OIHW", "NCHW"))
        return jnp.maximum(y + b[None, :, None, None], 0.0)

    def pool(x):
        return jax.lax.reduce_window(x, -jnp.inf, jax.lax.max,
                                     (1, 1, 2, 2), (1, 1, 2, 2), "VALID")

    x = pool(conv(x_nchw, params["w1"], params["b1"], 0))
    x = pool(conv(x, params["w2"], params["b2"], 1))
    feat = x.reshape(x.shape[0], -1)                       # NCHW-order flatten
    h = jnp.maximum(feat @ params["fw1"] + params["fb1"], 0.0)
    h = jnp.maximum(h @ params["fw2"] + params["fb2"], 0.0)
    return h @ params["fw3"] + params["fb3"]


if __name__ == "__main__":
    key = jax.random.PRNGKey(0)
    k_x, k_p = jax.random.split(key)

    # [batch, 3, 32, 32] as the PyTorch forward expects; B=64 with tb=32 gives a grid
    # of 2 "parallel" batch tiles (even, so both v7x TensorCores get work).
    x = jax.random.normal(k_x, (64, 3, 32, 32), dtype=jnp.float32)
    params = init_params(k_p)
    ops = build_kernel_operands(params)

    fwd = jax.jit(example_model_forward)
    logits = jax.block_until_ready(fwd(x, ops))

    assert logits.shape == (64, 10), logits.shape
    assert bool(jnp.all(jnp.isfinite(logits)))

    ref = reference_forward(x, params)
    assert bool(jnp.allclose(logits, ref, atol=2e-3, rtol=2e-3)), (
        float(jnp.max(jnp.abs(logits - ref))))

    print("KERNEL_OK")
</pallas_src>

<mosaic_0001>
module attributes {stable_mosaic.version = 11 : i64} {
  func.func @_fused_cnn_kernel(%arg0: i32, %arg1: memref<896x512xf32, #tpu.memory_space<vmem>>, %arg2: memref<512x256xf32, #tpu.memory_space<vmem>>, %arg3: memref<1x128xf32, #tpu.memory_space<vmem>>, %arg4: memref<384x256xf32, #tpu.memory_space<vmem>>, %arg5: memref<1x128xf32, #tpu.memory_space<vmem>>, %arg6: memref<896x64xf32, #tpu.memory_space<vmem>>, %arg7: memref<1x64xf32, #tpu.memory_space<vmem>>, %arg8: memref<64x32xf32, #tpu.memory_space<vmem>>, %arg9: memref<1x32xf32, #tpu.memory_space<vmem>>, %arg10: memref<32x128xf32, #tpu.memory_space<vmem>>, %arg11: memref<1x128xf32, #tpu.memory_space<vmem>>, %arg12: memref<32x128xf32, #tpu.memory_space<vmem>>) attributes {dimension_semantics = [#tpu.dimension_semantics<parallel>], iteration_bounds = array<i64: 2>, scalar_prefetch = 0 : i64, scratch_operands = 0 : i64, tpu.core_type = #tpu.core_type<tc>, window_params = [{transform_indices = @transform_0, window_bounds = array<i64: 896, 512>}, {pipeline_mode = #tpu.pipeline_mode<synchronous>, transform_indices = @transform_1, window_bounds = array<i64: 512, 256>}, {pipeline_mode = #tpu.pipeline_mode<synchronous>, transform_indices = @transform_2, window_bounds = array<i64: 1, 128>}, {pipeline_mode = #tpu.pipeline_mode<synchronous>, transform_indices = @transform_3, window_bounds = array<i64: 384, 256>}, {pipeline_mode = #tpu.pipeline_mode<synchronous>, transform_indices = @transform_4, window_bounds = array<i64: 1, 128>}, {pipeline_mode = #tpu.pipeline_mode<synchronous>, transform_indices = @transform_5, window_bounds = array<i64: 896, 64>}, {pipeline_mode = #tpu.pipeline_mode<synchronous>, transform_indices = @transform_6, window_bounds = array<i64: 1, 64>}, {pipeline_mode = #tpu.pipeline_mode<synchronous>, transform_indices = @transform_7, window_bounds = array<i64: 64, 32>}, {pipeline_mode = #tpu.pipeline_mode<synchronous>, transform_indices = @transform_8, window_bounds = array<i64: 1, 32>}, {pipeline_mode = #tpu.pipeline_mode<synchronous>, transform_indices = @transform_9, window_bounds = array<i64: 32, 128>}, {pipeline_mode = #tpu.pipeline_mode<synchronous>, transform_indices = @transform_10, window_bounds = array<i64: 1, 128>}, {transform_indices = @transform_11, window_bounds = array<i64: 32, 128>}]} {
    %c0 = arith.constant 0 : index
    %c0_0 = arith.constant 0 : index
    %0 = vector.load %arg1[%c0, %c0_0] : memref<896x512xf32, #tpu.memory_space<vmem>>, vector<896x512xf32>
    %c0_1 = arith.constant 0 : index
    %c0_2 = arith.constant 0 : index
    %1 = vector.load %arg2[%c0_1, %c0_2] : memref<512x256xf32, #tpu.memory_space<vmem>>, vector<512x256xf32>
    %cst = arith.constant dense<0.000000e+00> : vector<896x256xf32>
    %2 = tpu.matmul %0, %1, %cst {dimension_numbers = #tpu.dot_dimension_numbers<[1], [0], [0], [1], [0, 0, 1, 1], [], []>} : vector<896x512xf32>, vector<512x256xf32>, vector<896x256xf32> -> vector<896x256xf32>
    %3 = vector.extract_strided_slice %2 {offsets = [0, 0], sizes = [448, 256], strides = [1, 1]} : vector<896x256xf32> to vector<448x256xf32>
    %4 = vector.extract_strided_slice %2 {offsets = [448, 0], sizes = [448, 256], strides = [1, 1]} : vector<896x256xf32> to vector<448x256xf32>
    %5 = arith.maximumf %3, %4 : vector<448x256xf32>
    %6 = vector.extract_strided_slice %5 {offsets = [0, 0], sizes = [448, 128], strides = [1, 1]} : vector<448x256xf32> to vector<448x128xf32>
    %7 = vector.extract_strided_slice %5 {offsets = [0, 128], sizes = [448, 128], strides = [1, 1]} : vector<448x256xf32> to vector<448x128xf32>
    %8 = arith.maximumf %6, %7 : vector<448x128xf32>
    %c0_3 = arith.constant 0 : index
    %c0_4 = arith.constant 0 : index
    %9 = vector.load %arg3[%c0_3, %c0_4] : memref<1x128xf32, #tpu.memory_space<vmem>>, vector<1x128xf32>
    %10 = vector.broadcast %9 : vector<1x128xf32> to vector<448x128xf32>
    %11 = arith.addf %8, %10 : vector<448x128xf32>
    %cst_5 = arith.constant 0.000000e+00 : f32
    %12 = vector.broadcast %cst_5 : f32 to vector<448x128xf32>
    %13 = arith.maximumf %11, %12 : vector<448x128xf32>
    %14 = vector.extract_strided_slice %13 {offsets = [0, 0], sizes = [224, 128], strides = [1, 1]} : vector<448x128xf32> to vector<224x128xf32>
    %15 = vector.extract_strided_slice %13 {offsets = [224, 0], sizes = [224, 128], strides = [1, 1]} : vector<448x128xf32> to vector<224x128xf32>
    %cst_6 = arith.constant 0.000000e+00 : f32
    %16 = vector.broadcast %cst_6 : f32 to vector<32x128xf32>
    %17 = vector.extract_strided_slice %15 {offsets = [0, 0], sizes = [192, 128], strides = [1, 1]} : vector<224x128xf32> to vector<192x128xf32>
    %18 = tpu.concatenate %16, %17, %14 in 0 : vector<32x128xf32>, vector<192x128xf32>, vector<224x128xf32> -> vector<448x128xf32>
    %19 = vector.extract_strided_slice %14 {offsets = [32, 0], sizes = [192, 128], strides = [1, 1]} : vector<224x128xf32> to vector<192x128xf32>
    %20 = tpu.concatenate %15, %19, %16 in 0 : vector<224x128xf32>, vector<192x128xf32>, vector<32x128xf32> -> vector<448x128xf32>
    %21 = tpu.concatenate %18, %13, %20 in 1 : vector<448x128xf32>, vector<448x128xf32>, vector<448x128xf32> -> vector<448x384xf32>
    %c0_7 = arith.constant 0 : index
    %c0_8 = arith.constant 0 : index
    %22 = vector.load %arg4[%c0_7, %c0_8] : memref<384x256xf32, #tpu.memory_space<vmem>>, vector<384x256xf32>
    %cst_9 = arith.constant dense<0.000000e+00> : vector<448x256xf32>
    %23 = tpu.matmul %21, %22, %cst_9 {dimension_numbers = #tpu.dot_dimension_numbers<[1], [0], [0], [1], [0, 0, 1, 1], [], []>} : vector<448x384xf32>, vector<384x256xf32>, vector<448x256xf32> -> vector<448x256xf32>
    %24 = vector.extract_strided_slice %23 {offsets = [0, 0], sizes = [224, 256], strides = [1, 1]} : vector<448x256xf32> to vector<224x256xf32>
    %25 = vector.extract_strided_slice %23 {offsets = [224, 0], sizes = [224, 256], strides = [1, 1]} : vector<448x256xf32> to vector<224x256xf32>
    %26 = arith.maximumf %24, %25 : vector<224x256xf32>
    %27 = vector.extract_strided_slice %26 {offsets = [0, 0], sizes = [224, 128], strides = [1, 1]} : vector<224x256xf32> to vector<224x128xf32>
    %28 = vector.extract_strided_slice %26 {offsets = [0, 128], sizes = [224, 128], strides = [1, 1]} : vector<224x256xf32> to vector<224x128xf32>
    %29 = arith.maximumf %27, %28 : vector<224x128xf32>
    %c0_10 = arith.constant 0 : index
    %c0_11 = arith.constant 0 : index
    %30 = vector.load %arg5[%c0_10, %c0_11] : memref<1x128xf32, #tpu.memory_space<vmem>>, vector<1x128xf32>
    %31 = vector.broadcast %30 : vector<1x128xf32> to vector<224x128xf32>
    %32 = arith.addf %29, %31 : vector<224x128xf32>
    %cst_12 = arith.constant 0.000000e+00 : f32
    %33 = vector.broadcast %cst_12 : f32 to vector<224x128xf32>
    %34 = arith.maximumf %32, %33 : vector<224x128xf32>
    %35 = vector.extract_strided_slice %34 {offsets = [0, 0], sizes = [32, 128], strides = [1, 1]} : vector<224x128xf32> to vector<32x128xf32>
    %36 = vector.extract_strided_slice %34 {offsets = [32, 0], sizes = [32, 128], strides = [1, 1]} : vector<224x128xf32> to vector<32x128xf32>
    %37 = vector.extract_strided_slice %34 {offsets = [64, 0], sizes = [32, 128], strides = [1, 1]} : vector<224x128xf32> to vector<32x128xf32>
    %38 = vector.extract_strided_slice %34 {offsets = [96, 0], sizes = [32, 128], strides = [1, 1]} : vector<224x128xf32> to vector<32x128xf32>
    %39 = vector.extract_strided_slice %34 {offsets = [128, 0], sizes = [32, 128], strides = [1, 1]} : vector<224x128xf32> to vector<32x128xf32>
    %40 = vector.extract_strided_slice %34 {offsets = [160, 0], sizes = [32, 128], strides = [1, 1]} : vector<224x128xf32> to vector<32x128xf32>
    %41 = vector.extract_strided_slice %34 {offsets = [192, 0], sizes = [32, 128], strides = [1, 1]} : vector<224x128xf32> to vector<32x128xf32>
    %42 = tpu.concatenate %35, %36, %37, %38, %39, %40, %41 in 1 : vector<32x128xf32>, vector<32x128xf32>, vector<32x128xf32>, vector<32x128xf32>, vector<32x128xf32>, vector<32x128xf32>, vector<32x128xf32> -> vector<32x896xf32>
    %c0_13 = arith.constant 0 : index
    %c0_14 = arith.constant 0 : index
    %43 = vector.load %arg6[%c0_13, %c0_14] : memref<896x64xf32, #tpu.memory_space<vmem>>, vector<896x64xf32>
    %cst_15 = arith.constant dense<0.000000e+00> : vector<32x64xf32>
    %44 = tpu.matmul %42, %43, %cst_15 {dimension_numbers = #tpu.dot_dimension_numbers<[1], [0], [0], [1], [0, 0, 1, 1], [], []>} : vector<32x896xf32>, vector<896x64xf32>, vector<32x64xf32> -> vector<32x64xf32>
    %c0_16 = arith.constant 0 : index
    %c0_17 = arith.constant 0 : index
    %45 = vector.load %arg7[%c0_16, %c0_17] : memref<1x64xf32, #tpu.memory_space<vmem>>, vector<1x64xf32>
    %46 = vector.broadcast %45 : vector<1x64xf32> to vector<32x64xf32>
    %47 = arith.addf %44, %46 : vector<32x64xf32>
    %cst_18 = arith.constant 0.000000e+00 : f32
    %48 = vector.broadcast %cst_18 : f32 to vector<32x64xf32>
    %49 = arith.maximumf %47, %48 : vector<32x64xf32>
    %c0_19 = arith.constant 0 : index
    %c0_20 = arith.constant 0 : index
    %50 = vector.load %arg8[%c0_19, %c0_20] : memref<64x32xf32, #tpu.memory_space<vmem>>, vector<64x32xf32>
    %cst_21 = arith.constant dense<0.000000e+00> : vector<32x32xf32>
    %51 = tpu.matmul %49, %50, %cst_21 {dimension_numbers = #tpu.dot_dimension_numbers<[1], [0], [0], [1], [0, 0, 1, 1], [], []>} : vector<32x64xf32>, vector<64x32xf32>, vector<32x32xf32> -> vector<32x32xf32>
    %c0_22 = arith.constant 0 : index
    %c0_23 = arith.constant 0 : index
    %52 = vector.load %arg9[%c0_22, %c0_23] : memref<1x32xf32, #tpu.memory_space<vmem>>, vector<1x32xf32>
    %53 = vector.broadcast %52 : vector<1x32xf32> to vector<32x32xf32>
    %54 = arith.addf %51, %53 : vector<32x32xf32>
    %cst_24 = arith.constant 0.000000e+00 : f32
    %55 = vector.broadcast %cst_24 : f32 to vector<32x32xf32>
    %56 = arith.maximumf %54, %55 : vector<32x32xf32>
    %c0_25 = arith.constant 0 : index
    %c0_26 = arith.constant 0 : index
    %57 = vector.load %arg10[%c0_25, %c0_26] : memref<32x128xf32, #tpu.memory_space<vmem>>, vector<32x128xf32>
    %cst_27 = arith.constant dense<0.000000e+00> : vector<32x128xf32>
    %58 = tpu.matmul %56, %57, %cst_27 {dimension_numbers = #tpu.dot_dimension_numbers<[1], [0], [0], [1], [0, 0, 1, 1], [], []>} : vector<32x32xf32>, vector<32x128xf32>, vector<32x128xf32> -> vector<32x128xf32>
    %c0_28 = arith.constant 0 : index
    %c0_29 = arith.constant 0 : index
    %59 = vector.load %arg11[%c0_28, %c0_29] : memref<1x128xf32, #tpu.memory_space<vmem>>, vector<1x128xf32>
    %60 = vector.broadcast %59 : vector<1x128xf32> to vector<32x128xf32>
    %61 = arith.addf %58, %60 : vector<32x128xf32>
    %c0_30 = arith.constant 0 : index
    %c0_31 = arith.constant 0 : index
    %62 = vector.load %arg12[%c0_30, %c0_31] : memref<32x128xf32, #tpu.memory_space<vmem>>, vector<32x128xf32>
    tpu.vector_store %arg12[%c0_30, %c0_31], %61 {strides = array<i32>} : memref<32x128xf32, #tpu.memory_space<vmem>>, vector<32x128xf32>,
    return
  }
  func.func @transform_0(%arg0: i32) -> (i32, i32) {
    %c0_i32 = arith.constant 0 : i32
    %c0_i32_0 = arith.constant 0 : i32
    return %arg0, %c0_i32 : i32, i32
  }
  func.func @transform_1(%arg0: i32) -> (i32, i32) {
    %c0_i32 = arith.constant 0 : i32
    %c0_i32_0 = arith.constant 0 : i32
    %c0_i32_1 = arith.constant 0 : i32
    return %c0_i32, %c0_i32_0 : i32, i32
  }
  func.func @transform_2(%arg0: i32) -> (i32, i32) {
    %c0_i32 = arith.constant 0 : i32
    %c0_i32_0 = arith.constant 0 : i32
    %c0_i32_1 = arith.constant 0 : i32
    return %c0_i32, %c0_i32_0 : i32, i32
  }
  func.func @transform_3(%arg0: i32) -> (i32, i32) {
    %c0_i32 = arith.constant 0 : i32
    %c0_i32_0 = arith.constant 0 : i32
    %c0_i32_1 = arith.constant 0 : i32
    return %c0_i32, %c0_i32_0 : i32, i32
  }
  func.func @transform_4(%arg0: i32) -> (i32, i32) {
    %c0_i32 = arith.constant 0 : i32
    %c0_i32_0 = arith.constant 0 : i32
    %c0_i32_1 = arith.constant 0 : i32
    return %c0_i32, %c0_i32_0 : i32, i32
  }
  func.func @transform_5(%arg0: i32) -> (i32, i32) {
    %c0_i32 = arith.constant 0 : i32
    %c0_i32_0 = arith.constant 0 : i32
    %c0_i32_1 = arith.constant 0 : i32
    return %c0_i32, %c0_i32_0 : i32, i32
  }
  func.func @transform_6(%arg0: i32) -> (i32, i32) {
    %c0_i32 = arith.constant 0 : i32
    %c0_i32_0 = arith.constant 0 : i32
    %c0_i32_1 = arith.constant 0 : i32
    return %c0_i32, %c0_i32_0 : i32, i32
  }
  func.func @transform_7(%arg0: i32) -> (i32, i32) {
    %c0_i32 = arith.constant 0 : i32
    %c0_i32_0 = arith.constant 0 : i32
    %c0_i32_1 = arith.constant 0 : i32
    return %c0_i32, %c0_i32_0 : i32, i32
  }
  func.func @transform_8(%arg0: i32) -> (i32, i32) {
    %c0_i32 = arith.constant 0 : i32
    %c0_i32_0 = arith.constant 0 : i32
    %c0_i32_1 = arith.constant 0 : i32
    return %c0_i32, %c0_i32_0 : i32, i32
  }
  func.func @transform_9(%arg0: i32) -> (i32, i32) {
    %c0_i32 = arith.constant 0 : i32
    %c0_i32_0 = arith.constant 0 : i32
    %c0_i32_1 = arith.constant 0 : i32
    return %c0_i32, %c0_i32_0 : i32, i32
  }
  func.func @transform_10(%arg0: i32) -> (i32, i32) {
    %c0_i32 = arith.constant 0 : i32
    %c0_i32_0 = arith.constant 0 : i32
    %c0_i32_1 = arith.constant 0 : i32
    return %c0_i32, %c0_i32_0 : i32, i32
  }
  func.func @transform_11(%arg0: i32) -> (i32, i32) {
    %c0_i32 = arith.constant 0 : i32
    %c0_i32_0 = arith.constant 0 : i32
    return %arg0, %c0_i32 : i32, i32
  }
}

</mosaic_0001>

<llo_original>
// kernel: example_model_forward.1
$region0: #{example_model_forward.1}
  #allocation0 [shape = 'u32[]', space=smem, size = 0x4, offset = 0x4, fixed_abs, tag = 'smem constant byte address 0x4 - core index']
  #allocation1 [shape = 'u32[144,128]{1,0:T(1,128)}', space=vmem, size = 0x12000, scoped, tag = 'internal scratch']
  %s0 = inlined_call_operand.vmem [shape: f32[1792,512], index: 0, kind: input, shape index: {}]
  %s1 = inlined_call_operand.vmem [shape: f32[512,256], index: 1, kind: input, shape index: {}]
  %s2 = inlined_call_operand.vmem [shape: f32[1,128], index: 2, kind: input, shape index: {}]
  %s3 = inlined_call_operand.vmem [shape: f32[384,256], index: 3, kind: input, shape index: {}]
  %s4 = inlined_call_operand.vmem [shape: f32[1,128], index: 4, kind: input, shape index: {}]
  %s5 = inlined_call_operand.vmem [shape: f32[896,64], index: 5, kind: input, shape index: {}]
  %s6 = inlined_call_operand.vmem [shape: f32[1,64], index: 6, kind: input, shape index: {}]
  %s7 = inlined_call_operand.vmem [shape: f32[64,32], index: 7, kind: input, shape index: {}]
  %s8 = inlined_call_operand.vmem [shape: f32[1,32], index: 8, kind: input, shape index: {}]
  %s9 = inlined_call_operand.vmem [shape: f32[32,128], index: 9, kind: input, shape index: {}]
  %s10 = inlined_call_operand.vmem [shape: f32[1,128], index: 10, kind: input, shape index: {}]
  %s11 = inlined_call_operand.vmem [shape: f32[64,128], index: 11, kind: output, shape index: {}]
  %s12 = sld [smem:[#allocation0]]
  $region77: #{example_model_forward.1} parent=0
    _
  %s14 = ssub.s32 1, %s12
  %s15 = scalar_select 0, %s14, %s12
  loop: start=0, step=1, limit=4
  $region2: #{example_model_forward.1} parent=0 // loop_pre_header
    _
  $region3: #{example_model_forward.1} parent=0 // loop_header
    %s17 = sphi 0, %s21
    %p18 = scmp.ge.s32.totalorder %s17, 4
    %s27 = sphi 0, %s29
    %s30 = sphi 0, %s27
    %s31 = sphi 0, %s30
    %s47 = sphi 0, %s31
    %s51 = sphi 0, %s51
    %s53 = sphi 0, %s51
    %s54 = sphi 0, %s53
    %s68 = sphi 0, %s54
    %s72 = sphi 0, %s72
    %s74 = sphi 0, %s72
    %s75 = sphi 0, %s74
    %s89 = sphi 0, %s75
    %s93 = sphi 0, %s93
    %s95 = sphi 0, %s93
    %s96 = sphi 0, %s95
    %s110 = sphi 0, %s96
    %s114 = sphi 0, %s114
    %s116 = sphi 0, %s114
    %s117 = sphi 0, %s116
    %s131 = sphi 0, %s117
    %s135 = sphi 0, %s135
    %s137 = sphi 0, %s135
    %s138 = sphi 0, %s137
    %s152 = sphi 0, %s138
    %s156 = sphi 0, %s156
    %s158 = sphi 0, %s156
    %s159 = sphi 0, %s158
    %s173 = sphi 0, %s159
    %s177 = sphi 0, %s177
    %s179 = sphi 0, %s177
    %s180 = sphi 0, %s179
    %s194 = sphi 0, %s180
    %s198 = sphi 0, %s198
    %s200 = sphi 0, %s198
    %s201 = sphi 0, %s200
    %s215 = sphi 0, %s201
    %s219 = sphi 0, %s219
    %s221 = sphi 0, %s219
    %s222 = sphi 0, %s221
    %s236 = sphi 0, %s222
    %s240 = sphi 0, %s240
    %s242 = sphi 0, %s240
    %s243 = sphi 0, %s242
    %s257 = sphi 0, %s243
    %s263 = sphi 0, %s265
    %s266 = sphi 0, %s263
    %s267 = sphi 0, %s266
    %s283 = sphi 0, %s267
  $region4: #{example_model_forward.1} parent=0 // loop_header_branch
    %20 = sbr.rel (%p18) target = $region8
  $region5: #{example_model_forward.1} parent=0 // loop_body
    %s22 = ssub.s32 %s17, 1
    %s23 = ssub.s32 %s17, 2
    %s24 = sadd.s32 %s17, 1
    %s25 = ssub.s32 %s17, %s24
    %p26 = scmp.eq.s32.totalorder %s25, 0
    %s28 = sadd.s32 %s27, 1
    %s29 = scalar_select %p26, %s27, %s28
    %p32 = pneg %p26
    %p33 = scmp.eq.s32.totalorder %s17, 1
    %p34 = por %p32, %p33
    %p35 = scmp.ne.s32.totalorder %s27, %s30
    %p36 = scmp.eq.s32.totalorder %s17, 0
    %p37 = por %p35, %p36
    %p38 = scmp.ne.s32.totalorder %s27, %s30
    %p39 = scmp.eq.s32.totalorder %s22, 1
    %p40 = por %p38, %p39
    %p41 = scmp.ne.s32.totalorder %s30, %s31
    %p42 = scmp.eq.s32.totalorder %s22, 0
    %p43 = por %p41, %p42
    %p44 = scmp.ne.s32.totalorder %s30, %s31
    %p45 = scmp.eq.s32.totalorder %s23, 1
    %p46 = por %p44, %p45
    %p48 = scmp.ne.s32.totalorder %s31, %s47
    %p49 = scmp.eq.s32.totalorder %s23, 0
    %p50 = por %p48, %p49
    %s52 = sadd.s32 %s51, 1
    %p55 = scmp.eq.s32.totalorder %s17, 1
    %p56 = scmp.ne.s32.totalorder %s51, %s53
    %p57 = scmp.eq.s32.totalorder %s17, 0
    %p58 = por %p56, %p57
    %p59 = scmp.ne.s32.totalorder %s51, %s53
    %p60 = scmp.eq.s32.totalorder %s22, 1
    %p61 = por %p59, %p60
    %p62 = scmp.ne.s32.totalorder %s53, %s54
    %p63 = scmp.eq.s32.totalorder %s22, 0
    %p64 = por %p62, %p63
    %p65 = scmp.ne.s32.totalorder %s53, %s54
    %p66 = scmp.eq.s32.totalorder %s23, 1
    %p67 = por %p65, %p66
    %p69 = scmp.ne.s32.totalorder %s54, %s68
    %p70 = scmp.eq.s32.totalorder %s23, 0
    %p71 = por %p69, %p70
    %s73 = sadd.s32 %s72, 1
    %p76 = scmp.eq.s32.totalorder %s17, 1
    %p77 = scmp.ne.s32.totalorder %s72, %s74
    %p78 = scmp.eq.s32.totalorder %s17, 0
    %p79 = por %p77, %p78
    %p80 = scmp.ne.s32.totalorder %s72, %s74
    %p81 = scmp.eq.s32.totalorder %s22, 1
    %p82 = por %p80, %p81
    %p83 = scmp.ne.s32.totalorder %s74, %s75
    %p84 = scmp.eq.s32.totalorder %s22, 0
    %p85 = por %p83, %p84
    %p86 = scmp.ne.s32.totalorder %s74, %s75
    %p87 = scmp.eq.s32.totalorder %s23, 1
    %p88 = por %p86, %p87
    %p90 = scmp.ne.s32.totalorder %s75, %s89
    %p91 = scmp.eq.s32.totalorder %s23, 0
    %p92 = por %p90, %p91
    %s94 = sadd.s32 %s93, 1
    %p97 = scmp.eq.s32.totalorder %s17, 1
    %p98 = scmp.ne.s32.totalorder %s93, %s95
    %p99 = scmp.eq.s32.totalorder %s17, 0
    %p100 = por %p98, %p99
    %p101 = scmp.ne.s32.totalorder %s93, %s95
    %p102 = scmp.eq.s32.totalorder %s22, 1
    %p103 = por %p101, %p102
    %p104 = scmp.ne.s32.totalorder %s95, %s96
    %p105 = scmp.eq.s32.totalorder %s22, 0
    %p106 = por %p104, %p105
    %p107 = scmp.ne.s32.totalorder %s95, %s96
    %p108 = scmp.eq.s32.totalorder %s23, 1
    %p109 = por %p107, %p108
    %p111 = scmp.ne.s32.totalorder %s96, %s110
    %p112 = scmp.eq.s32.totalorder %s23, 0
    %p113 = por %p111, %p112
    %s115 = sadd.s32 %s114, 1
    %p118 = scmp.eq.s32.totalorder %s17, 1
    %p119 = scmp.ne.s32.totalorder %s114, %s116
    %p120 = scmp.eq.s32.totalorder %s17, 0
    %p121 = por %p119, %p120
    %p122 = scmp.ne.s32.totalorder %s114, %s116
    %p123 = scmp.eq.s32.totalorder %s22, 1
    %p124 = por %p122, %p123
    %p125 = scmp.ne.s32.totalorder %s116, %s117
    %p126 = scmp.eq.s32.totalorder %s22, 0
    %p127 = por %p125, %p126
    %p128 = scmp.ne.s32.totalorder %s116, %s117
    %p129 = scmp.eq.s32.totalorder %s23, 1
    %p130 = por %p128, %p129
    %p132 = scmp.ne.s32.totalorder %s117, %s131
    %p133 = scmp.eq.s32.totalorder %s23, 0
    %p134 = por %p132, %p133
    %s136 = sadd.s32 %s135, 1
    %p139 = scmp.eq.s32.totalorder %s17, 1
    %p140 = scmp.ne.s32.totalorder %s135, %s137
    %p141 = scmp.eq.s32.totalorder %s17, 0
    %p142 = por %p140, %p141
    %p143 = scmp.ne.s32.totalorder %s135, %s137
    %p144 = scmp.eq.s32.totalorder %s22, 1
    %p145 = por %p143, %p144
    %p146 = scmp.ne.s32.totalorder %s137, %s138
    %p147 = scmp.eq.s32.totalorder %s22, 0
    %p148 = por %p146, %p147
    %p149 = scmp.ne.s32.totalorder %s137, %s138
    %p150 = scmp.eq.s32.totalorder %s23, 1
    %p151 = por %p149, %p150
    %p153 = scmp.ne.s32.totalorder %s138, %s152
    %p154 = scmp.eq.s32.totalorder %s23, 0
    %p155 = por %p153, %p154
    %s157 = sadd.s32 %s156, 1
    %p160 = scmp.eq.s32.totalorder %s17, 1
    %p161 = scmp.ne.s32.totalorder %s156, %s158
    %p162 = scmp.eq.s32.totalorder %s17, 0
    %p163 = por %p161, %p162
    %p164 = scmp.ne.s32.totalorder %s156, %s158
    %p165 = scmp.eq.s32.totalorder %s22, 1
    %p166 = por %p164, %p165
    %p167 = scmp.ne.s32.totalorder %s158, %s159
    %p168 = scmp.eq.s32.totalorder %s22, 0
    %p169 = por %p167, %p168
    %p170 = scmp.ne.s32.totalorder %s158, %s159
    %p171 = scmp.eq.s32.totalorder %s23, 1
    %p172 = por %p170, %p171
    %p174 = scmp.ne.s32.totalorder %s159, %s173
    %p175 = scmp.eq.s32.totalorder %s23, 0
    %p176 = por %p174, %p175
    %s178 = sadd.s32 %s177, 1
    %p181 = scmp.eq.s32.totalorder %s17, 1
    %p182 = scmp.ne.s32.totalorder %s177, %s179
    %p183 = scmp.eq.s32.totalorder %s17, 0
    %p184 = por %p182, %p183
    %p185 = scmp.ne.s32.totalorder %s177, %s179
    %p186 = scmp.eq.s32.totalorder %s22, 1
    %p187 = por %p185, %p186
    %p188 = scmp.ne.s32.totalorder %s179, %s180
    %p189 = scmp.eq.s32.totalorder %s22, 0
    %p190 = por %p188, %p189
    %p191 = scmp.ne.s32.totalorder %s179, %s180
    %p192 = scmp.eq.s32.totalorder %s23, 1
    %p193 = por %p191, %p192
    %p195 = scmp.ne.s32.totalorder %s180, %s194
    %p196 = scmp.eq.s32.totalorder %s23, 0
    %p197 = por %p195, %p196
    %s199 = sadd.s32 %s198, 1
    %p202 = scmp.eq.s32.totalorder %s17, 1
    %p203 = scmp.ne.s32.totalorder %s198, %s200
    %p204 = scmp.eq.s32.totalorder %s17, 0
    %p205 = por %p203, %p204
    %p206 = scmp.ne.s32.totalorder %s198, %s200
    %p207 = scmp.eq.s32.totalorder %s22, 1
    %p208 = por %p206, %p207
    %p209 = scmp.ne.s32.totalorder %s200, %s201
    %p210 = scmp.eq.s32.totalorder %s22, 0
    %p211 = por %p209, %p210
    %p212 = scmp.ne.s32.totalorder %s200, %s201
    %p213 = scmp.eq.s32.totalorder %s23, 1
    %p214 = por %p212, %p213
    %p216 = scmp.ne.s32.totalorder %s201, %s215
    %p217 = scmp.eq.s32.totalorder %s23, 0
    %p218 = por %p216, %p217
    %s220 = sadd.s32 %s219, 1
    %p223 = scmp.eq.s32.totalorder %s17, 1
    %p224 = scmp.ne.s32.totalorder %s219, %s221
    %p225 = scmp.eq.s32.totalorder %s17, 0
    %p226 = por %p224, %p225
    %p227 = scmp.ne.s32.totalorder %s219, %s221
    %p228 = scmp.eq.s32.totalorder %s22, 1
    %p229 = por %p227, %p228
    %p230 = scmp.ne.s32.totalorder %s221, %s222
    %p231 = scmp.eq.s32.totalorder %s22, 0
    %p232 = por %p230, %p231
    %p233 = scmp.ne.s32.totalorder %s221, %s222
    %p234 = scmp.eq.s32.totalorder %s23, 1
    %p235 = por %p233, %p234
    %p237 = scmp.ne.s32.totalorder %s222, %s236
    %p238 = scmp.eq.s32.totalorder %s23, 0
    %p239 = por %p237, %p238
    %s241 = sadd.s32 %s240, 1
    %p244 = scmp.eq.s32.totalorder %s17, 1
    %p245 = scmp.ne.s32.totalorder %s240, %s242
    %p246 = scmp.eq.s32.totalorder %s17, 0
    %p247 = por %p245, %p246
    %p248 = scmp.ne.s32.totalorder %s240, %s242
    %p249 = scmp.eq.s32.totalorder %s22, 1
    %p250 = por %p248, %p249
    %p251 = scmp.ne.s32.totalorder %s242, %s243
    %p252 = scmp.eq.s32.totalorder %s22, 0
    %p253 = por %p251, %p252
    %p254 = scmp.ne.s32.totalorder %s242, %s243
    %p255 = scmp.eq.s32.totalorder %s23, 1
    %p256 = por %p254, %p255
    %p258 = scmp.ne.s32.totalorder %s243, %s257
    %p259 = scmp.eq.s32.totalorder %s23, 0
    %p260 = por %p258, %p259
    %s261 = ssub.s32 %s17, %s24
    %p262 = scmp.eq.s32.totalorder %s261, 0
    %s264 = sadd.s32 %s263, 1
    %s265 = scalar_select %p262, %s263, %s264
    %p268 = pneg %p262
    %p269 = scmp.eq.s32.totalorder %s17, 1
    %p270 = por %p268, %p269
    %p271 = scmp.ne.s32.totalorder %s263, %s266
    %p272 = scmp.eq.s32.totalorder %s17, 0
    %p273 = por %p271, %p272
    %p274 = scmp.ne.s32.totalorder %s263, %s266
    %p275 = scmp.eq.s32.totalorder %s22, 1
    %p276 = por %p274, %p275
    %p277 = scmp.ne.s32.totalorder %s266, %s267
    %p278 = scmp.eq.s32.totalorder %s22, 0
    %p279 = por %p277, %p278
    %p280 = scmp.ne.s32.totalorder %s266, %s267
    %p281 = scmp.eq.s32.totalorder %s23, 1
    %p282 = por %p280, %p281
    %p284 = scmp.ne.s32.totalorder %s267, %s283
    %p285 = scmp.eq.s32.totalorder %s23, 0
    %p286 = por %p284, %p285
    %p287 = scmp.le.s32.totalorder 1, %s17
    %p288 = scmp.lt.s32.totalorder %s17, 3
    %p289 = pnand %p287, %p288
    %p290 = pneg %p289
    // Predicated region
    $region9: #{example_model_forward.1} parent=5 // pred_check
      _
    $region10: #{example_model_forward.1} parent=5 // pred_check_branch
      %292 = sbr.rel (%p289) target = $region12
    $region11: #{example_model_forward.1} parent=5 // pred_region
      %s293 = ssub.s32 %s17, 1
      // Predicated region
      $region13: #{example_model_forward.1} parent=11 // pred_check
        %p294 = pneg %p64
      $region14: #{example_model_forward.1} parent=11 // pred_check_branch
        %296 = sbr.rel (%p294) target = $region16
      $region15: #{example_model_forward.1} parent=11 // pred_region
        _
      $region16: #{example_model_forward.1} parent=11 // pred_fallthru
        _
      // Predicated region
      $region17: #{example_model_forward.1} parent=11 // pred_check
        %p297 = pneg %p85
      $region18: #{example_model_forward.1} parent=11 // pred_check_branch
        %299 = sbr.rel (%p297) target = $region20
      $region19: #{example_model_forward.1} parent=11 // pred_region
        _
      $region20: #{example_model_forward.1} parent=11 // pred_fallthru
        _
      // Predicated region
      $region21: #{example_model_forward.1} parent=11 // pred_check
        %p300 = pneg %p106
      $region22: #{example_model_forward.1} parent=11 // pred_check_branch
        %302 = sbr.rel (%p300) target = $region24
      $region23: #{example_model_forward.1} parent=11 // pred_region
        _
      $region24: #{example_model_forward.1} parent=11 // pred_fallthru
        _
      // Predicated region
      $region25: #{example_model_forward.1} parent=11 // pred_check
        %p303 = pneg %p127
      $region26: #{example_model_forward.1} parent=11 // pred_check_branch
        %305 = sbr.rel (%p303) target = $region28
      $region27: #{example_model_forward.1} parent=11 // pred_region
        _
      $region28: #{example_model_forward.1} parent=11 // pred_fallthru
        _
      // Predicated region
      $region29: #{example_model_forward.1} parent=11 // pred_check
        %p306 = pneg %p148
      $region30: #{example_model_forward.1} parent=11 // pred_check_branch
        %308 = sbr.rel (%p306) target = $region32
      $region31: #{example_model_forward.1} parent=11 // pred_region
        _
      $region32: #{example_model_forward.1} parent=11 // pred_fallthru
        _
      // Predicated region
      $region33: #{example_model_forward.1} parent=11 // pred_check
        %p309 = pneg %p169
      $region34: #{example_model_forward.1} parent=11 // pred_check_branch
        %311 = sbr.rel (%p309) target = $region36
      $region35: #{example_model_forward.1} parent=11 // pred_region
        _
      $region36: #{example_model_forward.1} parent=11 // pred_fallthru
        _
      // Predicated region
      $region37: #{example_model_forward.1} parent=11 // pred_check
        %p312 = pneg %p190
      $region38: #{example_model_forward.1} parent=11 // pred_check_branch
        %314 = sbr.rel (%p312) target = $region40
      $region39: #{example_model_forward.1} parent=11 // pred_region
        _
      $region40: #{example_model_forward.1} parent=11 // pred_fallthru
        _
      // Predicated region
      $region41: #{example_model_forward.1} parent=11 // pred_check
        %p315 = pneg %p211
      $region42: #{example_model_forward.1} parent=11 // pred_check_branch
        %317 = sbr.rel (%p315) target = $region44
      $region43: #{example_model_forward.1} parent=11 // pred_region
        _
      $region44: #{example_model_forward.1} parent=11 // pred_fallthru
        _
      // Predicated region
      $region45: #{example_model_forward.1} parent=11 // pred_check
        %p318 = pneg %p232
      $region46: #{example_model_forward.1} parent=11 // pred_check_branch
        %320 = sbr.rel (%p318) target = $region48
      $region47: #{example_model_forward.1} parent=11 // pred_region
        _
      $region48: #{example_model_forward.1} parent=11 // pred_fallthru
        _
      // Predicated region
      $region49: #{example_model_forward.1} parent=11 // pred_check
        %p321 = pneg %p253
      $region50: #{example_model_forward.1} parent=11 // pred_check_branch
        %323 = sbr.rel (%p321) target = $region52
      $region51: #{example_model_forward.1} parent=11 // pred_region
        _
      $region52: #{example_model_forward.1} parent=11 // pred_fallthru
        _
    $region12: #{example_model_forward.1} parent=5 // pred_fallthru
      _
    %p324 = scmp.lt.s32.totalorder %s17, 2
    // Predicated region
    $region53: #{example_model_forward.1} parent=5 // pred_check
      %p325 = pneg %p324
    $region54: #{example_model_forward.1} parent=5 // pred_check_branch
      %327 = sbr.rel (%p325) target = $region56
    $region55: #{example_model_forward.1} parent=5 // pred_region
      // Predicated region
      $region57: #{example_model_forward.1} parent=55 // pred_check
        %p328 = pneg %p37
      $region58: #{example_model_forward.1} parent=55 // pred_check_branch
        %330 = sbr.rel (%p328) target = $region60
      $region59: #{example_model_forward.1} parent=55 // pred_region
        %s331 = smul.u32 112, %s17
        %p332 = scmp.lt.s32.totalorder %s331, 223
        %s333 = scalar_select %p332, %s331, 223
        %s334 = smul.addr %s333, 4
        %s335 = smul.addr %s334, 8
        %s336 = scalar_lea.vmem %s0, %s335
        %s337 = smul.u32 112, %s17
      $region60: #{example_model_forward.1} parent=55 // pred_fallthru
        _
    $region56: #{example_model_forward.1} parent=5 // pred_fallthru
      _
    %p338 = scmp.le.s32.totalorder 1, %s17
    %p339 = scmp.lt.s32.totalorder %s17, 3
    %p340 = pnand %p338, %p339
    %p341 = pneg %p340
    // Predicated region
    $region61: #{example_model_forward.1} parent=5 // pred_check
      _
    $region62: #{example_model_forward.1} parent=5 // pred_check_branch
      %343 = sbr.rel (%p340) target = $region64
    $region63: #{example_model_forward.1} parent=5 // pred_region
      %s344 = ssub.s32 %s17, 1
      %s345 = smul.u32 112, %s22
      %p346 = scmp.lt.s32.totalorder %s345, 223
      %s347 = scalar_select %p346, %s345, 223
      %s348 = smul.addr %s347, 4
      %s349 = smul.addr %s348, 8
      %s350 = scalar_lea.vmem %s0, %s349
      %p351 = pneg %p43
      %p352 = pneg %p40
      %p353 = pneg %p64
      %p354 = pneg %p61
      %p355 = pneg %p85
      %p356 = pneg %p82
      %p357 = pneg %p106
      %p358 = pneg %p103
      %p359 = pneg %p127
      %p360 = pneg %p124
      %p361 = pneg %p148
      %p362 = pneg %p145
      %p363 = pneg %p169
      %p364 = pneg %p166
      %p365 = pneg %p190
      %p366 = pneg %p187
      %p367 = pneg %p211
      %p368 = pneg %p208
      %p369 = pneg %p232
      %p370 = pneg %p229
      %p371 = pneg %p253
      %p372 = pneg %p250
      %p373 = pneg %p279
      %p374 = pneg %p276
      %s375 = smul.u32 4, %s22
      %p376 = scmp.lt.s32.totalorder %s375, 7
      %s377 = scalar_select %p376, %s375, 7
      %s378 = smul.addr %s377, 8
      %s379 = scalar_lea.vmem %s11, %s378
      %s380 = smul.u32 112, %s22
      %p381 = scmp.lt.s32.totalorder %s380, 223
      %s382 = scalar_select %p381, %s380, 223
      %s383 = smul.addr %s382, 4
      %s384 = smul.addr %s383, 8
      %s385 = scalar_lea.vmem %s0, %s384
      %s386 = smul.u32 112, %s22
      %s387 = smul.u32 4, %s22
      %p388 = scmp.lt.s32.totalorder %s387, 7
      %s389 = scalar_select %p388, %s387, 7
      %s390 = smul.addr %s389, 8
      %s391 = scalar_lea.vmem %s11, %s390
      %s392 = smul.u32 4, %s22
      %v393 = vld [vmem:[%s385] sm:$0xff]
      %v394 = vld [vmem:[%s385 + $0x8] sm:$0xff]
      %v395 = vld [vmem:[%s385 + $0x10] sm:$0xff]
      %v396 = vld [vmem:[%s385 + $0x18] sm:$0xff]
      %v397 = vld [vmem:[%s385 + $0x20] sm:$0xff]
      %v398 = vld [vmem:[%s385 + $0x28] sm:$0xff]
      %v399 = vld [vmem:[%s385 + $0x30] sm:$0xff]
      %v400 = vld [vmem:[%s385 + $0x38] sm:$0xff]
      %v401 = vld [vmem:[%s385 + $0x40] sm:$0xff]
      %v402 = vld [vmem:[%s385 + $0x48] sm:$0xff]
      %v403 = vld [vmem:[%s385 + $0x50] sm:$0xff]
      %v404 = vld [vmem:[%s385 + $0x58] sm:$0xff]
      %v405 = vld [vmem:[%s385 + $0x60] sm:$0xff]
      %v406 = vld [vmem:[%s385 + $0x68] sm:$0xff]
      %v407 = vld [vmem:[%s385 + $0x70] sm:$0xff]
      %v408 = vld [vmem:[%s385 + $0x78] sm:$0xff]
      %v409 = vld [vmem:[%s385 + $0x80] sm:$0xff]
      %v410 = vld [vmem:[%s385 + $0x88] sm:$0xff]
      %v411 = vld [vmem:[%s385 + $0x90] sm:$0xff]
      %v412 = vld [vmem:[%s385 + $0x98] sm:$0xff]
      %v413 = vld [vmem:[%s385 + $0xa0] sm:$0xff]
      %v414 = vld [vmem:[%s385 + $0xa8] sm:$0xff]
      %v415 = vld [vmem:[%s385 + $0xb0] sm:$0xff]
      %v416 = vld [vmem:[%s385 + $0xb8] sm:$0xff]
      %v417 = vld [vmem:[%s385 + $0xc0] sm:$0xff]
      %v418 = vld [vmem:[%s385 + $0xc8] sm:$0xff]
      %v419 = vld [vmem:[%s385 + $0xd0] sm:$0xff]
      %v420 = vld [vmem:[%s385 + $0xd8] sm:$0xff]
      %v421 = vld [vmem:[%s385 + $0xe0] sm:$0xff]
      %v422 = vld [vmem:[%s385 + $0xe8] sm:$0xff]
      %v423 = vld [vmem:[%s385 + $0xf0] sm:$0xff]
      %v424 = vld [vmem:[%s385 + $0xf8] sm:$0xff]
      %v425 = vld [vmem:[%s385 + $0x100] sm:$0xff]
      %v426 = vld [vmem:[%s385 + $0x108] sm:$0xff]
      %v427 = vld [vmem:[%s385 + $0x110] sm:$0xff]
      %v428 = vld [vmem:[%s385 + $0x118] sm:$0xff]
      %v429 = vld [vmem:[%s385 + $0x120] sm:$0xff]
      %v430 = vld [vmem:[%s385 + $0x128] sm:$0xff]
      %v431 = vld [vmem:[%s385 + $0x130] sm:$0xff]
      %v432 = vld [vmem:[%s385 + $0x138] sm:$0xff]
      %v433 = vld [vmem:[%s385 + $0x140] sm:$0xff]
      %v434 = vld [vmem:[%s385 + $0x148] sm:$0xff]
      %v435 = vld [vmem:[%s385 + $0x150] sm:$0xff]
      %v436 = vld [vmem:[%s385 + $0x158] sm:$0xff]
      %v437 = vld [vmem:[%s385 + $0x160] sm:$0xff]
      %v438 = vld [vmem:[%s385 + $0x168] sm:$0xff]
      %v439 = vld [vmem:[%s385 + $0x170] sm:$0xff]
      %v440 = vld [vmem:[%s385 + $0x178] sm:$0xff]
      %v441 = vld [vmem:[%s385 + $0x180] sm:$0xff]
      %v442 = vld [vmem:[%s385 + $0x188] sm:$0xff]
      %v443 = vld [vmem:[%s385 + $0x190] sm:$0xff]
      %v444 = vld [vmem:[%s385 + $0x198] sm:$0xff]
      %v445 = vld [vmem:[%s385 + $0x1a0] sm:$0xff]
      %v446 = vld [vmem:[%s385 + $0x1a8] sm:$0xff]
      %v447 = vld [vmem:[%s385 + $0x1b0] sm:$0xff]
      %v448 = vld [vmem:[%s385 + $0x1b8] sm:$0xff]
      %v449 = vld [vmem:[%s385 + $0x1c0] sm:$0xff]
      %v450 = vld [vmem:[%s385 + $0x1c8] sm:$0xff]
      %v451 = vld [vmem:[%s385 + $0x1d0] sm:$0xff]
      %v452 = vld [vmem:[%s385 + $0x1d8] sm:$0xff]
      %v453 = vld [vmem:[%s385 + $0x1e0] sm:$0xff]
      %v454 = vld [vmem:[%s385 + $0x1e8] sm:$0xff]
      %v455 = vld [vmem:[%s385 + $0x1f0] sm:$0xff]
      %v456 = vld [vmem:[%s385 + $0x1f8] sm:$0xff]
      %v457 = vld [vmem:[%s385 + $0x200] sm:$0xff]
      %v458 = vld [vmem:[%s385 + $0x208] sm:$0xff]
      %v459 = vld [vmem:[%s385 + $0x210] sm:$0xff]
      %v460 = vld [vmem:[%s385 + $0x218] sm:$0xff]
      %v461 = vld [vmem:[%s385 + $0x220] sm:$0xff]
      %v462 = vld [vmem:[%s385 + $0x228] sm:$0xff]
      %v463 = vld [vmem:[%s385 + $0x230] sm:$0xff]
      %v464 = vld [vmem:[%s385 + $0x238] sm:$0xff]
      %v465 = vld [vmem:[%s385 + $0x240] sm:$0xff]
      %v466 = vld [vmem:[%s385 + $0x248] sm:$0xff]
      %v467 = vld [vmem:[%s385 + $0x250] sm:$0xff]
      %v468 = vld [vmem:[%s385 + $0x258] sm:$0xff]
      %v469 = vld [vmem:[%s385 + $0x260] sm:$0xff]
      %v470 = vld [vmem:[%s385 + $0x268] sm:$0xff]
      %v471 = vld [vmem:[%s385 + $0x270] sm:$0xff]
      %v472 = vld [vmem:[%s385 + $0x278] sm:$0xff]
      %v473 = vld [vmem:[%s385 + $0x280] sm:$0xff]
      %v474 = vld [vmem:[%s385 + $0x288] sm:$0xff]
      %v475 = vld [vmem:[%s385 + $0x290] sm:$0xff]
      %v476 = vld [vmem:[%s385 + $0x298] sm:$0xff]
      %v477 = vld [vmem:[%s385 + $0x2a0] sm:$0xff]
      %v478 = vld [vmem:[%s385 + $0x2a8] sm:$0xff]
      %v479 = vld [vmem:[%s385 + $0x2b0] sm:$0xff]
      %v480 = vld [vmem:[%s385 + $0x2b8] sm:$0xff]
      %v481 = vld [vmem:[%s385 + $0x2c0] sm:$0xff]
      %v482 = vld [vmem:[%s385 + $0x2c8] sm:$0xff]
      %v483 = vld [vmem:[%s385 + $0x2d0] sm:$0xff]
      %v484 = vld [vmem:[%s385 + $0x2d8] sm:$0xff]
      %v485 = vld [vmem:[%s385 + $0x2e0] sm:$0xff]
      %v486 = vld [vmem:[%s385 + $0x2e8] sm:$0xff]
      %v487 = vld [vmem:[%s385 + $0x2f0] sm:$0xff]
      %v488 = vld [vmem:[%s385 + $0x2f8] sm:$0xff]
      %v489 = vld [vmem:[%s385 + $0x300] sm:$0xff]
      %v490 = vld [vmem:[%s385 + $0x308] sm:$0xff]
      %v491 = vld [vmem:[%s385 + $0x310] sm:$0xff]
      %v492 = vld [vmem:[%s385 + $0x318] sm:$0xff]
      %v493 = vld [vmem:[%s385 + $0x320] sm:$0xff]
      %v494 = vld [vmem:[%s385 + $0x328] sm:$0xff]
      %v495 = vld [vmem:[%s385 + $0x330] sm:$0xff]
      %v496 = vld [vmem:[%s385 + $0x338] sm:$0xff]
      %v497 = vld [vmem:[%s385 + $0x340] sm:$0xff]
      %v498 = vld [vmem:[%s385 + $0x348] sm:$0xff]
      %v499 = vld [vmem:[%s385 + $0x350] sm:$0xff]
      %v500 = vld [vmem:[%s385 + $0x358] sm:$0xff]
      %v501 = vld [vmem:[%s385 + $0x360] sm:$0xff]
      %v502 = vld [vmem:[%s385 + $0x368] sm:$0xff]
      %v503 = vld [vmem:[%s385 + $0x370] sm:$0xff]
      %v504 = vld [vmem:[%s385 + $0x378] sm:$0xff]
      %v505 = vld [vmem:[%s385 + $0x380] sm:$0xff]
      %v506 = vld [vmem:[%s385 + $0x388] sm:$0xff]
      %v507 = vld [vmem:[%s385 + $0x390] sm:$0xff]
      %v508 = vld [vmem:[%s385 + $0x398] sm:$0xff]
      %v509 = vld [vmem:[%s385 + $0x3a0] sm:$0xff]
      %v510 = vld [vmem:[%s385 + $0x3a8] sm:$0xff]
      %v511 = vld [vmem:[%s385 + $0x3b0] sm:$0xff]
      %v512 = vld [vmem:[%s385 + $0x3b8] sm:$0xff]
      %v513 = vld [vmem:[%s385 + $0x3c0] sm:$0xff]
      %v514 = vld [vmem:[%s385 + $0x3c8] sm:$0xff]
      %v515 = vld [vmem:[%s385 + $0x3d0] sm:$0xff]
      %v516 = vld [vmem:[%s385 + $0x3d8] sm:$0xff]
      %v517 = vld [vmem:[%s385 + $0x3e0] sm:$0xff]
      %v518 = vld [vmem:[%s385 + $0x3e8] sm:$0xff]
      %v519 = vld [vmem:[%s385 + $0x3f0] sm:$0xff]
      %v520 = vld [vmem:[%s385 + $0x3f8] sm:$0xff]
      %v521 = vld [vmem:[%s385 + $0x400] sm:$0xff]
      %v522 = vld [vmem:[%s385 + $0x408] sm:$0xff]
      %v523 = vld [vmem:[%s385 + $0x410] sm:$0xff]
      %v524 = vld [vmem:[%s385 + $0x418] sm:$0xff]
      %v525 = vld [vmem:[%s385 + $0x420] sm:$0xff]
      %v526 = vld [vmem:[%s385 + $0x428] sm:$0xff]
      %v527 = vld [vmem:[%s385 + $0x430] sm:$0xff]
      %v528 = vld [vmem:[%s385 + $0x438] sm:$0xff]
      %v529 = vld [vmem:[%s385 + $0x440] sm:$0xff]
      %v530 = vld [vmem:[%s385 + $0x448] sm:$0xff]
      %v531 = vld [vmem:[%s385 + $0x450] sm:$0xff]
      %v532 = vld [vmem:[%s385 + $0x458] sm:$0xff]
      %v533 = vld [vmem:[%s385 + $0x460] sm:$0xff]
      %v534 = vld [vmem:[%s385 + $0x468] sm:$0xff]
      %v535 = vld [vmem:[%s385 + $0x470] sm:$0xff]
      %v536 = vld [vmem:[%s385 + $0x478] sm:$0xff]
      %v537 = vld [vmem:[%s385 + $0x480] sm:$0xff]
      %v538 = vld [vmem:[%s385 + $0x488] sm:$0xff]
      %v539 = vld [vmem:[%s385 + $0x490] sm:$0xff]
      %v540 = vld [vmem:[%s385 + $0x498] sm:$0xff]
      %v541 = vld [vmem:[%s385 + $0x4a0] sm:$0xff]
      %v542 = vld [vmem:[%s385 + $0x4a8] sm:$0xff]
      %v543 = vld [vmem:[%s385 + $0x4b0] sm:$0xff]
      %v544 = vld [vmem:[%s385 + $0x4b8] sm:$0xff]
      %v545 = vld [vmem:[%s385 + $0x4c0] sm:$0xff]
      %v546 = vld [vmem:[%s385 + $0x4c8] sm:$0xff]
      %v547 = vld [vmem:[%s385 + $0x4d0] sm:$0xff]
      %v548 = vld [vmem:[%s385 + $0x4d8] sm:$0xff]
      %v549 = vld [vmem:[%s385 + $0x4e0] sm:$0xff]
      %v550 = vld [vmem:[%s385 + $0x4e8] sm:$0xff]
      %v551 = vld [vmem:[%s385 + $0x4f0] sm:$0xff]
      %v552 = vld [vmem:[%s385 + $0x4f8] sm:$0xff]
      %v553 = vld [vmem:[%s385 + $0x500] sm:$0xff]
      %v554 = vld [vmem:[%s385 + $0x508] sm:$0xff]
      %v555 = vld [vmem:[%s385 + $0x510] sm:$0xff]
      %v556 = vld [vmem:[%s385 + $0x518] sm:$0xff]
      %v557 = vld [vmem:[%s385 + $0x520] sm:$0xff]
      %v558 = vld [vmem:[%s385 + $0x528] sm:$0xff]
      %v559 = vld [vmem:[%s385 + $0x530] sm:$0xff]
      %v560 = vld [vmem:[%s385 + $0x538] sm:$0xff]
      %v561 = vld [vmem:[%s385 + $0x540] sm:$0xff]
      %v562 = vld [vmem:[%s385 + $0x548] sm:$0xff]
      %v563 = vld [vmem:[%s385 + $0x550] sm:$0xff]
      %v564 = vld [vmem:[%s385 + $0x558] sm:$0xff]
      %v565 = vld [vmem:[%s385 + $0x560] sm:$0xff]
      %v566 = vld [vmem:[%s385 + $0x568] sm:$0xff]
      %v567 = vld [vmem:[%s385 + $0x570] sm:$0xff]
      %v568 = vld [vmem:[%s385 + $0x578] sm:$0xff]
      %v569 = vld [vmem:[%s385 + $0x580] sm:$0xff]
      %v570 = vld [vmem:[%s385 + $0x588] sm:$0xff]
      %v571 = vld [vmem:[%s385 + $0x590] sm:$0xff]
      %v572 = vld [vmem:[%s385 + $0x598] sm:$0xff]
      %v573 = vld [vmem:[%s385 + $0x5a0] sm:$0xff]
      %v574 = vld [vmem:[%s385 + $0x5a8] sm:$0xff]
      %v575 = vld [vmem:[%s385 + $0x5b0] sm:$0xff]
      %v576 = vld [vmem:[%s385 + $0x5b8] sm:$0xff]
      %v577 = vld [vmem:[%s385 + $0x5c0] sm:$0xff]
      %v578 = vld [vmem:[%s385 + $0x5c8] sm:$0xff]
      %v579 = vld [vmem:[%s385 + $0x5d0] sm:$0xff]
      %v580 = vld [vmem:[%s385 + $0x5d8] sm:$0xff]
      %v581 = vld [vmem:[%s385 + $0x5e0] sm:$0xff]
      %v582 = vld [vmem:[%s385 + $0x5e8] sm:$0xff]
      %v583 = vld [vmem:[%s385 + $0x5f0] sm:$0xff]
      %v584 = vld [vmem:[%s385 + $0x5f8] sm:$0xff]
      %v585 = vld [vmem:[%s385 + $0x600] sm:$0xff]
      %v586 = vld [vmem:[%s385 + $0x608] sm:$0xff]
      %v587 = vld [vmem:[%s385 + $0x610] sm:$0xff]
      %v588 = vld [vmem:[%s385 + $0x618] sm:$0xff]
      %v589 = vld [vmem:[%s385 + $0x620] sm:$0xff]
      %v590 = vld [vmem:[%s385 + $0x628] sm:$0xff]
      %v591 = vld [vmem:[%s385 + $0x630] sm:$0xff]
      %v592 = vld [vmem:[%s385 + $0x638] sm:$0xff]
      %v593 = vld [vmem:[%s385 + $0x640] sm:$0xff]
      %v594 = vld [vmem:[%s385 + $0x648] sm:$0xff]
      %v595 = vld [vmem:[%s385 + $0x650] sm:$0xff]
      %v596 = vld [vmem:[%s385 + $0x658] sm:$0xff]
      %v597 = vld [vmem:[%s385 + $0x660] sm:$0xff]
      %v598 = vld [vmem:[%s385 + $0x668] sm:$0xff]
      %v599 = vld [vmem:[%s385 + $0x670] sm:$0xff]
      %v600 = vld [vmem:[%s385 + $0x678] sm:$0xff]
      %v601 = vld [vmem:[%s385 + $0x680] sm:$0xff]
      %v602 = vld [vmem:[%s385 + $0x688] sm:$0xff]
      %v603 = vld [vmem:[%s385 + $0x690] sm:$0xff]
      %v604 = vld [vmem:[%s385 + $0x698] sm:$0xff]
      %v605 = vld [vmem:[%s385 + $0x6a0] sm:$0xff]
      %v606 = vld [vmem:[%s385 + $0x6a8] sm:$0xff]
      %v607 = vld [vmem:[%s385 + $0x6b0] sm:$0xff]
      %v608 = vld [vmem:[%s385 + $0x6b8] sm:$0xff]
      %v609 = vld [vmem:[%s385 + $0x6c0] sm:$0xff]
      %v610 = vld [vmem:[%s385 + $0x6c8] sm:$0xff]
      %v611 = vld [vmem:[%s385 + $0x6d0] sm:$0xff]
      %v612 = vld [vmem:[%s385 + $0x6d8] sm:$0xff]
      %v613 = vld [vmem:[%s385 + $0x6e0] sm:$0xff]
      %v614 = vld [vmem:[%s385 + $0x6e8] sm:$0xff]
      %v615 = vld [vmem:[%s385 + $0x6f0] sm:$0xff]
      %v616 = vld [vmem:[%s385 + $0x6f8] sm:$0xff]
      %v617 = vld [vmem:[%s385 + $0x700] sm:$0xff]
      %v618 = vld [vmem:[%s385 + $0x708] sm:$0xff]
      %v619 = vld [vmem:[%s385 + $0x710] sm:$0xff]
      %v620 = vld [vmem:[%s385 + $0x718] sm:$0xff]
      %v621 = vld [vmem:[%s385 + $0x720] sm:$0xff]
      %v622 = vld [vmem:[%s385 + $0x728] sm:$0xff]
      %v623 = vld [vmem:[%s385 + $0x730] sm:$0xff]
      %v624 = vld [vmem:[%s385 + $0x738] sm:$0xff]
      %v625 = vld [vmem:[%s385 + $0x740] sm:$0xff]
      %v626 = vld [vmem:[%s385 + $0x748] sm:$0xff]
      %v627 = vld [vmem:[%s385 + $0x750] sm:$0xff]
      %v628 = vld [vmem:[%s385 + $0x758] sm:$0xff]
      %v629 = vld [vmem:[%s385 + $0x760] sm:$0xff]
      %v630 = vld [vmem:[%s385 + $0x768] sm:$0xff]
      %v631 = vld [vmem:[%s385 + $0x770] sm:$0xff]
      %v632 = vld [vmem:[%s385 + $0x778] sm:$0xff]
      %v633 = vld [vmem:[%s385 + $0x780] sm:$0xff]
      %v634 = vld [vmem:[%s385 + $0x788] sm:$0xff]
      %v635 = vld [vmem:[%s385 + $0x790] sm:$0xff]
      %v636 = vld [vmem:[%s385 + $0x798] sm:$0xff]
      %v637 = vld [vmem:[%s385 + $0x7a0] sm:$0xff]
      %v638 = vld [vmem:[%s385 + $0x7a8] sm:$0xff]
      %v639 = vld [vmem:[%s385 + $0x7b0] sm:$0xff]
      %v640 = vld [vmem:[%s385 + $0x7b8] sm:$0xff]
      %v641 = vld [vmem:[%s385 + $0x7c0] sm:$0xff]
      %v642 = vld [vmem:[%s385 + $0x7c8] sm:$0xff]
      %v643 = vld [vmem:[%s385 + $0x7d0] sm:$0xff]
      %v644 = vld [vmem:[%s385 + $0x7d8] sm:$0xff]
      %v645 = vld [vmem:[%s385 + $0x7e0] sm:$0xff]
      %v646 = vld [vmem:[%s385 + $0x7e8] sm:$0xff]
      %v647 = vld [vmem:[%s385 + $0x7f0] sm:$0xff]
      %v648 = vld [vmem:[%s385 + $0x7f8] sm:$0xff]
      %v649 = vld [vmem:[%s385 + $0x800] sm:$0xff]
      %v650 = vld [vmem:[%s385 + $0x808] sm:$0xff]
      %v651 = vld [vmem:[%s385 + $0x810] sm:$0xff]
      %v652 = vld [vmem:[%s385 + $0x818] sm:$0xff]
      %v653 = vld [vmem:[%s385 + $0x820] sm:$0xff]
      %v654 = vld [vmem:[%s385 + $0x828] sm:$0xff]
      %v655 = vld [vmem:[%s385 + $0x830] sm:$0xff]
      %v656 = vld [vmem:[%s385 + $0x838] sm:$0xff]
      %v657 = vld [vmem:[%s385 + $0x840] sm:$0xff]
      %v658 = vld [vmem:[%s385 + $0x848] sm:$0xff]
      %v659 = vld [vmem:[%s385 + $0x850] sm:$0xff]
      %v660 = vld [vmem:[%s385 + $0x858] sm:$0xff]
      %v661 = vld [vmem:[%s385 + $0x860] sm:$0xff]
      %v662 = vld [vmem:[%s385 + $0x868] sm:$0xff]
      %v663 = vld [vmem:[%s385 + $0x870] sm:$0xff]
      %v664 = vld [vmem:[%s385 + $0x878] sm:$0xff]
      %v665 = vld [vmem:[%s385 + $0x880] sm:$0xff]
      %v666 = vld [vmem:[%s385 + $0x888] sm:$0xff]
      %v667 = vld [vmem:[%s385 + $0x890] sm:$0xff]
      %v668 = vld [vmem:[%s385 + $0x898] sm:$0xff]
      %v669 = vld [vmem:[%s385 + $0x8a0] sm:$0xff]
      %v670 = vld [vmem:[%s385 + $0x8a8] sm:$0xff]
      %v671 = vld [vmem:[%s385 + $0x8b0] sm:$0xff]
      %v672 = vld [vmem:[%s385 + $0x8b8] sm:$0xff]
      %v673 = vld [vmem:[%s385 + $0x8c0] sm:$0xff]
      %v674 = vld [vmem:[%s385 + $0x8c8] sm:$0xff]
      %v675 = vld [vmem:[%s385 + $0x8d0] sm:$0xff]
      %v676 = vld [vmem:[%s385 + $0x8d8] sm:$0xff]
      %v677 = vld [vmem:[%s385 + $0x8e0] sm:$0xff]
      %v678 = vld [vmem:[%s385 + $0x8e8] sm:$0xff]
      %v679 = vld [vmem:[%s385 + $0x8f0] sm:$0xff]
      %v680 = vld [vmem:[%s385 + $0x8f8] sm:$0xff]
      %v681 = vld [vmem:[%s385 + $0x900] sm:$0xff]
      %v682 = vld [vmem:[%s385 + $0x908] sm:$0xff]
      %v683 = vld [vmem:[%s385 + $0x910] sm:$0xff]
      %v684 = vld [vmem:[%s385 + $0x918] sm:$0xff]
      %v685 = vld [vmem:[%s385 + $0x920] sm:$0xff]
      %v686 = vld [vmem:[%s385 + $0x928] sm:$0xff]
      %v687 = vld [vmem:[%s385 + $0x930] sm:$0xff]
      %v688 = vld [vmem:[%s385 + $0x938] sm:$0xff]
      %v689 = vld [vmem:[%s385 + $0x940] sm:$0xff]
      %v690 = vld [vmem:[%s385 + $0x948] sm:$0xff]
      %v691 = vld [vmem:[%s385 + $0x950] sm:$0xff]
      %v692 = vld [vmem:[%s385 + $0x958] sm:$0xff]
      %v693 = vld [vmem:[%s385 + $0x960] sm:$0xff]
      %v694 = vld [vmem:[%s385 + $0x968] sm:$0xff]
      %v695 = vld [vmem:[%s385 + $0x970] sm:$0xff]
      %v696 = vld [vmem:[%s385 + $0x978] sm:$0xff]
      %v697 = vld [vmem:[%s385 + $0x980] sm:$0xff]
      %v698 = vld [vmem:[%s385 + $0x988] sm:$0xff]
      %v699 = vld [vmem:[%s385 + $0x990] sm:$0xff]
      %v700 = vld [vmem:[%s385 + $0x998] sm:$0xff]
      %v701 = vld [vmem:[%s385 + $0x9a0] sm:$0xff]
      %v702 = vld [vmem:[%s385 + $0x9a8] sm:$0xff]
      %v703 = vld [vmem:[%s385 + $0x9b0] sm:$0xff]
      %v704 = vld [vmem:[%s385 + $0x9b8] sm:$0xff]
      %v705 = vld [vmem:[%s385 + $0x9c0] sm:$0xff]
      %v706 = vld [vmem:[%s385 + $0x9c8] sm:$0xff]
      %v707 = vld [vmem:[%s385 + $0x9d0] sm:$0xff]
      %v708 = vld [vmem:[%s385 + $0x9d8] sm:$0xff]
      %v709 = vld [vmem:[%s385 + $0x9e0] sm:$0xff]
      %v710 = vld [vmem:[%s385 + $0x9e8] sm:$0xff]
      %v711 = vld [vmem:[%s385 + $0x9f0] sm:$0xff]
      %v712 = vld [vmem:[%s385 + $0x9f8] sm:$0xff]
      %v713 = vld [vmem:[%s385 + $0xa00] sm:$0xff]
      %v714 = vld [vmem:[%s385 + $0xa08] sm:$0xff]
      %v715 = vld [vmem:[%s385 + $0xa10] sm:$0xff]
      %v716 = vld [vmem:[%s385 + $0xa18] sm:$0xff]
      %v717 = vld [vmem:[%s385 + $0xa20] sm:$0xff]
      %v718 = vld [vmem:[%s385 + $0xa28] sm:$0xff]
      %v719 = vld [vmem:[%s385 + $0xa30] sm:$0xff]
      %v720 = vld [vmem:[%s385 + $0xa38] sm:$0xff]
      %v721 = vld [vmem:[%s385 + $0xa40] sm:$0xff]
      %v722 = vld [vmem:[%s385 + $0xa48] sm:$0xff]
      %v723 = vld [vmem:[%s385 + $0xa50] sm:$0xff]
      %v724 = vld [vmem:[%s385 + $0xa58] sm:$0xff]
      %v725 = vld [vmem:[%s385 + $0xa60] sm:$0xff]
      %v726 = vld [vmem:[%s385 + $0xa68] sm:$0xff]
      %v727 = vld [vmem:[%s385 + $0xa70] sm:$0xff]
      %v728 = vld [vmem:[%s385 + $0xa78] sm:$0xff]
      %v729 = vld [vmem:[%s385 + $0xa80] sm:$0xff]
      %v730 = vld [vmem:[%s385 + $0xa88] sm:$0xff]
      %v731 = vld [vmem:[%s385 + $0xa90] sm:$0xff]
      %v732 = vld [vmem:[%s385 + $0xa98] sm:$0xff]
      %v733 = vld [vmem:[%s385 + $0xaa0] sm:$0xff]
      %v734 = vld [vmem:[%s385 + $0xaa8] sm:$0xff]
      %v735 = vld [vmem:[%s385 + $0xab0] sm:$0xff]
      %v736 = vld [vmem:[%s385 + $0xab8] sm:$0xff]
      %v737 = vld [vmem:[%s385 + $0xac0] sm:$0xff]
      %v738 = vld [vmem:[%s385 + $0xac8] sm:$0xff]
      %v739 = vld [vmem:[%s385 + $0xad0] sm:$0xff]
      %v740 = vld [vmem:[%s385 + $0xad8] sm:$0xff]
      %v741 = vld [vmem:[%s385 + $0xae0] sm:$0xff]
      %v742 = vld [vmem:[%s385 + $0xae8] sm:$0xff]
      %v743 = vld [vmem:[%s385 + $0xaf0] sm:$0xff]
      %v744 = vld [vmem:[%s385 + $0xaf8] sm:$0xff]
      %v745 = vld [vmem:[%s385 + $0xb00] sm:$0xff]
      %v746 = vld [vmem:[%s385 + $0xb08] sm:$0xff]
      %v747 = vld [vmem:[%s385 + $0xb10] sm:$0xff]
      %v748 = vld [vmem:[%s385 + $0xb18] sm:$0xff]
      %v749 = vld [vmem:[%s385 + $0xb20] sm:$0xff]
      %v750 = vld [vmem:[%s385 + $0xb28] sm:$0xff]
      %v751 = vld [vmem:[%s385 + $0xb30] sm:$0xff]
      %v752 = vld [vmem:[%s385 + $0xb38] sm:$0xff]
      %v753 = vld [vmem:[%s385 + $0xb40] sm:$0xff]
      %v754 = vld [vmem:[%s385 + $0xb48] sm:$0xff]
      %v755 = vld [vmem:[%s385 + $0xb50] sm:$0xff]
      %v756 = vld [vmem:[%s385 + $0xb58] sm:$0xff]
      %v757 = vld [vmem:[%s385 + $0xb60] sm:$0xff]
      %v758 = vld [vmem:[%s385 + $0xb68] sm:$0xff]
      %v759 = vld [vmem:[%s385 + $0xb70] sm:$0xff]
      %v760 = vld [vmem:[%s385 + $0xb78] sm:$0xff]
      %v761 = vld [vmem:[%s385 + $0xb80] sm:$0xff]
      %v762 = vld [vmem:[%s385 + $0xb88] sm:$0xff]
      %v763 = vld [vmem:[%s385 + $0xb90] sm:$0xff]
      %v764 = vld [vmem:[%s385 + $0xb98] sm:$0xff]
      %v765 = vld [vmem:[%s385 + $0xba0] sm:$0xff]
      %v766 = vld [vmem:[%s385 + $0xba8] sm:$0xff]
      %v767 = vld [vmem:[%s385 + $0xbb0] sm:$0xff]
      %v768 = vld [vmem:[%s385 + $0xbb8] sm:$0xff]
      %v769 = vld [vmem:[%s385 + $0xbc0] sm:$0xff]
      %v770 = vld [vmem:[%s385 + $0xbc8] sm:$0xff]
      %v771 = vld [vmem:[%s385 + $0xbd0] sm:$0xff]
      %v772 = vld [vmem:[%s385 + $0xbd8] sm:$0xff]
      %v773 = vld [vmem:[%s385 + $0xbe0] sm:$0xff]
      %v774 = vld [vmem:[%s385 + $0xbe8] sm:$0xff]
      %v775 = vld [vmem:[%s385 + $0xbf0] sm:$0xff]
      %v776 = vld [vmem:[%s385 + $0xbf8] sm:$0xff]
      %v777 = vld [vmem:[%s385 + $0xc00] sm:$0xff]
      %v778 = vld [vmem:[%s385 + $0xc08] sm:$0xff]
      %v779 = vld [vmem:[%s385 + $0xc10] sm:$0xff]
      %v780 = vld [vmem:[%s385 + $0xc18] sm:$0xff]
      %v781 = vld [vmem:[%s385 + $0xc20] sm:$0xff]
      %v782 = vld [vmem:[%s385 + $0xc28] sm:$0xff]
      %v783 = vld [vmem:[%s385 + $0xc30] sm:$0xff]
      %v784 = vld [vmem:[%s385 + $0xc38] sm:$0xff]
      %v785 = vld [vmem:[%s385 + $0xc40] sm:$0xff]
      %v786 = vld [vmem:[%s385 + $0xc48] sm:$0xff]
      %v787 = vld [vmem:[%s385 + $0xc50] sm:$0xff]
      %v788 = vld [vmem:[%s385 + $0xc58] sm:$0xff]
      %v789 = vld [vmem:[%s385 + $0xc60] sm:$0xff]
      %v790 = vld [vmem:[%s385 + $0xc68] sm:$0xff]
      %v791 = vld [vmem:[%s385 + $0xc70] sm:$0xff]
      %v792 = vld [vmem:[%s385 + $0xc78] sm:$0xff]
      %v793 = vld [vmem:[%s385 + $0xc80] sm:$0xff]
      %v794 = vld [vmem:[%s385 + $0xc88] sm:$0xff]
      %v795 = vld [vmem:[%s385 + $0xc90] sm:$0xff]
      %v796 = vld [vmem:[%s385 + $0xc98] sm:$0xff]
      %v797 = vld [vmem:[%s385 + $0xca0] sm:$0xff]
      %v798 = vld [vmem:[%s385 + $0xca8] sm:$0xff]
      %v799 = vld [vmem:[%s385 + $0xcb0] sm:$0xff]
      %v800 = vld [vmem:[%s385 + $0xcb8] sm:$0xff]
      %v801 = vld [vmem:[%s385 + $0xcc0] sm:$0xff]
      %v802 = vld [vmem:[%s385 + $0xcc8] sm:$0xff]
      %v803 = vld [vmem:[%s385 + $0xcd0] sm:$0xff]
      %v804 = vld [vmem:[%s385 + $0xcd8] sm:$0xff]
      %v805 = vld [vmem:[%s385 + $0xce0] sm:$0xff]
      %v806 = vld [vmem:[%s385 + $0xce8] sm:$0xff]
      %v807 = vld [vmem:[%s385 + $0xcf0] sm:$0xff]
      %v808 = vld [vmem:[%s385 + $0xcf8] sm:$0xff]
      %v809 = vld [vmem:[%s385 + $0xd00] sm:$0xff]
      %v810 = vld [vmem:[%s385 + $0xd08] sm:$0xff]
      %v811 = vld [vmem:[%s385 + $0xd10] sm:$0xff]
      %v812 = vld [vmem:[%s385 + $0xd18] sm:$0xff]
      %v813 = vld [vmem:[%s385 + $0xd20] sm:$0xff]
      %v814 = vld [vmem:[%s385 + $0xd28] sm:$0xff]
      %v815 = vld [vmem:[%s385 + $0xd30] sm:$0xff]
      %v816 = vld [vmem:[%s385 + $0xd38] sm:$0xff]
      %v817 = vld [vmem:[%s385 + $0xd40] sm:$0xff]
      %v818 = vld [vmem:[%s385 + $0xd48] sm:$0xff]
      %v819 = vld [vmem:[%s385 + $0xd50] sm:$0xff]
      %v820 = vld [vmem:[%s385 + $0xd58] sm:$0xff]
      %v821 = vld [vmem:[%s385 + $0xd60] sm:$0xff]
      %v822 = vld [vmem:[%s385 + $0xd68] sm:$0xff]
      %v823 = vld [vmem:[%s385 + $0xd70] sm:$0xff]
      %v824 = vld [vmem:[%s385 + $0xd78] sm:$0xff]
      %v825 = vld [vmem:[%s385 + $0xd80] sm:$0xff]
      %v826 = vld [vmem:[%s385 + $0xd88] sm:$0xff]
      %v827 = vld [vmem:[%s385 + $0xd90] sm:$0xff]
      %v828 = vld [vmem:[%s385 + $0xd98] sm:$0xff]
      %v829 = vld [vmem:[%s385 + $0xda0] sm:$0xff]
      %v830 = vld [vmem:[%s385 + $0xda8] sm:$0xff]
      %v831 = vld [vmem:[%s385 + $0xdb0] sm:$0xff]
      %v832 = vld [vmem:[%s385 + $0xdb8] sm:$0xff]
      %v833 = vld [vmem:[%s385 + $0xdc0] sm:$0xff]
      %v834 = vld [vmem:[%s385 + $0xdc8] sm:$0xff]
      %v835 = vld [vmem:[%s385 + $0xdd0] sm:$0xff]
      %v836 = vld [vmem:[%s385 + $0xdd8] sm:$0xff]
      %v837 = vld [vmem:[%s385 + $0xde0] sm:$0xff]
      %v838 = vld [vmem:[%s385 + $0xde8] sm:$0xff]
      %v839 = vld [vmem:[%s385 + $0xdf0] sm:$0xff]
      %v840 = vld [vmem:[%s385 + $0xdf8] sm:$0xff]
      %v841 = vld [vmem:[%s1] sm:$0xff]
      %v842 = vld [vmem:[%s1 + $0x8] sm:$0xff]
      %v843 = vld [vmem:[%s1 + $0x10] sm:$0xff]
      %v844 = vld [vmem:[%s1 + $0x18] sm:$0xff]
      %v845 = vld [vmem:[%s1 + $0x20] sm:$0xff]
      %v846 = vld [vmem:[%s1 + $0x28] sm:$0xff]
      %v847 = vld [vmem:[%s1 + $0x30] sm:$0xff]
      %v848 = vld [vmem:[%s1 + $0x38] sm:$0xff]
      %v849 = vld [vmem:[%s1 + $0x40] sm:$0xff]
      %v850 = vld [vmem:[%s1 + $0x48] sm:$0xff]
      %v851 = vld [vmem:[%s1 + $0x50] sm:$0xff]
      %v852 = vld [vmem:[%s1 + $0x58] sm:$0xff]
      %v853 = vld [vmem:[%s1 + $0x60] sm:$0xff]
      %v854 = vld [vmem:[%s1 + $0x68] sm:$0xff]
      %v855 = vld [vmem:[%s1 + $0x70] sm:$0xff]
      %v856 = vld [vmem:[%s1 + $0x78] sm:$0xff]
      %v857 = vld [vmem:[%s1 + $0x80] sm:$0xff]
      %v858 = vld [vmem:[%s1 + $0x88] sm:$0xff]
      %v859 = vld [vmem:[%s1 + $0x90] sm:$0xff]
      %v860 = vld [vmem:[%s1 + $0x98] sm:$0xff]
      %v861 = vld [vmem:[%s1 + $0xa0] sm:$0xff]
      %v862 = vld [vmem:[%s1 + $0xa8] sm:$0xff]
      %v863 = vld [vmem:[%s1 + $0xb0] sm:$0xff]
      %v864 = vld [vmem:[%s1 + $0xb8] sm:$0xff]
      %v865 = vld [vmem:[%s1 + $0xc0] sm:$0xff]
      %v866 = vld [vmem:[%s1 + $0xc8] sm:$0xff]
      %v867 = vld [vmem:[%s1 + $0xd0] sm:$0xff]
      %v868 = vld [vmem:[%s1 + $0xd8] sm:$0xff]
      %v869 = vld [vmem:[%s1 + $0xe0] sm:$0xff]
      %v870 = vld [vmem:[%s1 + $0xe8] sm:$0xff]
      %v871 = vld [vmem:[%s1 + $0xf0] sm:$0xff]
      %v872 = vld [vmem:[%s1 + $0xf8] sm:$0xff]
      %v873 = vld [vmem:[%s1 + $0x100] sm:$0xff]
      %v874 = vld [vmem:[%s1 + $0x108] sm:$0xff]
      %v875 = vld [vmem:[%s1 + $0x110] sm:$0xff]
      %v876 = vld [vmem:[%s1 + $0x118] sm:$0xff]
      %v877 = vld [vmem:[%s1 + $0x120] sm:$0xff]
      %v878 = vld [vmem:[%s1 + $0x128] sm:$0xff]
      %v879 = vld [vmem:[%s1 + $0x130] sm:$0xff]
      %v880 = vld [vmem:[%s1 + $0x138] sm:$0xff]
      %v881 = vld [vmem:[%s1 + $0x140] sm:$0xff]
      %v882 = vld [vmem:[%s1 + $0x148] sm:$0xff]
      %v883 = vld [vmem:[%s1 + $0x150] sm:$0xff]
      %v884 = vld [vmem:[%s1 + $0x158] sm:$0xff]
      %v885 = vld [vmem:[%s1 + $0x160] sm:$0xff]
      %v886 = vld [vmem:[%s1 + $0x168] sm:$0xff]
      %v887 = vld [vmem:[%s1 + $0x170] sm:$0xff]
      %v888 = vld [vmem:[%s1 + $0x178] sm:$0xff]
      %v889 = vld [vmem:[%s1 + $0x180] sm:$0xff]
      %v890 = vld [vmem:[%s1 + $0x188] sm:$0xff]
      %v891 = vld [vmem:[%s1 + $0x190] sm:$0xff]
      %v892 = vld [vmem:[%s1 + $0x198] sm:$0xff]
      %v893 = vld [vmem:[%s1 + $0x1a0] sm:$0xff]
      %v894 = vld [vmem:[%s1 + $0x1a8] sm:$0xff]
      %v895 = vld [vmem:[%s1 + $0x1b0] sm:$0xff]
      %v896 = vld [vmem:[%s1 + $0x1b8] sm:$0xff]
      %v897 = vld [vmem:[%s1 + $0x1c0] sm:$0xff]
      %v898 = vld [vmem:[%s1 + $0x1c8] sm:$0xff]
      %v899 = vld [vmem:[%s1 + $0x1d0] sm:$0xff]
      %v900 = vld [vmem:[%s1 + $0x1d8] sm:$0xff]
      %v901 = vld [vmem:[%s1 + $0x1e0] sm:$0xff]
      %v902 = vld [vmem:[%s1 + $0x1e8] sm:$0xff]
      %v903 = vld [vmem:[%s1 + $0x1f0] sm:$0xff]
      %v904 = vld [vmem:[%s1 + $0x1f8] sm:$0xff]
      %v905 = vld [vmem:[%s1 + $0x200] sm:$0xff]
      %v906 = vld [vmem:[%s1 + $0x208] sm:$0xff]
      %v907 = vld [vmem:[%s1 + $0x210] sm:$0xff]
      %v908 = vld [vmem:[%s1 + $0x218] sm:$0xff]
      %v909 = vld [vmem:[%s1 + $0x220] sm:$0xff]
      %v910 = vld [vmem:[%s1 + $0x228] sm:$0xff]
      %v911 = vld [vmem:[%s1 + $0x230] sm:$0xff]
      %v912 = vld [vmem:[%s1 + $0x238] sm:$0xff]
      %v913 = vld [vmem:[%s1 + $0x240] sm:$0xff]
      %v914 = vld [vmem:[%s1 + $0x248] sm:$0xff]
      %v915 = vld [vmem:[%s1 + $0x250] sm:$0xff]
      %v916 = vld [vmem:[%s1 + $0x258] sm:$0xff]
      %v917 = vld [vmem:[%s1 + $0x260] sm:$0xff]
      %v918 = vld [vmem:[%s1 + $0x268] sm:$0xff]
      %v919 = vld [vmem:[%s1 + $0x270] sm:$0xff]
      %v920 = vld [vmem:[%s1 + $0x278] sm:$0xff]
      %v921 = vld [vmem:[%s1 + $0x280] sm:$0xff]
      %v922 = vld [vmem:[%s1 + $0x288] sm:$0xff]
      %v923 = vld [vmem:[%s1 + $0x290] sm:$0xff]
      %v924 = vld [vmem:[%s1 + $0x298] sm:$0xff]
      %v925 = vld [vmem:[%s1 + $0x2a0] sm:$0xff]
      %v926 = vld [vmem:[%s1 + $0x2a8] sm:$0xff]
      %v927 = vld [vmem:[%s1 + $0x2b0] sm:$0xff]
      %v928 = vld [vmem:[%s1 + $0x2b8] sm:$0xff]
      %v929 = vld [vmem:[%s1 + $0x2c0] sm:$0xff]
      %v930 = vld [vmem:[%s1 + $0x2c8] sm:$0xff]
      %v931 = vld [vmem:[%s1 + $0x2d0] sm:$0xff]
      %v932 = vld [vmem:[%s1 + $0x2d8] sm:$0xff]
      %v933 = vld [vmem:[%s1 + $0x2e0] sm:$0xff]
      %v934 = vld [vmem:[%s1 + $0x2e8] sm:$0xff]
      %v935 = vld [vmem:[%s1 + $0x2f0] sm:$0xff]
      %v936 = vld [vmem:[%s1 + $0x2f8] sm:$0xff]
      %v937 = vld [vmem:[%s1 + $0x300] sm:$0xff]
      %v938 = vld [vmem:[%s1 + $0x308] sm:$0xff]
      %v939 = vld [vmem:[%s1 + $0x310] sm:$0xff]
      %v940 = vld [vmem:[%s1 + $0x318] sm:$0xff]
      %v941 = vld [vmem:[%s1 + $0x320] sm:$0xff]
      %v942 = vld [vmem:[%s1 + $0x328] sm:$0xff]
      %v943 = vld [vmem:[%s1 + $0x330] sm:$0xff]
      %v944 = vld [vmem:[%s1 + $0x338] sm:$0xff]
      %v945 = vld [vmem:[%s1 + $0x340] sm:$0xff]
      %v946 = vld [vmem:[%s1 + $0x348] sm:$0xff]
      %v947 = vld [vmem:[%s1 + $0x350] sm:$0xff]
      %v948 = vld [vmem:[%s1 + $0x358] sm:$0xff]
      %v949 = vld [vmem:[%s1 + $0x360] sm:$0xff]
      %v950 = vld [vmem:[%s1 + $0x368] sm:$0xff]
      %v951 = vld [vmem:[%s1 + $0x370] sm:$0xff]
      %v952 = vld [vmem:[%s1 + $0x378] sm:$0xff]
      %v953 = vld [vmem:[%s1 + $0x380] sm:$0xff]
      %v954 = vld [vmem:[%s1 + $0x388] sm:$0xff]
      %v955 = vld [vmem:[%s1 + $0x390] sm:$0xff]
      %v956 = vld [vmem:[%s1 + $0x398] sm:$0xff]
      %v957 = vld [vmem:[%s1 + $0x3a0] sm:$0xff]
      %v958 = vld [vmem:[%s1 + $0x3a8] sm:$0xff]
      %v959 = vld [vmem:[%s1 + $0x3b0] sm:$0xff]
      %v960 = vld [vmem:[%s1 + $0x3b8] sm:$0xff]
      %v961 = vld [vmem:[%s1 + $0x3c0] sm:$0xff]
      %v962 = vld [vmem:[%s1 + $0x3c8] sm:$0xff]
      %v963 = vld [vmem:[%s1 + $0x3d0] sm:$0xff]
      %v964 = vld [vmem:[%s1 + $0x3d8] sm:$0xff]
      %v965 = vld [vmem:[%s1 + $0x3e0] sm:$0xff]
      %v966 = vld [vmem:[%s1 + $0x3e8] sm:$0xff]
      %v967 = vld [vmem:[%s1 + $0x3f0] sm:$0xff]
      %v968 = vld [vmem:[%s1 + $0x3f8] sm:$0xff]
      %969 = vmatprep.subr.mxu0 %v842
      %970 = vmatpush1.msra.mxu0 %v841
      %971 = vmatprep.subr.mxu0 %v844
      %972 = vmatpush1.msra.mxu0 %v843
      %973 = vmatprep.subr.mxu0 %v846
      %974 = vmatpush1.msra.mxu0 %v845
      %975 = vmatprep.subr.mxu0 %v848
      %976 = vmatpush1.msra.mxu0 %v847
      %977 = vmatprep.subr.mxu0 %v850
      %978 = vmatpush1.msra.mxu0 %v849
      %979 = vmatprep.subr.mxu0 %v852
      %980 = vmatpush1.msra.mxu0 %v851
      %981 = vmatprep.subr.mxu0 %v854
      %982 = vmatpush1.msra.mxu0 %v853
      %983 = vmatprep.subr.mxu0 %v856
      %984 = vmatpush1.msra.mxu0 %v855
      %985 = vmatprep.subr.mxu0 %v858
      %986 = vmatpush1.msra.mxu0 %v857
      %987 = vmatprep.subr.mxu0 %v860
      %988 = vmatpush1.msra.mxu0 %v859
      %989 = vmatprep.subr.mxu0 %v862
      %990 = vmatpush1.msra.mxu0 %v861
      %991 = vmatprep.subr.mxu0 %v864
      %992 = vmatpush1.msra.mxu0 %v863
      %993 = vmatprep.subr.mxu0 %v866
      %994 = vmatpush1.msra.mxu0 %v865
      %995 = vmatprep.subr.mxu0 %v868
      %996 = vmatpush1.msra.mxu0 %v867
      %997 = vmatprep.subr.mxu0 %v870
      %998 = vmatpush1.msra.mxu0 %v869
      %999 = vmatprep.subr.mxu0 %v872
      %1000 = vmatpush1.msra.mxu0 %v871
      %1001 = vmatprep.subr.mxu0 %v874
      %1002 = vmatpush1.msra.mxu0 %v873
      %1003 = vmatprep.subr.mxu0 %v876
      %1004 = vmatpush1.msra.mxu0 %v875
      %1005 = vmatprep.subr.mxu0 %v878
      %1006 = vmatpush1.msra.mxu0 %v877
      %1007 = vmatprep.subr.mxu0 %v880
      %1008 = vmatpush1.msra.mxu0 %v879
      %1009 = vmatprep.subr.mxu0 %v882
      %1010 = vmatpush1.msra.mxu0 %v881
      %1011 = vmatprep.subr.mxu0 %v884
      %1012 = vmatpush1.msra.mxu0 %v883
      %1013 = vmatprep.subr.mxu0 %v886
      %1014 = vmatpush1.msra.mxu0 %v885
      %1015 = vmatprep.subr.mxu0 %v888
      %1016 = vmatpush1.msra.mxu0 %v887
      %1017 = vmatprep.subr.mxu0 %v890
      %1018 = vmatpush1.msra.mxu0 %v889
      %1019 = vmatprep.subr.mxu0 %v892
      %1020 = vmatpush1.msra.mxu0 %v891
      %1021 = vmatprep.subr.mxu0 %v894
      %1022 = vmatpush1.msra.mxu0 %v893
      %1023 = vmatprep.subr.mxu0 %v896
      %1024 = vmatpush1.msra.mxu0 %v895
      %1025 = vmatprep.subr.mxu0 %v898
      %1026 = vmatpush1.msra.mxu0 %v897
      %1027 = vmatprep.subr.mxu0 %v900
      %1028 = vmatpush1.msra.mxu0 %v899
      %1029 = vmatprep.subr.mxu0 %v902
      %1030 = vmatpush1.msra.mxu0 %v901
      %1031 = vmatprep.subr.mxu0 %v904
      %1032 = vmatpush1.msra.mxu0 %v903
      %1033 = vmatprep.mubr.f32.mxu0 %v394
      %1034 = vmatmul.mubr.f32.gmra.mrb[0].mxu0 %v393
      %v1035 = vpop.f32.mrb[0].mxu0
      %v1036 = vadd.f32 0.0, %v1035
      %v1037 = vpop.f32.mrb[0].mxu0
      %v1038 = vadd.f32 0.0, %v1037
      %1039 = vmatprep.mubr.f32.mxu0 %v398
      %1040 = vmatmul.mubr.f32.gmra.mrb[0].mxu0 %v397
      %v1041 = vpop.f32.mrb[0].mxu0
      %v1042 = vadd.f32 0.0, %v1041
      %v1043 = vpop.f32.mrb[0].mxu0
      %v1044 = vadd.f32 0.0, %v1043
      %1045 = vmatprep.mubr.f32.mxu0 %v402
      %1046 = vmatmul.mubr.f32.gmra.mrb[0].mxu0 %v401
      %v1047 = vpop.f32.mrb[0].mxu0
      %v1048 = vadd.f32 0.0, %v1047
      %v1049 = vpop.f32.mrb[0].mxu0
      %v1050 = vadd.f32 0.0, %v1049
      %1051 = vmatprep.mubr.f32.mxu0 %v406
      %1052 = vmatmul.mubr.f32.gmra.mrb[0].mxu0 %v405
      %v1053 = vpop.f32.mrb[0].mxu0
      %v1054 = vadd.f32 0.0, %v1053
      %v1055 = vpop.f32.mrb[0].mxu0
      %v1056 = vadd.f32 0.0, %v1055
      %1057 = vmatprep.mubr.f32.mxu0 %v410
      %1058 = vmatmul.mubr.f32.gmra.mrb[0].mxu0 %v409
      %v1059 = vpop.f32.mrb[0].mxu0
      %v1060 = vadd.f32 0.0, %v1059
      %v1061 = vpop.f32.mrb[0].mxu0
      %v1062 = vadd.f32 0.0, %v1061
      %1063 = vmatprep.mubr.f32.mxu0 %v414
      %1064 = vmatmul.mubr.f32.gmra.mrb[0].mxu0 %v413
      %v1065 = vpop.f32.mrb[0].mxu0
      %v1066 = vadd.f32 0.0, %v1065
      %v1067 = vpop.f32.mrb[0].mxu0
      %v1068 = vadd.f32 0.0, %v1067
      %1069 = vmatprep.mubr.f32.mxu0 %v418
      %1070 = vmatmul.mubr.f32.gmra.mrb[0].mxu0 %v417
      %v1071 = vpop.f32.mrb[0].mxu0
      %v1072 = vadd.f32 0.0, %v1071
      %v1073 = vpop.f32.mrb[0].mxu0
      %v1074 = vadd.f32 0.0, %v1073
      %1075 = vmatprep.mubr.f32.mxu0 %v422
      %1076 = vmatmul.mubr.f32.gmra.mrb[0].mxu0 %v421
      %v1077 = vpop.f32.mrb[0].mxu0
      %v1078 = vadd.f32 0.0, %v1077
      %v1079 = vpop.f32.mrb[0].mxu0
      %v1080 = vadd.f32 0.0, %v1079
      %1081 = vmatprep.mubr.f32.mxu0 %v426
      %1082 = vmatmul.mubr.f32.gmra.mrb[0].mxu0 %v425
      %v1083 = vpop.f32.mrb[0].mxu0
      %v1084 = vadd.f32 0.0, %v1083
      %v1085 = vpop.f32.mrb[0].mxu0
      %v1086 = vadd.f32 0.0, %v1085
      %1087 = vmatprep.mubr.f32.mxu0 %v430
      %1088 = vmatmul.mubr.f32.gmra.mrb[0].mxu0 %v429
      %v1089 = vpop.f32.mrb[0].mxu0
      %v1090 = vadd.f32 0.0, %v1089
      %v1091 = vpop.f32.mrb[0].mxu0
      %v1092 = vadd.f32 0.0, %v1091
      %1093 = vmatprep.mubr.f32.mxu0 %v434
      %1094 = vmatmul.mubr.f32.gmra.mrb[0].mxu0 %v433
      %v1095 = vpop.f32.mrb[0].mxu0
      %v1096 = vadd.f32 0.0, %v1095
      %v1097 = vpop.f32.mrb[0].mxu0
      %v1098 = vadd.f32 0.0, %v1097
      %1099 = vmatprep.mubr.f32.mxu0 %v438
      %1100 = vmatmul.mubr.f32.gmra.mrb[0].mxu0 %v437
      %v1101 = vpop.f32.mrb[0].mxu0
      %v1102 = vadd.f32 0.0, %v1101
      %v1103 = vpop.f32.mrb[0].mxu0
      %v1104 = vadd.f32 0.0, %v1103
      %1105 = vmatprep.mubr.f32.mxu0 %v442
      %1106 = vmatmul.mubr.f32.gmra.mrb[0].mxu0 %v441
      %v1107 = vpop.f32.mrb[0].mxu0
      %v1108 = vadd.f32 0.0, %v1107
      %v1109 = vpop.f32.mrb[0].mxu0
      %v1110 = vadd.f32 0.0, %v1109
      %1111 = vmatprep.mubr.f32.mxu0 %v446
      %1112 = vmatmul.mubr.f32.gmra.mrb[0].mxu0 %v445
      %v1113 = vpop.f32.mrb[0].mxu0
      %v1114 = vadd.f32 0.0, %v1113
      %v1115 = vpop.f32.mrb[0].mxu0
      %v1116 = vadd.f32 0.0, %v1115
      %1117 = vmatprep.mubr.f32.mxu0 %v450
      %1118 = vmatmul.mubr.f32.gmra.mrb[0].mxu0 %v449
      %v1119 = vpop.f32.mrb[0].mxu0
      %v1120 = vadd.f32 0.0, %v1119
      %v1121 = vpop.f32.mrb[0].mxu0
      %v1122 = vadd.f32 0.0, %v1121
      %1123 = vmatprep.mubr.f32.mxu0 %v454
      %1124 = vmatmul.mubr.f32.gmra.mrb[0].mxu0 %v453
      %v1125 = vpop.f32.mrb[0].mxu0
      %v1126 = vadd.f32 0.0, %v1125
      %v1127 = vpop.f32.mrb[0].mxu0
      %v1128 = vadd.f32 0.0, %v1127
      %1129 = vmatprep.mubr.f32.mxu0 %v458
      %1130 = vmatmul.mubr.f32.gmra.mrb[0].mxu0 %v457
      %v1131 = vpop.f32.mrb[0].mxu0
      %v1132 = vadd.f32 0.0, %v1131
      %v1133 = vpop.f32.mrb[0].mxu0
      %v1134 = vadd.f32 0.0, %v1133
      %1135 = vmatprep.mubr.f32.mxu0 %v462
      %1136 = vmatmul.mubr.f32.gmra.mrb[0].mxu0 %v461
      %v1137 = vpop.f32.mrb[0].mxu0
      %v1138 = vadd.f32 0.0, %v1137
      %v1139 = vpop.f32.mrb[0].mxu0
      %v1140 = vadd.f32 0.0, %v1139
      %1141 = vmatprep.mubr.f32.mxu0 %v466
      %1142 = vmatmul.mubr.f32.gmra.mrb[0].mxu0 %v465
      %v1143 = vpop.f32.mrb[0].mxu0
      %v1144 = vadd.f32 0.0, %v1143
      %v1145 = vpop.f32.mrb[0].mxu0
      %v1146 = vadd.f32 0.0, %v1145
      %1147 = vmatprep.mubr.f32.mxu0 %v470
      %1148 = vmatmul.mubr.f32.gmra.mrb[0].mxu0 %v469
      %v1149 = vpop.f32.mrb[0].mxu0
      %v1150 = vadd.f32 0.0, %v1149
      %v1151 = vpop.f32.mrb[0].mxu0
      %v1152 = vadd.f32 0.0, %v1151
      %1153 = vmatprep.mubr.f32.mxu0 %v474
      %1154 = vmatmul.mubr.f32.gmra.mrb[0].mxu0 %v473
      %v1155 = vpop.f32.mrb[0].mxu0
      %v1156 = vadd.f32 0.0, %v1155
      %v1157 = vpop.f32.mrb[0].mxu0
      %v1158 = vadd.f32 0.0, %v1157
      %1159 = vmatprep.mubr.f32.mxu0 %v478
      %1160 = vmatmul.mubr.f32.gmra.mrb[0].mxu0 %v477
      %v1161 = vpop.f32.mrb[0].mxu0
      %v1162 = vadd.f32 0.0, %v1161
      %v1163 = vpop.f32.mrb[0].mxu0
      %v1164 = vadd.f32 0.0, %v1163
      %1165 = vmatprep.mubr.f32.mxu0 %v482
      %1166 = vmatmul.mubr.f32.gmra.mrb[0].mxu0 %v481
      %v1167 = vpop.f32.mrb[0].mxu0
      %v1168 = vadd.f32 0.0, %v1167
      %v1169 = vpop.f32.mrb[0].mxu0
      %v1170 = vadd.f32 0.0, %v1169
      %1171 = vmatprep.mubr.f32.mxu0 %v486
      %1172 = vmatmul.mubr.f32.gmra.mrb[0].mxu0 %v485
      %v1173 = vpop.f32.mrb[0].mxu0
      %v1174 = vadd.f32 0.0, %v1173
      %v1175 = vpop.f32.mrb[0].mxu0
      %v1176 = vadd.f32 0.0, %v1175
      %1177 = vmatprep.mubr.f32.mxu0 %v490
      %1178 = vmatmul.mubr.f32.gmra.mrb[0].mxu0 %v489
      %v1179 = vpop.f32.mrb[0].mxu0
      %v1180 = vadd.f32 0.0, %v1179
      %v1181 = vpop.f32.mrb[0].mxu0
      %v1182 = vadd.f32 0.0, %v1181
      %1183 = vmatprep.mubr.f32.mxu0 %v494
      %1184 = vmatmul.mubr.f32.gmra.mrb[0].mxu0 %v493
      %v1185 = vpop.f32.mrb[0].mxu0
      %v1186 = vadd.f32 0.0, %v1185
      %v1187 = vpop.f32.mrb[0].mxu0
      %v1188 = vadd.f32 0.0, %v1187
      %1189 = vmatprep.mubr.f32.mxu0 %v498
      %1190 = vmatmul.mubr.f32.gmra.mrb[0].mxu0 %v497
      %v1191 = vpop.f32.mrb[0].mxu0
      %v1192 = vadd.f32 0.0, %v1191
      %v1193 = vpop.f32.mrb[0].mxu0
      %v1194 = vadd.f32 0.0, %v1193
      %1195 = vmatprep.mubr.f32.mxu0 %v502
      %1196 = vmatmul.mubr.f32.gmra.mrb[0].mxu0 %v501
      %v1197 = vpop.f32.mrb[0].mxu0
      %v1198 = vadd.f32 0.0, %v1197
      %v1199 = vpop.f32.mrb[0].mxu0
      %v1200 = vadd.f32 0.0, %v1199
      %1201 = vmatprep.mubr.f32.mxu0 %v506
      %1202 = vmatmul.mubr.f32.gmra.mrb[0].mxu0 %v505
      %v1203 = vpop.f32.mrb[0].mxu0
      %v1204 = vadd.f32 0.0, %v1203
      %v1205 = vpop.f32.mrb[0].mxu0
      %v1206 = vadd.f32 0.0, %v1205
      %1207 = vmatprep.mubr.f32.mxu0 %v510
      %1208 = vmatmul.mubr.f32.gmra.mrb[0].mxu0 %v509
      %v1209 = vpop.f32.mrb[0].mxu0
      %v1210 = vadd.f32 0.0, %v1209
      %v1211 = vpop.f32.mrb[0].mxu0
      %v1212 = vadd.f32 0.0, %v1211
      %1213 = vmatprep.mubr.f32.mxu0 %v514
      %1214 = vmatmul.mubr.f32.gmra.mrb[0].mxu0 %v513
      %v1215 = vpop.f32.mrb[0].mxu0
      %v1216 = vadd.f32 0.0, %v1215
      %v1217 = vpop.f32.mrb[0].mxu0
      %v1218 = vadd.f32 0.0, %v1217
      %1219 = vmatprep.mubr.f32.mxu0 %v518
      %1220 = vmatmul.mubr.f32.gmra.mrb[0].mxu0 %v517
      %v1221 = vpop.f32.mrb[0].mxu0
      %v1222 = vadd.f32 0.0, %v1221
      %v1223 = vpop.f32.mrb[0].mxu0
      %v1224 = vadd.f32 0.0, %v1223
      %1225 = vmatprep.mubr.f32.mxu0 %v522
      %1226 = vmatmul.mubr.f32.gmra.mrb[0].mxu0 %v521
      %v1227 = vpop.f32.mrb[0].mxu0
      %v1228 = vadd.f32 0.0, %v1227
      %v1229 = vpop.f32.mrb[0].mxu0
      %v1230 = vadd.f32 0.0, %v1229
      %1231 = vmatprep.mubr.f32.mxu0 %v526
      %1232 = vmatmul.mubr.f32.gmra.mrb[0].mxu0 %v525
      %v1233 = vpop.f32.mrb[0].mxu0
      %v1234 = vadd.f32 0.0, %v1233
      %v1235 = vpop.f32.mrb[0].mxu0
      %v1236 = vadd.f32 0.0, %v1235
      %1237 = vmatprep.mubr.f32.mxu0 %v530
      %1238 = vmatmul.mubr.f32.gmra.mrb[0].mxu0 %v529
      %v1239 = vpop.f32.mrb[0].mxu0
      %v1240 = vadd.f32 0.0, %v1239
      %v1241 = vpop.f32.mrb[0].mxu0
      %v1242 = vadd.f32 0.0, %v1241
      %1243 = vmatprep.mubr.f32.mxu0 %v534
      %1244 = vmatmul.mubr.f32.gmra.mrb[0].mxu0 %v533
      %v1245 = vpop.f32.mrb[0].mxu0
      %v1246 = vadd.f32 0.0, %v1245
      %v1247 = vpop.f32.mrb[0].mxu0
      %v1248 = vadd.f32 0.0, %v1247
      %1249 = vmatprep.mubr.f32.mxu0 %v538
      %1250 = vmatmul.mubr.f32.gmra.mrb[0].mxu0 %v537
      %v1251 = vpop.f32.mrb[0].mxu0
      %v1252 = vadd.f32 0.0, %v1251
      %v1253 = vpop.f32.mrb[0].mxu0
      %v1254 = vadd.f32 0.0, %v1253
      %1255 = vmatprep.mubr.f32.mxu0 %v542
      %1256 = vmatmul.mubr.f32.gmra.mrb[0].mxu0 %v541
      %v1257 = vpop.f32.mrb[0].mxu0
      %v1258 = vadd.f32 0.0, %v1257
      %v1259 = vpop.f32.mrb[0].mxu0
      %v1260 = vadd.f32 0.0, %v1259
      %1261 = vmatprep.mubr.f32.mxu0 %v546
      %1262 = vmatmul.mubr.f32.gmra.mrb[0].mxu0 %v545
      %v1263 = vpop.f32.mrb[0].mxu0
      %v1264 = vadd.f32 0.0, %v1263
      %v1265 = vpop.f32.mrb[0].mxu0
      %v1266 = vadd.f32 0.0, %v1265
      %1267 = vmatprep.mubr.f32.mxu0 %v550
      %1268 = vmatmul.mubr.f32.gmra.mrb[0].mxu0 %v549
      %v1269 = vpop.f32.mrb[0].mxu0
      %v1270 = vadd.f32 0.0, %v1269
      %v1271 = vpop.f32.mrb[0].mxu0
      %v1272 = vadd.f32 0.0, %v1271
      %1273 = vmatprep.mubr.f32.mxu0 %v554
      %1274 = vmatmul.mubr.f32.gmra.mrb[0].mxu0 %v553
      %v1275 = vpop.f32.mrb[0].mxu0
      %v1276 = vadd.f32 0.0, %v1275
      %v1277 = vpop.f32.mrb[0].mxu0
      %v1278 = vadd.f32 0.0, %v1277
      %1279 = vmatprep.mubr.f32.mxu0 %v558
      %1280 = vmatmul.mubr.f32.gmra.mrb[0].mxu0 %v557
      %v1281 = vpop.f32.mrb[0].mxu0
      %v1282 = vadd.f32 0.0, %v1281
      %v1283 = vpop.f32.mrb[0].mxu0
      %v1284 = vadd.f32 0.0, %v1283
      %1285 = vmatprep.mubr.f32.mxu0 %v562
      %1286 = vmatmul.mubr.f32.gmra.mrb[0].mxu0 %v561
      %v1287 = vpop.f32.mrb[0].mxu0
      %v1288 = vadd.f32 0.0, %v1287
      %v1289 = vpop.f32.mrb[0].mxu0
      %v1290 = vadd.f32 0.0, %v1289
      %1291 = vmatprep.mubr.f32.mxu0 %v566
      %1292 = vmatmul.mubr.f32.gmra.mrb[0].mxu0 %v565
      %v1293 = vpop.f32.mrb[0].mxu0
      %v1294 = vadd.f32 0.0, %v1293
      %v1295 = vpop.f32.mrb[0].mxu0
      %v1296 = vadd.f32 0.0, %v1295
      %1297 = vmatprep.mubr.f32.mxu0 %v570
      %1298 = vmatmul.mubr.f32.gmra.mrb[0].mxu0 %v569
      %v1299 = vpop.f32.mrb[0].mxu0
      %v1300 = vadd.f32 0.0, %v1299
      %v1301 = vpop.f32.mrb[0].mxu0
      %v1302 = vadd.f32 0.0, %v1301
      %1303 = vmatprep.mubr.f32.mxu0 %v574
      %1304 = vmatmul.mubr.f32.gmra.mrb[0].mxu0 %v573
      %v1305 = vpop.f32.mrb[0].mxu0
      %v1306 = vadd.f32 0.0, %v1305
      %v1307 = vpop.f32.mrb[0].mxu0
      %v1308 = vadd.f32 0.0, %v1307
      %1309 = vmatprep.mubr.f32.mxu0 %v578
      %1310 = vmatmul.mubr.f32.gmra.mrb[0].mxu0 %v577
      %v1311 = vpop.f32.mrb[0].mxu0
      %v1312 = vadd.f32 0.0, %v1311
      %v1313 = vpop.f32.mrb[0].mxu0
      %v1314 = vadd.f32 0.0, %v1313
      %1315 = vmatprep.mubr.f32.mxu0 %v582
      %1316 = vmatmul.mubr.f32.gmra.mrb[0].mxu0 %v581
      %v1317 = vpop.f32.mrb[0].mxu0
      %v1318 = vadd.f32 0.0, %v1317
      %v1319 = vpop.f32.mrb[0].mxu0
      %v1320 = vadd.f32 0.0, %v1319
      %1321 = vmatprep.mubr.f32.mxu0 %v586
      %1322 = vmatmul.mubr.f32.gmra.mrb[0].mxu0 %v585
      %v1323 = vpop.f32.mrb[0].mxu0
      %v1324 = vadd.f32 0.0, %v1323
      %v1325 = vpop.f32.mrb[0].mxu0
      %v1326 = vadd.f32 0.0, %v1325
      %1327 = vmatprep.mubr.f32.mxu0 %v590
      %1328 = vmatmul.mubr.f32.gmra.mrb[0].mxu0 %v589
      %v1329 = vpop.f32.mrb[0].mxu0
      %v1330 = vadd.f32 0.0, %v1329
      %v1331 = vpop.f32.mrb[0].mxu0
      %v1332 = vadd.f32 0.0, %v1331
      %1333 = vmatprep.mubr.f32.mxu0 %v594
      %1334 = vmatmul.mubr.f32.gmra.mrb[0].mxu0 %v593
      %v1335 = vpop.f32.mrb[0].mxu0
      %v1336 = vadd.f32 0.0, %v1335
      %v1337 = vpop.f32.mrb[0].mxu0
      %v1338 = vadd.f32 0.0, %v1337
      %1339 = vmatprep.mubr.f32.mxu0 %v598
      %1340 = vmatmul.mubr.f32.gmra.mrb[0].mxu0 %v597
      %v1341 = vpop.f32.mrb[0].mxu0
      %v1342 = vadd.f32 0.0, %v1341
      %v1343 = vpop.f32.mrb[0].mxu0
      %v1344 = vadd.f32 0.0, %v1343
      %1345 = vmatprep.mubr.f32.mxu0 %v602
      %1346 = vmatmul.mubr.f32.gmra.mrb[0].mxu0 %v601
      %v1347 = vpop.f32.mrb[0].mxu0
      %v1348 = vadd.f32 0.0, %v1347
      %v1349 = vpop.f32.mrb[0].mxu0
      %v1350 = vadd.f32 0.0, %v1349
      %1351 = vmatprep.mubr.f32.mxu0 %v606
      %1352 = vmatmul.mubr.f32.gmra.mrb[0].mxu0 %v605
      %v1353 = vpop.f32.mrb[0].mxu0
      %v1354 = vadd.f32 0.0, %v1353
      %v1355 = vpop.f32.mrb[0].mxu0
      %v1356 = vadd.f32 0.0, %v1355
      %1357 = vmatprep.mubr.f32.mxu0 %v610
      %1358 = vmatmul.mubr.f32.gmra.mrb[0].mxu0 %v609
      %v1359 = vpop.f32.mrb[0].mxu0
      %v1360 = vadd.f32 0.0, %v1359
      %v1361 = vpop.f32.mrb[0].mxu0
      %v1362 = vadd.f32 0.0, %v1361
      %1363 = vmatprep.mubr.f32.mxu0 %v614
      %1364 = vmatmul.mubr.f32.gmra.mrb[0].mxu0 %v613
      %v1365 = vpop.f32.mrb[0].mxu0
      %v1366 = vadd.f32 0.0, %v1365
      %v1367 = vpop.f32.mrb[0].mxu0
      %v1368 = vadd.f32 0.0, %v1367
      %1369 = vmatprep.mubr.f32.mxu0 %v618
      %1370 = vmatmul.mubr.f32.gmra.mrb[0].mxu0 %v617
      %v1371 = vpop.f32.mrb[0].mxu0
      %v1372 = vadd.f32 0.0, %v1371
      %v1373 = vpop.f32.mrb[0].mxu0
      %v1374 = vadd.f32 0.0, %v1373
      %1375 = vmatprep.mubr.f32.mxu0 %v622
      %1376 = vmatmul.mubr.f32.gmra.mrb[0].mxu0 %v621
      %v1377 = vpop.f32.mrb[0].mxu0
      %v1378 = vadd.f32 0.0, %v1377
      %v1379 = vpop.f32.mrb[0].mxu0
      %v1380 = vadd.f32 0.0, %v1379
      %1381 = vmatprep.mubr.f32.mxu0 %v626
      %1382 = vmatmul.mubr.f32.gmra.mrb[0].mxu0 %v625
      %v1383 = vpop.f32.mrb[0].mxu0
      %v1384 = vadd.f32 0.0, %v1383
      %v1385 = vpop.f32.mrb[0].mxu0
      %v1386 = vadd.f32 0.0, %v1385
      %1387 = vmatprep.mubr.f32.mxu0 %v630
      %1388 = vmatmul.mubr.f32.gmra.mrb[0].mxu0 %v629
      %v1389 = vpop.f32.mrb[0].mxu0
      %v1390 = vadd.f32 0.0, %v1389
      %v1391 = vpop.f32.mrb[0].mxu0
      %v1392 = vadd.f32 0.0, %v1391
      %1393 = vmatprep.mubr.f32.mxu0 %v634
      %1394 = vmatmul.mubr.f32.gmra.mrb[0].mxu0 %v633
      %v1395 = vpop.f32.mrb[0].mxu0
      %v1396 = vadd.f32 0.0, %v1395
      %v1397 = vpop.f32.mrb[0].mxu0
      %v1398 = vadd.f32 0.0, %v1397
      %1399 = vmatprep.mubr.f32.mxu0 %v638
      %1400 = vmatmul.mubr.f32.gmra.mrb[0].mxu0 %v637
      %v1401 = vpop.f32.mrb[0].mxu0
      %v1402 = vadd.f32 0.0, %v1401
      %v1403 = vpop.f32.mrb[0].mxu0
      %v1404 = vadd.f32 0.0, %v1403
      %1405 = vmatprep.mubr.f32.mxu0 %v642
      %1406 = vmatmul.mubr.f32.gmra.mrb[0].mxu0 %v641
      %v1407 = vpop.f32.mrb[0].mxu0
      %v1408 = vadd.f32 0.0, %v1407
      %v1409 = vpop.f32.mrb[0].mxu0
      %v1410 = vadd.f32 0.0, %v1409
      %1411 = vmatprep.mubr.f32.mxu0 %v646
      %1412 = vmatmul.mubr.f32.gmra.mrb[0].mxu0 %v645
      %v1413 = vpop.f32.mrb[0].mxu0
      %v1414 = vadd.f32 0.0, %v1413
      %v1415 = vpop.f32.mrb[0].mxu0
      %v1416 = vadd.f32 0.0, %v1415
      %1417 = vmatprep.mubr.f32.mxu0 %v650
      %1418 = vmatmul.mubr.f32.gmra.mrb[0].mxu0 %v649
      %v1419 = vpop.f32.mrb[0].mxu0
      %v1420 = vadd.f32 0.0, %v1419
      %v1421 = vpop.f32.mrb[0].mxu0
      %v1422 = vadd.f32 0.0, %v1421
      %1423 = vmatprep.mubr.f32.mxu0 %v654
      %1424 = vmatmul.mubr.f32.gmra.mrb[0].mxu0 %v653
      %v1425 = vpop.f32.mrb[0].mxu0
      %v1426 = vadd.f32 0.0, %v1425
      %v1427 = vpop.f32.mrb[0].mxu0
      %v1428 = vadd.f32 0.0, %v1427
      %1429 = vmatprep.mubr.f32.mxu0 %v658
      %1430 = vmatmul.mubr.f32.gmra.mrb[0].mxu0 %v657
      %v1431 = vpop.f32.mrb[0].mxu0
      %v1432 = vadd.f32 0.0, %v1431
      %v1433 = vpop.f32.mrb[0].mxu0
      %v1434 = vadd.f32 0.0, %v1433
      %1435 = vmatprep.mubr.f32.mxu0 %v662
      %1436 = vmatmul.mubr.f32.gmra.mrb[0].mxu0 %v661
      %v1437 = vpop.f32.mrb[0].mxu0
      %v1438 = vadd.f32 0.0, %v1437
      %v1439 = vpop.f32.mrb[0].mxu0
      %v1440 = vadd.f32 0.0, %v1439
      %1441 = vmatprep.mubr.f32.mxu0 %v666
      %1442 = vmatmul.mubr.f32.gmra.mrb[0].mxu0 %v665
      %v1443 = vpop.f32.mrb[0].mxu0
      %v1444 = vadd.f32 0.0, %v1443
      %v1445 = vpop.f32.mrb[0].mxu0
      %v1446 = vadd.f32 0.0, %v1445
      %1447 = vmatprep.mubr.f32.mxu0 %v670
      %1448 = vmatmul.mubr.f32.gmra.mrb[0].mxu0 %v669
      %v1449 = vpop.f32.mrb[0].mxu0
      %v1450 = vadd.f32 0.0, %v1449
      %v1451 = vpop.f32.mrb[0].mxu0
      %v1452 = vadd.f32 0.0, %v1451
      %1453 = vmatprep.mubr.f32.mxu0 %v674
      %1454 = vmatmul.mubr.f32.gmra.mrb[0].mxu0 %v673
      %v1455 = vpop.f32.mrb[0].mxu0
      %v1456 = vadd.f32 0.0, %v1455
      %v1457 = vpop.f32.mrb[0].mxu0
      %v1458 = vadd.f32 0.0, %v1457
      %1459 = vmatprep.mubr.f32.mxu0 %v678
      %1460 = vmatmul.mubr.f32.gmra.mrb[0].mxu0 %v677
      %v1461 = vpop.f32.mrb[0].mxu0
      %v1462 = vadd.f32 0.0, %v1461
      %v1463 = vpop.f32.mrb[0].mxu0
      %v1464 = vadd.f32 0.0, %v1463
      %1465 = vmatprep.mubr.f32.mxu0 %v682
      %1466 = vmatmul.mubr.f32.gmra.mrb[0].mxu0 %v681
      %v1467 = vpop.f32.mrb[0].mxu0
      %v1468 = vadd.f32 0.0, %v1467
      %v1469 = vpop.f32.mrb[0].mxu0
      %v1470 = vadd.f32 0.0, %v1469
      %1471 = vmatprep.mubr.f32.mxu0 %v686
      %1472 = vmatmul.mubr.f32.gmra.mrb[0].mxu0 %v685
      %v1473 = vpop.f32.mrb[0].mxu0
      %v1474 = vadd.f32 0.0, %v1473
      %v1475 = vpop.f32.mrb[0].mxu0
      %v1476 = vadd.f32 0.0, %v1475
      %1477 = vmatprep.mubr.f32.mxu0 %v690
      %1478 = vmatmul.mubr.f32.gmra.mrb[0].mxu0 %v689
      %v1479 = vpop.f32.mrb[0].mxu0
      %v1480 = vadd.f32 0.0, %v1479
      %v1481 = vpop.f32.mrb[0].mxu0
      %v1482 = vadd.f32 0.0, %v1481
      %1483 = vmatprep.mubr.f32.mxu0 %v694
      %1484 = vmatmul.mubr.f32.gmra.mrb[0].mxu0 %v693
      %v1485 = vpop.f32.mrb[0].mxu0
      %v1486 = vadd.f32 0.0, %v1485
      %v1487 = vpop.f32.mrb[0].mxu0
      %v1488 = vadd.f32 0.0, %v1487
      %1489 = vmatprep.mubr.f32.mxu0 %v698
      %1490 = vmatmul.mubr.f32.gmra.mrb[0].mxu0 %v697
      %v1491 = vpop.f32.mrb[0].mxu0
      %v1492 = vadd.f32 0.0, %v1491
      %v1493 = vpop.f32.mrb[0].mxu0
      %v1494 = vadd.f32 0.0, %v1493
      %1495 = vmatprep.mubr.f32.mxu0 %v702
      %1496 = vmatmul.mubr.f32.gmra.mrb[0].mxu0 %v701
      %v1497 = vpop.f32.mrb[0].mxu0
      %v1498 = vadd.f32 0.0, %v1497
      %v1499 = vpop.f32.mrb[0].mxu0
      %v1500 = vadd.f32 0.0, %v1499
      %1501 = vmatprep.mubr.f32.mxu0 %v706
      %1502 = vmatmul.mubr.f32.gmra.mrb[0].mxu0 %v705
      %v1503 = vpop.f32.mrb[0].mxu0
      %v1504 = vadd.f32 0.0, %v1503
      %v1505 = vpop.f32.mrb[0].mxu0
      %v1506 = vadd.f32 0.0, %v1505
      %1507 = vmatprep.mubr.f32.mxu0 %v710
      %1508 = vmatmul.mubr.f32.gmra.mrb[0].mxu0 %v709
      %v1509 = vpop.f32.mrb[0].mxu0
      %v1510 = vadd.f32 0.0, %v1509
      %v1511 = vpop.f32.mrb[0].mxu0
      %v1512 = vadd.f32 0.0, %v1511
      %1513 = vmatprep.mubr.f32.mxu0 %v714
      %1514 = vmatmul.mubr.f32.gmra.mrb[0].mxu0 %v713
      %v1515 = vpop.f32.mrb[0].mxu0
      %v1516 = vadd.f32 0.0, %v1515
      %v1517 = vpop.f32.mrb[0].mxu0
      %v1518 = vadd.f32 0.0, %v1517
      %1519 = vmatprep.mubr.f32.mxu0 %v718
      %1520 = vmatmul.mubr.f32.gmra.mrb[0].mxu0 %v717
      %v1521 = vpop.f32.mrb[0].mxu0
      %v1522 = vadd.f32 0.0, %v1521
      %v1523 = vpop.f32.mrb[0].mxu0
      %v1524 = vadd.f32 0.0, %v1523
      %1525 = vmatprep.mubr.f32.mxu0 %v722
      %1526 = vmatmul.mubr.f32.gmra.mrb[0].mxu0 %v721
      %v1527 = vpop.f32.mrb[0].mxu0
      %v1528 = vadd.f32 0.0, %v1527
      %v1529 = vpop.f32.mrb[0].mxu0
      %v1530 = vadd.f32 0.0, %v1529
      %1531 = vmatprep.mubr.f32.mxu0 %v726
      %1532 = vmatmul.mubr.f32.gmra.mrb[0].mxu0 %v725
      %v1533 = vpop.f32.mrb[0].mxu0
      %v1534 = vadd.f32 0.0, %v1533
      %v1535 = vpop.f32.mrb[0].mxu0
      %v1536 = vadd.f32 0.0, %v1535
      %1537 = vmatprep.mubr.f32.mxu0 %v730
      %1538 = vmatmul.mubr.f32.gmra.mrb[0].mxu0 %v729
      %v1539 = vpop.f32.mrb[0].mxu0
      %v1540 = vadd.f32 0.0, %v1539
      %v1541 = vpop.f32.mrb[0].mxu0
      %v1542 = vadd.f32 0.0, %v1541
      %1543 = vmatprep.mubr.f32.mxu0 %v734
      %1544 = vmatmul.mubr.f32.gmra.mrb[0].mxu0 %v733
      %v1545 = vpop.f32.mrb[0].mxu0
      %v1546 = vadd.f32 0.0, %v1545
      %v1547 = vpop.f32.mrb[0].mxu0
      %v1548 = vadd.f32 0.0, %v1547
      %1549 = vmatprep.mubr.f32.mxu0 %v738
      %1550 = vmatmul.mubr.f32.gmra.mrb[0].mxu0 %v737
      %v1551 = vpop.f32.mrb[0].mxu0
      %v1552 = vadd.f32 0.0, %v1551
      %v1553 = vpop.f32.mrb[0].mxu0
      %v1554 = vadd.f32 0.0, %v1553
      %1555 = vmatprep.mubr.f32.mxu0 %v742
      %1556 = vmatmul.mubr.f32.gmra.mrb[0].mxu0 %v741
      %v1557 = vpop.f32.mrb[0].mxu0
      %v1558 = vadd.f32 0.0, %v1557
      %v1559 = vpop.f32.mrb[0].mxu0
      %v1560 = vadd.f32 0.0, %v1559
      %1561 = vmatprep.mubr.f32.mxu0 %v746
      %1562 = vmatmul.mubr.f32.gmra.mrb[0].mxu0 %v745
      %v1563 = vpop.f32.mrb[0].mxu0
      %v1564 = vadd.f32 0.0, %v1563
      %v1565 = vpop.f32.mrb[0].mxu0
      %v1566 = vadd.f32 0.0, %v1565
      %1567 = vmatprep.mubr.f32.mxu0 %v750
      %1568 = vmatmul.mubr.f32.gmra.mrb[0].mxu0 %v749
      %v1569 = vpop.f32.mrb[0].mxu0
      %v1570 = vadd.f32 0.0, %v1569
      %v1571 = vpop.f32.mrb[0].mxu0
      %v1572 = vadd.f32 0.0, %v1571
      %1573 = vmatprep.mubr.f32.mxu0 %v754
      %1574 = vmatmul.mubr.f32.gmra.mrb[0].mxu0 %v753
      %v1575 = vpop.f32.mrb[0].mxu0
      %v1576 = vadd.f32 0.0, %v1575
      %v1577 = vpop.f32.mrb[0].mxu0
      %v1578 = vadd.f32 0.0, %v1577
      %1579 = vmatprep.mubr.f32.mxu0 %v758
      %1580 = vmatmul.mubr.f32.gmra.mrb[0].mxu0 %v757
      %v1581 = vpop.f32.mrb[0].mxu0
      %v1582 = vadd.f32 0.0, %v1581
      %v1583 = vpop.f32.mrb[0].mxu0
      %v1584 = vadd.f32 0.0, %v1583
      %1585 = vmatprep.mubr.f32.mxu0 %v762
      %1586 = vmatmul.mubr.f32.gmra.mrb[0].mxu0 %v761
      %v1587 = vpop.f32.mrb[0].mxu0
      %v1588 = vadd.f32 0.0, %v1587
      %v1589 = vpop.f32.mrb[0].mxu0
      %v1590 = vadd.f32 0.0, %v1589
      %1591 = vmatprep.mubr.f32.mxu0 %v766
      %1592 = vmatmul.mubr.f32.gmra.mrb[0].mxu0 %v765
      %v1593 = vpop.f32.mrb[0].mxu0
      %v1594 = vadd.f32 0.0, %v1593
      %v1595 = vpop.f32.mrb[0].mxu0
      %v1596 = vadd.f32 0.0, %v1595
      %1597 = vmatprep.mubr.f32.mxu0 %v770
      %1598 = vmatmul.mubr.f32.gmra.mrb[0].mxu0 %v769
      %v1599 = vpop.f32.mrb[0].mxu0
      %v1600 = vadd.f32 0.0, %v1599
      %v1601 = vpop.f32.mrb[0].mxu0
      %v1602 = vadd.f32 0.0, %v1601
      %1603 = vmatprep.mubr.f32.mxu0 %v774
      %1604 = vmatmul.mubr.f32.gmra.mrb[0].mxu0 %v773
      %v1605 = vpop.f32.mrb[0].mxu0
      %v1606 = vadd.f32 0.0, %v1605
      %v1607 = vpop.f32.mrb[0].mxu0
      %v1608 = vadd.f32 0.0, %v1607
      %1609 = vmatprep.mubr.f32.mxu0 %v778
      %1610 = vmatmul.mubr.f32.gmra.mrb[0].mxu0 %v777
      %v1611 = vpop.f32.mrb[0].mxu0
      %v1612 = vadd.f32 0.0, %v1611
      %v1613 = vpop.f32.mrb[0].mxu0
      %v1614 = vadd.f32 0.0, %v1613
      %1615 = vmatprep.mubr.f32.mxu0 %v782
      %1616 = vmatmul.mubr.f32.gmra.mrb[0].mxu0 %v781
      %v1617 = vpop.f32.mrb[0].mxu0
      %v1618 = vadd.f32 0.0, %v1617
      %v1619 = vpop.f32.mrb[0].mxu0
      %v1620 = vadd.f32 0.0, %v1619
      %1621 = vmatprep.mubr.f32.mxu0 %v786
      %1622 = vmatmul.mubr.f32.gmra.mrb[0].mxu0 %v785
      %v1623 = vpop.f32.mrb[0].mxu0
      %v1624 = vadd.f32 0.0, %v1623
      %v1625 = vpop.f32.mrb[0].mxu0
      %v1626 = vadd.f32 0.0, %v1625
      %1627 = vmatprep.mubr.f32.mxu0 %v790
      %1628 = vmatmul.mubr.f32.gmra.mrb[0].mxu0 %v789
      %v1629 = vpop.f32.mrb[0].mxu0
      %v1630 = vadd.f32 0.0, %v1629
      %v1631 = vpop.f32.mrb[0].mxu0
      %v1632 = vadd.f32 0.0, %v1631
      %1633 = vmatprep.mubr.f32.mxu0 %v794
      %1634 = vmatmul.mubr.f32.gmra.mrb[0].mxu0 %v793
      %v1635 = vpop.f32.mrb[0].mxu0
      %v1636 = vadd.f32 0.0, %v1635
      %v1637 = vpop.f32.mrb[0].mxu0
      %v1638 = vadd.f32 0.0, %v1637
      %1639 = vmatprep.mubr.f32.mxu0 %v798
      %1640 = vmatmul.mubr.f32.gmra.mrb[0].mxu0 %v797
      %v1641 = vpop.f32.mrb[0].mxu0
      %v1642 = vadd.f32 0.0, %v1641
      %v1643 = vpop.f32.mrb[0].mxu0
      %v1644 = vadd.f32 0.0, %v1643
      %1645 = vmatprep.mubr.f32.mxu0 %v802
      %1646 = vmatmul.mubr.f32.gmra.mrb[0].mxu0 %v801
      %v1647 = vpop.f32.mrb[0].mxu0
      %v1648 = vadd.f32 0.0, %v1647
      %v1649 = vpop.f32.mrb[0].mxu0
      %v1650 = vadd.f32 0.0, %v1649
      %1651 = vmatprep.mubr.f32.mxu0 %v806
      %1652 = vmatmul.mubr.f32.gmra.mrb[0].mxu0 %v805
      %v1653 = vpop.f32.mrb[0].mxu0
      %v1654 = vadd.f32 0.0, %v1653
      %v1655 = vpop.f32.mrb[0].mxu0
      %v1656 = vadd.f32 0.0, %v1655
      %1657 = vmatprep.mubr.f32.mxu0 %v810
      %1658 = vmatmul.mubr.f32.gmra.mrb[0].mxu0 %v809
      %v1659 = vpop.f32.mrb[0].mxu0
      %v1660 = vadd.f32 0.0, %v1659
      %v1661 = vpop.f32.mrb[0].mxu0
      %v1662 = vadd.f32 0.0, %v1661
      %1663 = vmatprep.mubr.f32.mxu0 %v814
      %1664 = vmatmul.mubr.f32.gmra.mrb[0].mxu0 %v813
      %v1665 = vpop.f32.mrb[0].mxu0
      %v1666 = vadd.f32 0.0, %v1665
      %v1667 = vpop.f32.mrb[0].mxu0
      %v1668 = vadd.f32 0.0, %v1667
      %1669 = vmatprep.mubr.f32.mxu0 %v818
      %1670 = vmatmul.mubr.f32.gmra.mrb[0].mxu0 %v817
      %v1671 = vpop.f32.mrb[0].mxu0
      %v1672 = vadd.f32 0.0, %v1671
      %v1673 = vpop.f32.mrb[0].mxu0
      %v1674 = vadd.f32 0.0, %v1673
      %1675 = vmatprep.mubr.f32.mxu0 %v822
      %1676 = vmatmul.mubr.f32.gmra.mrb[0].mxu0 %v821
      %v1677 = vpop.f32.mrb[0].mxu0
      %v1678 = vadd.f32 0.0, %v1677
      %v1679 = vpop.f32.mrb[0].mxu0
      %v1680 = vadd.f32 0.0, %v1679
      %1681 = vmatprep.mubr.f32.mxu0 %v826
      %1682 = vmatmul.mubr.f32.gmra.mrb[0].mxu0 %v825
      %v1683 = vpop.f32.mrb[0].mxu0
      %v1684 = vadd.f32 0.0, %v1683
      %v1685 = vpop.f32.mrb[0].mxu0
      %v1686 = vadd.f32 0.0, %v1685
      %1687 = vmatprep.mubr.f32.mxu0 %v830
      %1688 = vmatmul.mubr.f32.gmra.mrb[0].mxu0 %v829
      %v1689 = vpop.f32.mrb[0].mxu0
      %v1690 = vadd.f32 0.0, %v1689
      %v1691 = vpop.f32.mrb[0].mxu0
      %v1692 = vadd.f32 0.0, %v1691
      %1693 = vmatprep.mubr.f32.mxu0 %v834
      %1694 = vmatmul.mubr.f32.gmra.mrb[0].mxu0 %v833
      %v1695 = vpop.f32.mrb[0].mxu0
      %v1696 = vadd.f32 0.0, %v1695
      %v1697 = vpop.f32.mrb[0].mxu0
      %v1698 = vadd.f32 0.0, %v1697
      %1699 = vmatprep.mubr.f32.mxu0 %v838
      %1700 = vmatmul.mubr.f32.gmra.mrb[0].mxu0 %v837
      %v1701 = vpop.f32.mrb[0].mxu0
      %v1702 = vadd.f32 0.0, %v1701
      %v1703 = vpop.f32.mrb[0].mxu0
      %v1704 = vadd.f32 0.0, %v1703
      %1705 = vdwg.mxu0
      %1706 = vmatprep.subr.mxu0 %v906
      %1707 = vmatpush1.msra.mxu0 %v905
      %1708 = vmatprep.subr.mxu0 %v908
      %1709 = vmatpush1.msra.mxu0 %v907
      %1710 = vmatprep.subr.mxu0 %v910
      %1711 = vmatpush1.msra.mxu0 %v909
      %1712 = vmatprep.subr.mxu0 %v912
      %1713 = vmatpush1.msra.mxu0 %v911
      %1714 = vmatprep.subr.mxu0 %v914
      %1715 = vmatpush1.msra.mxu0 %v913
      %1716 = vmatprep.subr.mxu0 %v916
      %1717 = vmatpush1.msra.mxu0 %v915
      %1718 = vmatprep.subr.mxu0 %v918
      %1719 = vmatpush1.msra.mxu0 %v917
      %1720 = vmatprep.subr.mxu0 %v920
      %1721 = vmatpush1.msra.mxu0 %v919
      %1722 = vmatprep.subr.mxu0 %v922
      %1723 = vmatpush1.msra.mxu0 %v921
      %1724 = vmatprep.subr.mxu0 %v924
      %1725 = vmatpush1.msra.mxu0 %v923
      %1726 = vmatprep.subr.mxu0 %v926
      %1727 = vmatpush1.msra.mxu0 %v925
      %1728 = vmatprep.subr.mxu0 %v928
      %1729 = vmatpush1.msra.mxu0 %v927
      %1730 = vmatprep.subr.mxu0 %v930
      %1731 = vmatpush1.msra.mxu0 %v929
      %1732 = vmatprep.subr.mxu0 %v932
      %1733 = vmatpush1.msra.mxu0 %v931
      %1734 = vmatprep.subr.mxu0 %v934
      %1735 = vmatpush1.msra.mxu0 %v933
      %1736 = vmatprep.subr.mxu0 %v936
      %1737 = vmatpush1.msra.mxu0 %v935
      %1738 = vmatprep.subr.mxu0 %v938
      %1739 = vmatpush1.msra.mxu0 %v937
      %1740 = vmatprep.subr.mxu0 %v940
      %1741 = vmatpush1.msra.mxu0 %v939
      %1742 = vmatprep.subr.mxu0 %v942
      %1743 = vmatpush1.msra.mxu0 %v941
      %1744 = vmatprep.subr.mxu0 %v944
      %1745 = vmatpush1.msra.mxu0 %v943
      %1746 = vmatprep.subr.mxu0 %v946
      %1747 = vmatpush1.msra.mxu0 %v945
      %1748 = vmatprep.subr.mxu0 %v948
      %1749 = vmatpush1.msra.mxu0 %v947
      %1750 = vmatprep.subr.mxu0 %v950
      %1751 = vmatpush1.msra.mxu0 %v949
      %1752 = vmatprep.subr.mxu0 %v952
      %1753 = vmatpush1.msra.mxu0 %v951
      %1754 = vmatprep.subr.mxu0 %v954
      %1755 = vmatpush1.msra.mxu0 %v953
      %1756 = vmatprep.subr.mxu0 %v956
      %1757 = vmatpush1.msra.mxu0 %v955
      %1758 = vmatprep.subr.mxu0 %v958
      %1759 = vmatpush1.msra.mxu0 %v957
      %1760 = vmatprep.subr.mxu0 %v960
      %1761 = vmatpush1.msra.mxu0 %v959
      %1762 = vmatprep.subr.mxu0 %v962
      %1763 = vmatpush1.msra.mxu0 %v961
      %1764 = vmatprep.subr.mxu0 %v964
      %1765 = vmatpush1.msra.mxu0 %v963
      %1766 = vmatprep.subr.mxu0 %v966
      %1767 = vmatpush1.msra.mxu0 %v965
      %1768 = vmatprep.subr.mxu0 %v968
      %1769 = vmatpush1.msra.mxu0 %v967
      %1770 = vmatprep.mubr.f32.mxu0 %v396
      %1771 = vmatmul.mubr.f32.gmra.mrb[0].mxu0 %v395
      %v1772 = vpop.f32.mrb[0].mxu0
      %v1773 = vadd.f32 %v1036, %v1772
      %v1774 = vpop.f32.mrb[0].mxu0
      %v1775 = vadd.f32 %v1038, %v1774
      %1776 = vmatprep.mubr.f32.mxu0 %v400
      %1777 = vmatmul.mubr.f32.gmra.mrb[0].mxu0 %v399
      %v1778 = vpop.f32.mrb[0].mxu0
      %v1779 = vadd.f32 %v1042, %v1778
      %v1780 = vpop.f32.mrb[0].mxu0
      %v1781 = vadd.f32 %v1044, %v1780
      %1782 = vmatprep.mubr.f32.mxu0 %v404
      %1783 = vmatmul.mubr.f32.gmra.mrb[0].mxu0 %v403
      %v1784 = vpop.f32.mrb[0].mxu0
      %v1785 = vadd.f32 %v1048, %v1784
      %v1786 = vpop.f32.mrb[0].mxu0
      %v1787 = vadd.f32 %v1050, %v1786
      %1788 = vmatprep.mubr.f32.mxu0 %v408
      %1789 = vmatmul.mubr.f32.gmra.mrb[0].mxu0 %v407
      %v1790 = vpop.f32.mrb[0].mxu0
      %v1791 = vadd.f32 %v1054, %v1790
      %v1792 = vpop.f32.mrb[0].mxu0
      %v1793 = vadd.f32 %v1056, %v1792
      %1794 = vmatprep.mubr.f32.mxu0 %v412
      %1795 = vmatmul.mubr.f32.gmra.mrb[0].mxu0 %v411
      %v1796 = vpop.f32.mrb[0].mxu0
      %v1797 = vadd.f32 %v1060, %v1796
      %v1798 = vpop.f32.mrb[0].mxu0
      %v1799 = vadd.f32 %v1062, %v1798
      %1800 = vmatprep.mubr.f32.mxu0 %v416
      %1801 = vmatmul.mubr.f32.gmra.mrb[0].mxu0 %v415
      %v1802 = vpop.f32.mrb[0].mxu0
      %v1803 = vadd.f32 %v1066, %v1802
      %v1804 = vpop.f32.mrb[0].mxu0
      %v1805 = vadd.f32 %v1068, %v1804
      %1806 = vmatprep.mubr.f32.mxu0 %v420
      %1807 = vmatmul.mubr.f32.gmra.mrb[0].mxu0 %v419
      %v1808 = vpop.f32.mrb[0].mxu0
      %v1809 = vadd.f32 %v1072, %v1808
      %v1810 = vpop.f32.mrb[0].mxu0
      %v1811 = vadd.f32 %v1074, %v1810
      %1812 = vmatprep.mubr.f32.mxu0 %v424
      %1813 = vmatmul.mubr.f32.gmra.mrb[0].mxu0 %v423
      %v1814 = vpop.f32.mrb[0].mxu0
      %v1815 = vadd.f32 %v1078, %v1814
      %v1816 = vpop.f32.mrb[0].mxu0
      %v1817 = vadd.f32 %v1080, %v1816
      %1818 = vmatprep.mubr.f32.mxu0 %v428
      %1819 = vmatmul.mubr.f32.gmra.mrb[0].mxu0 %v427
      %v1820 = vpop.f32.mrb[0].mxu0
      %v1821 = vadd.f32 %v1084, %v1820
      %v1822 = vpop.f32.mrb[0].mxu0
      %v1823 = vadd.f32 %v1086, %v1822
      %1824 = vmatprep.mubr.f32.mxu0 %v432
      %1825 = vmatmul.mubr.f32.gmra.mrb[0].mxu0 %v431
      %v1826 = vpop.f32.mrb[0].mxu0
      %v1827 = vadd.f32 %v1090, %v1826
      %v1828 = vpop.f32.mrb[0].mxu0
      %v1829 = vadd.f32 %v1092, %v1828
      %1830 = vmatprep.mubr.f32.mxu0 %v436
      %1831 = vmatmul.mubr.f32.gmra.mrb[0].mxu0 %v435
      %v1832 = vpop.f32.mrb[0].mxu0
      %v1833 = vadd.f32 %v1096, %v1832
      %v1834 = vpop.f32.mrb[0].mxu0
      %v1835 = vadd.f32 %v1098, %v1834
      %1836 = vmatprep.mubr.f32.mxu0 %v440
      %1837 = vmatmul.mubr.f32.gmra.mrb[0].mxu0 %v439
      %v1838 = vpop.f32.mrb[0].mxu0
      %v1839 = vadd.f32 %v1102, %v1838
      %v1840 = vpop.f32.mrb[0].mxu0
      %v1841 = vadd.f32 %v1104, %v1840
      %1842 = vmatprep.mubr.f32.mxu0 %v444
      %1843 = vmatmul.mubr.f32.gmra.mrb[0].mxu0 %v443
      %v1844 = vpop.f32.mrb[0].mxu0
      %v1845 = vadd.f32 %v1108, %v1844
      %v1846 = vpop.f32.mrb[0].mxu0
      %v1847 = vadd.f32 %v1110, %v1846
      %1848 = vmatprep.mubr.f32.mxu0 %v448
      %1849 = vmatmul.mubr.f32.gmra.mrb[0].mxu0 %v447
      %v1850 = vpop.f32.mrb[0].mxu0
      %v1851 = vadd.f32 %v1114, %v1850
      %v1852 = vpop.f32.mrb[0].mxu0
      %v1853 = vadd.f32 %v1116, %v1852
      %1854 = vmatprep.mubr.f32.mxu0 %v452
      %1855 = vmatmul.mubr.f32.gmra.mrb[0].mxu0 %v451
      %v1856 = vpop.f32.mrb[0].mxu0
      %v1857 = vadd.f32 %v1120, %v1856
      %v1858 = vpop.f32.mrb[0].mxu0
      %v1859 = vadd.f32 %v1122, %v1858
      %1860 = vmatprep.mubr.f32.mxu0 %v456
      %1861 = vmatmul.mubr.f32.gmra.mrb[0].mxu0 %v455
      %v1862 = vpop.f32.mrb[0].mxu0
      %v1863 = vadd.f32 %v1126, %v1862
      %v1864 = vpop.f32.mrb[0].mxu0
      %v1865 = vadd.f32 %v1128, %v1864
      %1866 = vmatprep.mubr.f32.mxu0 %v460
      %1867 = vmatmul.mubr.f32.gmra.mrb[0].mxu0 %v459
      %v1868 = vpop.f32.mrb[0].mxu0
      %v1869 = vadd.f32 %v1132, %v1868
      %v1870 = vpop.f32.mrb[0].mxu0
      %v1871 = vadd.f32 %v1134, %v1870
      %1872 = vmatprep.mubr.f32.mxu0 %v464
      %1873 = vmatmul.mubr.f32.gmra.mrb[0].mxu0 %v463
      %v1874 = vpop.f32.mrb[0].mxu0
      %v1875 = vadd.f32 %v1138, %v1874
      %v1876 = vpop.f32.mrb[0].mxu0
      %v1877 = vadd.f32 %v1140, %v1876
      %1878 = vmatprep.mubr.f32.mxu0 %v468
      %1879 = vmatmul.mubr.f32.gmra.mrb[0].mxu0 %v467
      %v1880 = vpop.f32.mrb[0].mxu0
      %v1881 = vadd.f32 %v1144, %v1880
      %v1882 = vpop.f32.mrb[0].mxu0
      %v1883 = vadd.f32 %v1146, %v1882
      %1884 = vmatprep.mubr.f32.mxu0 %v472
      %1885 = vmatmul.mubr.f32.gmra.mrb[0].mxu0 %v471
      %v1886 = vpop.f32.mrb[0].mxu0
      %v1887 = vadd.f32 %v1150, %v1886
      %v1888 = vpop.f32.mrb[0].mxu0
      %v1889 = vadd.f32 %v1152, %v1888
      %1890 = vmatprep.mubr.f32.mxu0 %v476
      %1891 = vmatmul.mubr.f32.gmra.mrb[0].mxu0 %v475
      %v1892 = vpop.f32.mrb[0].mxu0
      %v1893 = vadd.f32 %v1156, %v1892
      %v1894 = vpop.f32.mrb[0].mxu0
      %v1895 = vadd.f32 %v1158, %v1894
      %1896 = vmatprep.mubr.f32.mxu0 %v480
      %1897 = vmatmul.mubr.f32.gmra.mrb[0].mxu0 %v479
      %v1898 = vpop.f32.mrb[0].mxu0
      %v1899 = vadd.f32 %v1162, %v1898
      %v1900 = vpop.f32.mrb[0].mxu0
      %v1901 = vadd.f32 %v1164, %v1900
      %1902 = vmatprep.mubr.f32.mxu0 %v484
      %1903 = vmatmul.mubr.f32.gmra.mrb[0].mxu0 %v483
      %v1904 = vpop.f32.mrb[0].mxu0
      %v1905 = vadd.f32 %v1168, %v1904
      %v1906 = vpop.f32.mrb[0].mxu0
      %v1907 = vadd.f32 %v1170, %v1906
      %1908 = vmatprep.mubr.f32.mxu0 %v488
      %1909 = vmatmul.mubr.f32.gmra.mrb[0].mxu0 %v487
      %v1910 = vpop.f32.mrb[0].mxu0
      %v1911 = vadd.f32 %v1174, %v1910
      %v1912 = vpop.f32.mrb[0].mxu0
      %v1913 = vadd.f32 %v1176, %v1912
      %1914 = vmatprep.mubr.f32.mxu0 %v492
      %1915 = vmatmul.mubr.f32.gmra.mrb[0].mxu0 %v491
      %v1916 = vpop.f32.mrb[0].mxu0
      %v1917 = vadd.f32 %v1180, %v1916
      %v1918 = vpop.f32.mrb[0].mxu0
      %v1919 = vadd.f32 %v1182, %v1918
      %1920 = vmatprep.mubr.f32.mxu0 %v496
      %1921 = vmatmul.mubr.f32.gmra.mrb[0].mxu0 %v495
      %v1922 = vpop.f32.mrb[0].mxu0
      %v1923 = vadd.f32 %v1186, %v1922
      %v1924 = vpop.f32.mrb[0].mxu0
      %v1925 = vadd.f32 %v1188, %v1924
      %1926 = vmatprep.mubr.f32.mxu0 %v500
      %1927 = vmatmul.mubr.f32.gmra.mrb[0].mxu0 %v499
      %v1928 = vpop.f32.mrb[0].mxu0
      %v1929 = vadd.f32 %v1192, %v1928
      %v1930 = vpop.f32.mrb[0].mxu0
      %v1931 = vadd.f32 %v1194, %v1930
      %1932 = vmatprep.mubr.f32.mxu0 %v504
      %1933 = vmatmul.mubr.f32.gmra.mrb[0].mxu0 %v503
      %v1934 = vpop.f32.mrb[0].mxu0
      %v1935 = vadd.f32 %v1198, %v1934
      %v1936 = vpop.f32.mrb[0].mxu0
      %v1937 = vadd.f32 %v1200, %v1936
      %1938 = vmatprep.mubr.f32.mxu0 %v508
      %1939 = vmatmul.mubr.f32.gmra.mrb[0].mxu0 %v507
      %v1940 = vpop.f32.mrb[0].mxu0
      %v1941 = vadd.f32 %v1204, %v1940
      %v1942 = vpop.f32.mrb[0].mxu0
      %v1943 = vadd.f32 %v1206, %v1942
      %1944 = vmatprep.mubr.f32.mxu0 %v512
      %1945 = vmatmul.mubr.f32.gmra.mrb[0].mxu0 %v511
      %v1946 = vpop.f32.mrb[0].mxu0
      %v1947 = vadd.f32 %v1210, %v1946
      %v1948 = vpop.f32.mrb[0].mxu0
      %v1949 = vadd.f32 %v1212, %v1948
      %1950 = vmatprep.mubr.f32.mxu0 %v516
      %1951 = vmatmul.mubr.f32.gmra.mrb[0].mxu0 %v515
      %v1952 = vpop.f32.mrb[0].mxu0
      %v1953 = vadd.f32 %v1216, %v1952
      %v1954 = vpop.f32.mrb[0].mxu0
      %v1955 = vadd.f32 %v1218, %v1954
      %1956 = vmatprep.mubr.f32.mxu0 %v520
      %1957 = vmatmul.mubr.f32.gmra.mrb[0].mxu0 %v519
      %v1958 = vpop.f32.mrb[0].mxu0
      %v1959 = vadd.f32 %v1222, %v1958
      %v1960 = vpop.f32.mrb[0].mxu0
      %v1961 = vadd.f32 %v1224, %v1960
      %1962 = vmatprep.mubr.f32.mxu0 %v524
      %1963 = vmatmul.mubr.f32.gmra.mrb[0].mxu0 %v523
      %v1964 = vpop.f32.mrb[0].mxu0
      %v1965 = vadd.f32 %v1228, %v1964
      %v1966 = vpop.f32.mrb[0].mxu0
      %v1967 = vadd.f32 %v1230, %v1966
      %1968 = vmatprep.mubr.f32.mxu0 %v528
      %1969 = vmatmul.mubr.f32.gmra.mrb[0].mxu0 %v527
      %v1970 = vpop.f32.mrb[0].mxu0
      %v1971 = vadd.f32 %v1234, %v1970
      %v1972 = vpop.f32.mrb[0].mxu0
      %v1973 = vadd.f32 %v1236, %v1972
      %1974 = vmatprep.mubr.f32.mxu0 %v532
      %1975 = vmatmul.mubr.f32.gmra.mrb[0].mxu0 %v531
      %v1976 = vpop.f32.mrb[0].mxu0
      %v1977 = vadd.f32 %v1240, %v1976
      %v1978 = vpop.f32.mrb[0].mxu0
      %v1979 = vadd.f32 %v1242, %v1978
      %1980 = vmatprep.mubr.f32.mxu0 %v536
      %1981 = vmatmul.mubr.f32.gmra.mrb[0].mxu0 %v535
      %v1982 = vpop.f32.mrb[0].mxu0
      %v1983 = vadd.f32 %v1246, %v1982
      %v1984 = vpop.f32.mrb[0].mxu0
      %v1985 = vadd.f32 %v1248, %v1984
      %1986 = vmatprep.mubr.f32.mxu0 %v540
      %1987 = vmatmul.mubr.f32.gmra.mrb[0].mxu0 %v539
      %v1988 = vpop.f32.mrb[0].mxu0
      %v1989 = vadd.f32 %v1252, %v1988
      %v1990 = vpop.f32.mrb[0].mxu0
      %v1991 = vadd.f32 %v1254, %v1990
      %1992 = vmatprep.mubr.f32.mxu0 %v544
      %1993 = vmatmul.mubr.f32.gmra.mrb[0].mxu0 %v543
      %v1994 = vpop.f32.mrb[0].mxu0
      %v1995 = vadd.f32 %v1258, %v1994
      %v1996 = vpop.f32.mrb[0].mxu0
      %v1997 = vadd.f32 %v1260, %v1996
      %1998 = vmatprep.mubr.f32.mxu0 %v548
      %1999 = vmatmul.mubr.f32.gmra.mrb[0].mxu0 %v547
      %v2000 = vpop.f32.mrb[0].mxu0
      %v2001 = vadd.f32 %v1264, %v2000
      %v2002 = vpop.f32.mrb[0].mxu0
      %v2003 = vadd.f32 %v1266, %v2002
      %2004 = vmatprep.mubr.f32.mxu0 %v552
      %2005 = vmatmul.mubr.f32.gmra.mrb[0].mxu0 %v551
      %v2006 = vpop.f32.mrb[0].mxu0
      %v2007 = vadd.f32 %v1270, %v2006
      %v2008 = vpop.f32.mrb[0].mxu0
      %v2009 = vadd.f32 %v1272, %v2008
      %2010 = vmatprep.mubr.f32.mxu0 %v556
      %2011 = vmatmul.mubr.f32.gmra.mrb[0].mxu0 %v555
      %v2012 = vpop.f32.mrb[0].mxu0
      %v2013 = vadd.f32 %v1276, %v2012
      %v2014 = vpop.f32.mrb[0].mxu0
      %v2015 = vadd.f32 %v1278, %v2014
      %2016 = vmatprep.mubr.f32.mxu0 %v560
      %2017 = vmatmul.mubr.f32.gmra.mrb[0].mxu0 %v559
      %v2018 = vpop.f32.mrb[0].mxu0
      %v2019 = vadd.f32 %v1282, %v2018
      %v2020 = vpop.f32.mrb[0].mxu0
      %v2021 = vadd.f32 %v1284, %v2020
      %2022 = vmatprep.mubr.f32.mxu0 %v564
      %2023 = vmatmul.mubr.f32.gmra.mrb[0].mxu0 %v563
      %v2024 = vpop.f32.mrb[0].mxu0
      %v2025 = vadd.f32 %v1288, %v2024
      %v2026 = vpop.f32.mrb[0].mxu0
      %v2027 = vadd.f32 %v1290, %v2026
      %2028 = vmatprep.mubr.f32.mxu0 %v568
      %2029 = vmatmul.mubr.f32.gmra.mrb[0].mxu0 %v567
      %v2030 = vpop.f32.mrb[0].mxu0
      %v2031 = vadd.f32 %v1294, %v2030
      %v2032 = vpop.f32.mrb[0].mxu0
      %v2033 = vadd.f32 %v1296, %v2032
      %2034 = vmatprep.mubr.f32.mxu0 %v572
      %2035 = vmatmul.mubr.f32.gmra.mrb[0].mxu0 %v571
      %v2036 = vpop.f32.mrb[0].mxu0
      %v2037 = vadd.f32 %v1300, %v2036
      %v2038 = vpop.f32.mrb[0].mxu0
      %v2039 = vadd.f32 %v1302, %v2038
      %2040 = vmatprep.mubr.f32.mxu0 %v576
      %2041 = vmatmul.mubr.f32.gmra.mrb[0].mxu0 %v575
      %v2042 = vpop.f32.mrb[0].mxu0
      %v2043 = vadd.f32 %v1306, %v2042
      %v2044 = vpop.f32.mrb[0].mxu0
      %v2045 = vadd.f32 %v1308, %v2044
      %2046 = vmatprep.mubr.f32.mxu0 %v580
      %2047 = vmatmul.mubr.f32.gmra.mrb[0].mxu0 %v579
      %v2048 = vpop.f32.mrb[0].mxu0
      %v2049 = vadd.f32 %v1312, %v2048
      %v2050 = vpop.f32.mrb[0].mxu0
      %v2051 = vadd.f32 %v1314, %v2050
      %2052 = vmatprep.mubr.f32.mxu0 %v584
      %2053 = vmatmul.mubr.f32.gmra.mrb[0].mxu0 %v583
      %v2054 = vpop.f32.mrb[0].mxu0
      %v2055 = vadd.f32 %v1318, %v2054
      %v2056 = vpop.f32.mrb[0].mxu0
      %v2057 = vadd.f32 %v1320, %v2056
      %2058 = vmatprep.mubr.f32.mxu0 %v588
      %2059 = vmatmul.mubr.f32.gmra.mrb[0].mxu0 %v587
      %v2060 = vpop.f32.mrb[0].mxu0
      %v2061 = vadd.f32 %v1324, %v2060
      %v2062 = vpop.f32.mrb[0].mxu0
      %v2063 = vadd.f32 %v1326, %v2062
      %2064 = vmatprep.mubr.f32.mxu0 %v592
      %2065 = vmatmul.mubr.f32.gmra.mrb[0].mxu0 %v591
      %v2066 = vpop.f32.mrb[0].mxu0
      %v2067 = vadd.f32 %v1330, %v2066
      %v2068 = vpop.f32.mrb[0].mxu0
      %v2069 = vadd.f32 %v1332, %v2068
      %2070 = vmatprep.mubr.f32.mxu0 %v596
      %2071 = vmatmul.mubr.f32.gmra.mrb[0].mxu0 %v595
      %v2072 = vpop.f32.mrb[0].mxu0
      %v2073 = vadd.f32 %v1336, %v2072
      %v2074 = vpop.f32.mrb[0].mxu0
      %v2075 = vadd.f32 %v1338, %v2074
      %2076 = vmatprep.mubr.f32.mxu0 %v600
      %2077 = vmatmul.mubr.f32.gmra.mrb[0].mxu0 %v599
      %v2078 = vpop.f32.mrb[0].mxu0
      %v2079 = vadd.f32 %v1342, %v2078
      %v2080 = vpop.f32.mrb[0].mxu0
      %v2081 = vadd.f32 %v1344, %v2080
      %2082 = vmatprep.mubr.f32.mxu0 %v604
      %2083 = vmatmul.mubr.f32.gmra.mrb[0].mxu0 %v603
      %v2084 = vpop.f32.mrb[0].mxu0
      %v2085 = vadd.f32 %v1348, %v2084
      %v2086 = vpop.f32.mrb[0].mxu0
      %v2087 = vadd.f32 %v1350, %v2086
      %2088 = vmatprep.mubr.f32.mxu0 %v608
      %2089 = vmatmul.mubr.f32.gmra.mrb[0].mxu0 %v607
      %v2090 = vpop.f32.mrb[0].mxu0
      %v2091 = vadd.f32 %v1354, %v2090
      %v2092 = vpop.f32.mrb[0].mxu0
      %v2093 = vadd.f32 %v1356, %v2092
      %2094 = vmatprep.mubr.f32.mxu0 %v612
      %2095 = vmatmul.mubr.f32.gmra.mrb[0].mxu0 %v611
      %v2096 = vpop.f32.mrb[0].mxu0
      %v2097 = vadd.f32 %v1360, %v2096
      %v2098 = vpop.f32.mrb[0].mxu0
      %v2099 = vadd.f32 %v1362, %v2098
      %2100 = vmatprep.mubr.f32.mxu0 %v616
      %2101 = vmatmul.mubr.f32.gmra.mrb[0].mxu0 %v615
      %v2102 = vpop.f32.mrb[0].mxu0
      %v2103 = vadd.f32 %v1366, %v2102
      %v2104 = vpop.f32.mrb[0].mxu0
      %v2105 = vadd.f32 %v1368, %v2104
      %2106 = vmatprep.mubr.f32.mxu0 %v620
      %2107 = vmatmul.mubr.f32.gmra.mrb[0].mxu0 %v619
      %v2108 = vpop.f32.mrb[0].mxu0
      %v2109 = vadd.f32 %v1372, %v2108
      %v2110 = vpop.f32.mrb[0].mxu0
      %v2111 = vadd.f32 %v1374, %v2110
      %2112 = vmatprep.mubr.f32.mxu0 %v624
      %2113 = vmatmul.mubr.f32.gmra.mrb[0].mxu0 %v623
      %v2114 = vpop.f32.mrb[0].mxu0
      %v2115 = vadd.f32 %v1378, %v2114
      %v2116 = vpop.f32.mrb[0].mxu0
      %v2117 = vadd.f32 %v1380, %v2116
      %2118 = vmatprep.mubr.f32.mxu0 %v628
      %2119 = vmatmul.mubr.f32.gmra.mrb[0].mxu0 %v627
      %v2120 = vpop.f32.mrb[0].mxu0
      %v2121 = vadd.f32 %v1384, %v2120
      %v2122 = vpop.f32.mrb[0].mxu0
      %v2123 = vadd.f32 %v1386, %v2122
      %2124 = vmatprep.mubr.f32.mxu0 %v632
      %2125 = vmatmul.mubr.f32.gmra.mrb[0].mxu0 %v631
      %v2126 = vpop.f32.mrb[0].mxu0
      %v2127 = vadd.f32 %v1390, %v2126
      %v2128 = vpop.f32.mrb[0].mxu0
      %v2129 = vadd.f32 %v1392, %v2128
      %2130 = vmatprep.mubr.f32.mxu0 %v636
      %2131 = vmatmul.mubr.f32.gmra.mrb[0].mxu0 %v635
      %v2132 = vpop.f32.mrb[0].mxu0
      %v2133 = vadd.f32 %v1396, %v2132
      %v2134 = vpop.f32.mrb[0].mxu0
      %v2135 = vadd.f32 %v1398, %v2134
      %2136 = vmatprep.mubr.f32.mxu0 %v640
      %2137 = vmatmul.mubr.f32.gmra.mrb[0].mxu0 %v639
      %v2138 = vpop.f32.mrb[0].mxu0
      %v2139 = vadd.f32 %v1402, %v2138
      %v2140 = vpop.f32.mrb[0].mxu0
      %v2141 = vadd.f32 %v1404, %v2140
      %2142 = vmatprep.mubr.f32.mxu0 %v644
      %2143 = vmatmul.mubr.f32.gmra.mrb[0].mxu0 %v643
      %v2144 = vpop.f32.mrb[0].mxu0
      %v2145 = vadd.f32 %v1408, %v2144
      %v2146 = vpop.f32.mrb[0].mxu0
      %v2147 = vadd.f32 %v1410, %v2146
      %2148 = vmatprep.mubr.f32.mxu0 %v648
      %2149 = vmatmul.mubr.f32.gmra.mrb[0].mxu0 %v647
      %v2150 = vpop.f32.mrb[0].mxu0
      %v2151 = vadd.f32 %v1414, %v2150
      %v2152 = vpop.f32.mrb[0].mxu0
      %v2153 = vadd.f32 %v1416, %v2152
      %2154 = vmatprep.mubr.f32.mxu0 %v652
      %2155 = vmatmul.mubr.f32.gmra.mrb[0].mxu0 %v651
      %v2156 = vpop.f32.mrb[0].mxu0
      %v2157 = vadd.f32 %v1420, %v2156
      %v2158 = vpop.f32.mrb[0].mxu0
      %v2159 = vadd.f32 %v1422, %v2158
      %2160 = vmatprep.mubr.f32.mxu0 %v656
      %2161 = vmatmul.mubr.f32.gmra.mrb[0].mxu0 %v655
      %v2162 = vpop.f32.mrb[0].mxu0
      %v2163 = vadd.f32 %v1426, %v2162
      %v2164 = vpop.f32.mrb[0].mxu0
      %v2165 = vadd.f32 %v1428, %v2164
      %2166 = vmatprep.mubr.f32.mxu0 %v660
      %2167 = vmatmul.mubr.f32.gmra.mrb[0].mxu0 %v659
      %v2168 = vpop.f32.mrb[0].mxu0
      %v2169 = vadd.f32 %v1432, %v2168
      %v2170 = vpop.f32.mrb[0].mxu0
      %v2171 = vadd.f32 %v1434, %v2170
      %2172 = vmatprep.mubr.f32.mxu0 %v664
      %2173 = vmatmul.mubr.f32.gmra.mrb[0].mxu0 %v663
      %v2174 = vpop.f32.mrb[0].mxu0
      %v2175 = vadd.f32 %v1438, %v2174
      %v2176 = vpop.f32.mrb[0].mxu0
      %v2177 = vadd.f32 %v1440, %v2176
      %2178 = vmatprep.mubr.f32.mxu0 %v668
      %2179 = vmatmul.mubr.f32.gmra.mrb[0].mxu0 %v667
      %v2180 = vpop.f32.mrb[0].mxu0
      %v2181 = vadd.f32 %v1444, %v2180
      %v2182 = vpop.f32.mrb[0].mxu0
      %v2183 = vadd.f32 %v1446, %v2182
      %2184 = vmatprep.mubr.f32.mxu0 %v672
      %2185 = vmatmul.mubr.f32.gmra.mrb[0].mxu0 %v671
      %v2186 = vpop.f32.mrb[0].mxu0
      %v2187 = vadd.f32 %v1450, %v2186
      %v2188 = vpop.f32.mrb[0].mxu0
      %v2189 = vadd.f32 %v1452, %v2188
      %2190 = vmatprep.mubr.f32.mxu0 %v676
      %2191 = vmatmul.mubr.f32.gmra.mrb[0].mxu0 %v675
      %v2192 = vpop.f32.mrb[0].mxu0
      %v2193 = vadd.f32 %v1456, %v2192
      %v2194 = vpop.f32.mrb[0].mxu0
      %v2195 = vadd.f32 %v1458, %v2194
      %2196 = vmatprep.mubr.f32.mxu0 %v680
      %2197 = vmatmul.mubr.f32.gmra.mrb[0].mxu0 %v679
      %v2198 = vpop.f32.mrb[0].mxu0
      %v2199 = vadd.f32 %v1462, %v2198
      %v2200 = vpop.f32.mrb[0].mxu0
      %v2201 = vadd.f32 %v1464, %v2200
      %2202 = vmatprep.mubr.f32.mxu0 %v684
      %2203 = vmatmul.mubr.f32.gmra.mrb[0].mxu0 %v683
      %v2204 = vpop.f32.mrb[0].mxu0
      %v2205 = vadd.f32 %v1468, %v2204
      %v2206 = vpop.f32.mrb[0].mxu0
      %v2207 = vadd.f32 %v1470, %v2206
      %2208 = vmatprep.mubr.f32.mxu0 %v688
      %2209 = vmatmul.mubr.f32.gmra.mrb[0].mxu0 %v687
      %v2210 = vpop.f32.mrb[0].mxu0
      %v2211 = vadd.f32 %v1474, %v2210
      %v2212 = vpop.f32.mrb[0].mxu0
      %v2213 = vadd.f32 %v1476, %v2212
      %2214 = vmatprep.mubr.f32.mxu0 %v692
      %2215 = vmatmul.mubr.f32.gmra.mrb[0].mxu0 %v691
      %v2216 = vpop.f32.mrb[0].mxu0
      %v2217 = vadd.f32 %v1480, %v2216
      %v2218 = vpop.f32.mrb[0].mxu0
      %v2219 = vadd.f32 %v1482, %v2218
      %2220 = vmatprep.mubr.f32.mxu0 %v696
      %2221 = vmatmul.mubr.f32.gmra.mrb[0].mxu0 %v695
      %v2222 = vpop.f32.mrb[0].mxu0
      %v2223 = vadd.f32 %v1486, %v2222
      %v2224 = vpop.f32.mrb[0].mxu0
      %v2225 = vadd.f32 %v1488, %v2224
      %2226 = vmatprep.mubr.f32.mxu0 %v700
      %2227 = vmatmul.mubr.f32.gmra.mrb[0].mxu0 %v699
      %v2228 = vpop.f32.mrb[0].mxu0
      %v2229 = vadd.f32 %v1492, %v2228
      %v2230 = vpop.f32.mrb[0].mxu0
      %v2231 = vadd.f32 %v1494, %v2230
      %2232 = vmatprep.mubr.f32.mxu0 %v704
      %2233 = vmatmul.mubr.f32.gmra.mrb[0].mxu0 %v703
      %v2234 = vpop.f32.mrb[0].mxu0
      %v2235 = vadd.f32 %v1498, %v2234
      %v2236 = vpop.f32.mrb[0].mxu0
      %v2237 = vadd.f32 %v1500, %v2236
      %2238 = vmatprep.mubr.f32.mxu0 %v708
      %2239 = vmatmul.mubr.f32.gmra.mrb[0].mxu0 %v707
      %v2240 = vpop.f32.mrb[0].mxu0
      %v2241 = vadd.f32 %v1504, %v2240
      %v2242 = vpop.f32.mrb[0].mxu0
      %v2243 = vadd.f32 %v1506, %v2242
      %2244 = vmatprep.mubr.f32.mxu0 %v712
      %2245 = vmatmul.mubr.f32.gmra.mrb[0].mxu0 %v711
      %v2246 = vpop.f32.mrb[0].mxu0
      %v2247 = vadd.f32 %v1510, %v2246
      %v2248 = vpop.f32.mrb[0].mxu0
      %v2249 = vadd.f32 %v1512, %v2248
      %2250 = vmatprep.mubr.f32.mxu0 %v716
      %2251 = vmatmul.mubr.f32.gmra.mrb[0].mxu0 %v715
      %v2252 = vpop.f32.mrb[0].mxu0
      %v2253 = vadd.f32 %v1516, %v2252
      %v2254 = vpop.f32.mrb[0].mxu0
      %v2255 = vadd.f32 %v1518, %v2254
      %2256 = vmatprep.mubr.f32.mxu0 %v720
      %2257 = vmatmul.mubr.f32.gmra.mrb[0].mxu0 %v719
      %v2258 = vpop.f32.mrb[0].mxu0
      %v2259 = vadd.f32 %v1522, %v2258
      %v2260 = vpop.f32.mrb[0].mxu0
      %v2261 = vadd.f32 %v1524, %v2260
      %2262 = vmatprep.mubr.f32.mxu0 %v724
      %2263 = vmatmul.mubr.f32.gmra.mrb[0].mxu0 %v723
      %v2264 = vpop.f32.mrb[0].mxu0
      %v2265 = vadd.f32 %v1528, %v2264
      %v2266 = vpop.f32.mrb[0].mxu0
      %v2267 = vadd.f32 %v1530, %v2266
      %2268 = vmatprep.mubr.f32.mxu0 %v728
      %2269 = vmatmul.mubr.f32.gmra.mrb[0].mxu0 %v727
      %v2270 = vpop.f32.mrb[0].mxu0
      %v2271 = vadd.f32 %v1534, %v2270
      %v2272 = vpop.f32.mrb[0].mxu0
      %v2273 = vadd.f32 %v1536, %v2272
      %2274 = vmatprep.mubr.f32.mxu0 %v732
      %2275 = vmatmul.mubr.f32.gmra.mrb[0].mxu0 %v731
      %v2276 = vpop.f32.mrb[0].mxu0
      %v2277 = vadd.f32 %v1540, %v2276
      %v2278 = vpop.f32.mrb[0].mxu0
      %v2279 = vadd.f32 %v1542, %v2278
      %2280 = vmatprep.mubr.f32.mxu0 %v736
      %2281 = vmatmul.mubr.f32.gmra.mrb[0].mxu0 %v735
      %v2282 = vpop.f32.mrb[0].mxu0
      %v2283 = vadd.f32 %v1546, %v2282
      %v2284 = vpop.f32.mrb[0].mxu0
      %v2285 = vadd.f32 %v1548, %v2284
      %2286 = vmatprep.mubr.f32.mxu0 %v740
      %2287 = vmatmul.mubr.f32.gmra.mrb[0].mxu0 %v739
      %v2288 = vpop.f32.mrb[0].mxu0
      %v2289 = vadd.f32 %v1552, %v2288
      %v2290 = vpop.f32.mrb[0].mxu0
      %v2291 = vadd.f32 %v1554, %v2290
      %2292 = vmatprep.mubr.f32.mxu0 %v744
      %2293 = vmatmul.mubr.f32.gmra.mrb[0].mxu0 %v743
      %v2294 = vpop.f32.mrb[0].mxu0
      %v2295 = vadd.f32 %v1558, %v2294
      %v2296 = vpop.f32.mrb[0].mxu0
      %v2297 = vadd.f32 %v1560, %v2296
      %2298 = vmatprep.mubr.f32.mxu0 %v748
      %2299 = vmatmul.mubr.f32.gmra.mrb[0].mxu0 %v747
      %v2300 = vpop.f32.mrb[0].mxu0
      %v2301 = vadd.f32 %v1564, %v2300
      %v2302 = vpop.f32.mrb[0].mxu0
      %v2303 = vadd.f32 %v1566, %v2302
      %2304 = vmatprep.mubr.f32.mxu0 %v752
      %2305 = vmatmul.mubr.f32.gmra.mrb[0].mxu0 %v751
      %v2306 = vpop.f32.mrb[0].mxu0
      %v2307 = vadd.f32 %v1570, %v2306
      %v2308 = vpop.f32.mrb[0].mxu0
      %v2309 = vadd.f32 %v1572, %v2308
      %2310 = vmatprep.mubr.f32.mxu0 %v756
      %2311 = vmatmul.mubr.f32.gmra.mrb[0].mxu0 %v755
      %v2312 = vpop.f32.mrb[0].mxu0
      %v2313 = vadd.f32 %v1576, %v2312
      %v2314 = vpop.f32.mrb[0].mxu0
      %v2315 = vadd.f32 %v1578, %v2314
      %2316 = vmatprep.mubr.f32.mxu0 %v760
      %2317 = vmatmul.mubr.f32.gmra.mrb[0].mxu0 %v759
      %v2318 = vpop.f32.mrb[0].mxu0
      %v2319 = vadd.f32 %v1582, %v2318
      %v2320 = vpop.f32.mrb[0].mxu0
      %v2321 = vadd.f32 %v1584, %v2320
      %2322 = vmatprep.mubr.f32.mxu0 %v764
      %2323 = vmatmul.mubr.f32.gmra.mrb[0].mxu0 %v763
      %v2324 = vpop.f32.mrb[0].mxu0
      %v2325 = vadd.f32 %v1588, %v2324
      %v2326 = vpop.f32.mrb[0].mxu0
      %v2327 = vadd.f32 %v1590, %v2326
      %2328 = vmatprep.mubr.f32.mxu0 %v768
      %2329 = vmatmul.mubr.f32.gmra.mrb[0].mxu0 %v767
      %v2330 = vpop.f32.mrb[0].mxu0
      %v2331 = vadd.f32 %v1594, %v2330
      %v2332 = vpop.f32.mrb[0].mxu0
      %v2333 = vadd.f32 %v1596, %v2332
      %2334 = vmatprep.mubr.f32.mxu0 %v772
      %2335 = vmatmul.mubr.f32.gmra.mrb[0].mxu0 %v771
      %v2336 = vpop.f32.mrb[0].mxu0
      %v2337 = vadd.f32 %v1600, %v2336
      %v2338 = vpop.f32.mrb[0].mxu0
      %v2339 = vadd.f32 %v1602, %v2338
      %2340 = vmatprep.mubr.f32.mxu0 %v776
      %2341 = vmatmul.mubr.f32.gmra.mrb[0].mxu0 %v775
      %v2342 = vpop.f32.mrb[0].mxu0
      %v2343 = vadd.f32 %v1606, %v2342
      %v2344 = vpop.f32.mrb[0].mxu0
      %v2345 = vadd.f32 %v1608, %v2344
      %2346 = vmatprep.mubr.f32.mxu0 %v780
      %2347 = vmatmul.mubr.f32.gmra.mrb[0].mxu0 %v779
      %v2348 = vpop.f32.mrb[0].mxu0
      %v2349 = vadd.f32 %v1612, %v2348
      %v2350 = vpop.f32.mrb[0].mxu0
      %v2351 = vadd.f32 %v1614, %v2350
      %2352 = vmatprep.mubr.f32.mxu0 %v784
      %2353 = vmatmul.mubr.f32.gmra.mrb[0].mxu0 %v783
      %v2354 = vpop.f32.mrb[0].mxu0
      %v2355 = vadd.f32 %v1618, %v2354
      %v2356 = vpop.f32.mrb[0].mxu0
      %v2357 = vadd.f32 %v1620, %v2356
      %2358 = vmatprep.mubr.f32.mxu0 %v788
      %2359 = vmatmul.mubr.f32.gmra.mrb[0].mxu0 %v787
      %v2360 = vpop.f32.mrb[0].mxu0
      %v2361 = vadd.f32 %v1624, %v2360
      %v2362 = vpop.f32.mrb[0].mxu0
      %v2363 = vadd.f32 %v1626, %v2362
      %2364 = vmatprep.mubr.f32.mxu0 %v792
      %2365 = vmatmul.mubr.f32.gmra.mrb[0].mxu0 %v791
      %v2366 = vpop.f32.mrb[0].mxu0
      %v2367 = vadd.f32 %v1630, %v2366
      %v2368 = vpop.f32.mrb[0].mxu0
      %v2369 = vadd.f32 %v1632, %v2368
      %2370 = vmatprep.mubr.f32.mxu0 %v796
      %2371 = vmatmul.mubr.f32.gmra.mrb[0].mxu0 %v795
      %v2372 = vpop.f32.mrb[0].mxu0
      %v2373 = vadd.f32 %v1636, %v2372
      %v2374 = vpop.f32.mrb[0].mxu0
      %v2375 = vadd.f32 %v1638, %v2374
      %2376 = vmatprep.mubr.f32.mxu0 %v800
      %2377 = vmatmul.mubr.f32.gmra.mrb[0].mxu0 %v799
      %v2378 = vpop.f32.mrb[0].mxu0
      %v2379 = vadd.f32 %v1642, %v2378
      %v2380 = vpop.f32.mrb[0].mxu0
      %v2381 = vadd.f32 %v1644, %v2380
      %2382 = vmatprep.mubr.f32.mxu0 %v804
      %2383 = vmatmul.mubr.f32.gmra.mrb[0].mxu0 %v803
      %v2384 = vpop.f32.mrb[0].mxu0
      %v2385 = vadd.f32 %v1648, %v2384
      %v2386 = vpop.f32.mrb[0].mxu0
      %v2387 = vadd.f32 %v1650, %v2386
      %2388 = vmatprep.mubr.f32.mxu0 %v808
      %2389 = vmatmul.mubr.f32.gmra.mrb[0].mxu0 %v807
      %v2390 = vpop.f32.mrb[0].mxu0
      %v2391 = vadd.f32 %v1654, %v2390
      %v2392 = vpop.f32.mrb[0].mxu0
      %v2393 = vadd.f32 %v1656, %v2392
      %2394 = vmatprep.mubr.f32.mxu0 %v812
      %2395 = vmatmul.mubr.f32.gmra.mrb[0].mxu0 %v811
      %v2396 = vpop.f32.mrb[0].mxu0
      %v2397 = vadd.f32 %v1660, %v2396
      %v2398 = vpop.f32.mrb[0].mxu0
      %v2399 = vadd.f32 %v1662, %v2398
      %2400 = vmatprep.mubr.f32.mxu0 %v816
      %2401 = vmatmul.mubr.f32.gmra.mrb[0].mxu0 %v815
      %v2402 = vpop.f32.mrb[0].mxu0
      %v2403 = vadd.f32 %v1666, %v2402
      %v2404 = vpop.f32.mrb[0].mxu0
      %v2405 = vadd.f32 %v1668, %v2404
      %2406 = vmatprep.mubr.f32.mxu0 %v820
      %2407 = vmatmul.mubr.f32.gmra.mrb[0].mxu0 %v819
      %v2408 = vpop.f32.mrb[0].mxu0
      %v2409 = vadd.f32 %v1672, %v2408
      %v2410 = vpop.f32.mrb[0].mxu0
      %v2411 = vadd.f32 %v1674, %v2410
      %2412 = vmatprep.mubr.f32.mxu0 %v824
      %2413 = vmatmul.mubr.f32.gmra.mrb[0].mxu0 %v823
      %v2414 = vpop.f32.mrb[0].mxu0
      %v2415 = vadd.f32 %v1678, %v2414
      %v2416 = vpop.f32.mrb[0].mxu0
      %v2417 = vadd.f32 %v1680, %v2416
      %2418 = vmatprep.mubr.f32.mxu0 %v828
      %2419 = vmatmul.mubr.f32.gmra.mrb[0].mxu0 %v827
      %v2420 = vpop.f32.mrb[0].mxu0
      %v2421 = vadd.f32 %v1684, %v2420
      %v2422 = vpop.f32.mrb[0].mxu0
      %v2423 = vadd.f32 %v1686, %v2422
      %2424 = vmatprep.mubr.f32.mxu0 %v832
      %2425 = vmatmul.mubr.f32.gmra.mrb[0].mxu0 %v831
      %v2426 = vpop.f32.mrb[0].mxu0
      %v2427 = vadd.f32 %v1690, %v2426
      %v2428 = vpop.f32.mrb[0].mxu0
      %v2429 = vadd.f32 %v1692, %v2428
      %2430 = vmatprep.mubr.f32.mxu0 %v836
      %2431 = vmatmul.mubr.f32.gmra.mrb[0].mxu0 %v835
      %v2432 = vpop.f32.mrb[0].mxu0
      %v2433 = vadd.f32 %v1696, %v2432
      %v2434 = vpop.f32.mrb[0].mxu0
      %v2435 = vadd.f32 %v1698, %v2434
      %2436 = vmatprep.mubr.f32.mxu0 %v840
      %2437 = vmatmul.mubr.f32.gmra.mrb[0].mxu0 %v839
      %v2438 = vpop.f32.mrb[0].mxu0
      %v2439 = vadd.f32 %v1702, %v2438
      %v2440 = vpop.f32.mrb[0].mxu0
      %v2441 = vadd.f32 %v1704, %v2440
      %2442 = vdwg.mxu0
      %v2443 = vmax.f32 %v1773, %v2109
      %v2444 = vmax.f32 %v1775, %v2111
      %v2445 = vmax.f32 %v1779, %v2115
      %v2446 = vmax.f32 %v1781, %v2117
      %v2447 = vmax.f32 %v1785, %v2121
      %v2448 = vmax.f32 %v1787, %v2123
      %v2449 = vmax.f32 %v1791, %v2127
      %v2450 = vmax.f32 %v1793, %v2129
      %v2451 = vmax.f32 %v1797, %v2133
      %v2452 = vmax.f32 %v1799, %v2135
      %v2453 = vmax.f32 %v1803, %v2139
      %v2454 = vmax.f32 %v1805, %v2141
      %v2455 = vmax.f32 %v1809, %v2145
      %v2456 = vmax.f32 %v1811, %v2147
      %v2457 = vmax.f32 %v1815, %v2151
      %v2458 = vmax.f32 %v1817, %v2153
      %v2459 = vmax.f32 %v1821, %v2157
      %v2460 = vmax.f32 %v1823, %v2159
      %v2461 = vmax.f32 %v1827, %v2163
      %v2462 = vmax.f32 %v1829, %v2165
      %v2463 = vmax.f32 %v1833, %v2169
      %v2464 = vmax.f32 %v1835, %v2171
      %v2465 = vmax.f32 %v1839, %v2175
      %v2466 = vmax.f32 %v1841, %v2177
      %v2467 = vmax.f32 %v1845, %v2181
      %v2468 = vmax.f32 %v1847, %v2183
      %v2469 = vmax.f32 %v1851, %v2187
      %v2470 = vmax.f32 %v1853, %v2189
      %v2471 = vmax.f32 %v1857, %v2193
      %v2472 = vmax.f32 %v1859, %v2195
      %v2473 = vmax.f32 %v1863, %v2199
      %v2474 = vmax.f32 %v1865, %v2201
      %v2475 = vmax.f32 %v1869, %v2205
      %v2476 = vmax.f32 %v1871, %v2207
      %v2477 = vmax.f32 %v1875, %v2211
      %v2478 = vmax.f32 %v1877, %v2213
      %v2479 = vmax.f32 %v1881, %v2217
      %v2480 = vmax.f32 %v1883, %v2219
      %v2481 = vmax.f32 %v1887, %v2223
      %v2482 = vmax.f32 %v1889, %v2225
      %v2483 = vmax.f32 %v1893, %v2229
      %v2484 = vmax.f32 %v1895, %v2231
      %v2485 = vmax.f32 %v1899, %v2235
      %v2486 = vmax.f32 %v1901, %v2237
      %v2487 = vmax.f32 %v1905, %v2241
      %v2488 = vmax.f32 %v1907, %v2243
      %v2489 = vmax.f32 %v1911, %v2247
      %v2490 = vmax.f32 %v1913, %v2249
      %v2491 = vmax.f32 %v1917, %v2253
      %v2492 = vmax.f32 %v1919, %v2255
      %v2493 = vmax.f32 %v1923, %v2259
      %v2494 = vmax.f32 %v1925, %v2261
      %v2495 = vmax.f32 %v1929, %v2265
      %v2496 = vmax.f32 %v1931, %v2267
      %v2497 = vmax.f32 %v1935, %v2271
      %v2498 = vmax.f32 %v1937, %v2273
      %v2499 = vmax.f32 %v1941, %v2277
      %v2500 = vmax.f32 %v1943, %v2279
      %v2501 = vmax.f32 %v1947, %v2283
      %v2502 = vmax.f32 %v1949, %v2285
      %v2503 = vmax.f32 %v1953, %v2289
      %v2504 = vmax.f32 %v1955, %v2291
      %v2505 = vmax.f32 %v1959, %v2295
      %v2506 = vmax.f32 %v1961, %v2297
      %v2507 = vmax.f32 %v1965, %v2301
      %v2508 = vmax.f32 %v1967, %v2303
      %v2509 = vmax.f32 %v1971, %v2307
      %v2510 = vmax.f32 %v1973, %v2309
      %v2511 = vmax.f32 %v1977, %v2313
      %v2512 = vmax.f32 %v1979, %v2315
      %v2513 = vmax.f32 %v1983, %v2319
      %v2514 = vmax.f32 %v1985, %v2321
      %v2515 = vmax.f32 %v1989, %v2325
      %v2516 = vmax.f32 %v1991, %v2327
      %v2517 = vmax.f32 %v1995, %v2331
      %v2518 = vmax.f32 %v1997, %v2333
      %v2519 = vmax.f32 %v2001, %v2337
      %v2520 = vmax.f32 %v2003, %v2339
      %v2521 = vmax.f32 %v2007, %v2343
      %v2522 = vmax.f32 %v2009, %v2345
      %v2523 = vmax.f32 %v2013, %v2349
      %v2524 = vmax.f32 %v2015, %v2351
      %v2525 = vmax.f32 %v2019, %v2355
      %v2526 = vmax.f32 %v2021, %v2357
      %v2527 = vmax.f32 %v2025, %v2361
      %v2528 = vmax.f32 %v2027, %v2363
      %v2529 = vmax.f32 %v2031, %v2367
      %v2530 = vmax.f32 %v2033, %v2369
      %v2531 = vmax.f32 %v2037, %v2373
      %v2532 = vmax.f32 %v2039, %v2375
      %v2533 = vmax.f32 %v2043, %v2379
      %v2534 = vmax.f32 %v2045, %v2381
      %v2535 = vmax.f32 %v2049, %v2385
      %v2536 = vmax.f32 %v2051, %v2387
      %v2537 = vmax.f32 %v2055, %v2391
      %v2538 = vmax.f32 %v2057, %v2393
      %v2539 = vmax.f32 %v2061, %v2397
      %v2540 = vmax.f32 %v2063, %v2399
      %v2541 = vmax.f32 %v2067, %v2403
      %v2542 = vmax.f32 %v2069, %v2405
      %v2543 = vmax.f32 %v2073, %v2409
      %v2544 = vmax.f32 %v2075, %v2411
      %v2545 = vmax.f32 %v2079, %v2415
      %v2546 = vmax.f32 %v2081, %v2417
      %v2547 = vmax.f32 %v2085, %v2421
      %v2548 = vmax.f32 %v2087, %v2423
      %v2549 = vmax.f32 %v2091, %v2427
      %v2550 = vmax.f32 %v2093, %v2429
      %v2551 = vmax.f32 %v2097, %v2433
      %v2552 = vmax.f32 %v2099, %v2435
      %v2553 = vmax.f32 %v2103, %v2439
      %v2554 = vmax.f32 %v2105, %v2441
      %v2555 = vmax.f32 %v2443, %v2444
      %v2556 = vmax.f32 %v2445, %v2446
      %v2557 = vmax.f32 %v2447, %v2448
      %v2558 = vmax.f32 %v2449, %v2450
      %v2559 = vmax.f32 %v2451, %v2452
      %v2560 = vmax.f32 %v2453, %v2454
      %v2561 = vmax.f32 %v2455, %v2456
      %v2562 = vmax.f32 %v2457, %v2458
      %v2563 = vmax.f32 %v2459, %v2460
      %v2564 = vmax.f32 %v2461, %v2462
      %v2565 = vmax.f32 %v2463, %v2464
      %v2566 = vmax.f32 %v2465, %v2466
      %v2567 = vmax.f32 %v2467, %v2468
      %v2568 = vmax.f32 %v2469, %v2470
      %v2569 = vmax.f32 %v2471, %v2472
      %v2570 = vmax.f32 %v2473, %v2474
      %v2571 = vmax.f32 %v2475, %v2476
      %v2572 = vmax.f32 %v2477, %v2478
      %v2573 = vmax.f32 %v2479, %v2480
      %v2574 = vmax.f32 %v2481, %v2482
      %v2575 = vmax.f32 %v2483, %v2484
      %v2576 = vmax.f32 %v2485, %v2486
      %v2577 = vmax.f32 %v2487, %v2488
      %v2578 = vmax.f32 %v2489, %v2490
      %v2579 = vmax.f32 %v2491, %v2492
      %v2580 = vmax.f32 %v2493, %v2494
      %v2581 = vmax.f32 %v2495, %v2496
      %v2582 = vmax.f32 %v2497, %v2498
      %v2583 = vmax.f32 %v2499, %v2500
      %v2584 = vmax.f32 %v2501, %v2502
      %v2585 = vmax.f32 %v2503, %v2504
      %v2586 = vmax.f32 %v2505, %v2506
      %v2587 = vmax.f32 %v2507, %v2508
      %v2588 = vmax.f32 %v2509, %v2510
      %v2589 = vmax.f32 %v2511, %v2512
      %v2590 = vmax.f32 %v2513, %v2514
      %v2591 = vmax.f32 %v2515, %v2516
      %v2592 = vmax.f32 %v2517, %v2518
      %v2593 = vmax.f32 %v2519, %v2520
      %v2594 = vmax.f32 %v2521, %v2522
      %v2595 = vmax.f32 %v2523, %v2524
      %v2596 = vmax.f32 %v2525, %v2526
      %v2597 = vmax.f32 %v2527, %v2528
      %v2598 = vmax.f32 %v2529, %v2530
      %v2599 = vmax.f32 %v2531, %v2532
      %v2600 = vmax.f32 %v2533, %v2534
      %v2601 = vmax.f32 %v2535, %v2536
      %v2602 = vmax.f32 %v2537, %v2538
      %v2603 = vmax.f32 %v2539, %v2540
      %v2604 = vmax.f32 %v2541, %v2542
      %v2605 = vmax.f32 %v2543, %v2544
      %v2606 = vmax.f32 %v2545, %v2546
      %v2607 = vmax.f32 %v2547, %v2548
      %v2608 = vmax.f32 %v2549, %v2550
      %v2609 = vmax.f32 %v2551, %v2552
      %v2610 = vmax.f32 %v2553, %v2554
      %v2611 = vld [vmem:[%s2] sm:$0x1]
      %v2613 = vlaneseq
      %v2614 = vshrl.u32 %v2613, 7
      %v2615 = vsub.s32 0, %v2614
      %v2616 = vrot.slane %v2611, %v2615
      %v2618 = vadd.f32 %v2555, %v2616
      %v2619 = vadd.f32 %v2556, %v2616
      %v2620 = vadd.f32 %v2557, %v2616
      %v2621 = vadd.f32 %v2558, %v2616
      %v2622 = vadd.f32 %v2559, %v2616
      %v2623 = vadd.f32 %v2560, %v2616
      %v2624 = vadd.f32 %v2561, %v2616
      %v2625 = vadd.f32 %v2562, %v2616
      %v2626 = vadd.f32 %v2563, %v2616
      %v2627 = vadd.f32 %v2564, %v2616
      %v2628 = vadd.f32 %v2565, %v2616
      %v2629 = vadd.f32 %v2566, %v2616
      %v2630 = vadd.f32 %v2567, %v2616
      %v2631 = vadd.f32 %v2568, %v2616
      %v2632 = vadd.f32 %v2569, %v2616
      %v2633 = vadd.f32 %v2570, %v2616
      %v2634 = vadd.f32 %v2571, %v2616
      %v2635 = vadd.f32 %v2572, %v2616
      %v2636 = vadd.f32 %v2573, %v2616
      %v2637 = vadd.f32 %v2574, %v2616
      %v2638 = vadd.f32 %v2575, %v2616
      %v2639 = vadd.f32 %v2576, %v2616
      %v2640 = vadd.f32 %v2577, %v2616
      %v2641 = vadd.f32 %v2578, %v2616
      %v2642 = vadd.f32 %v2579, %v2616
      %v2643 = vadd.f32 %v2580, %v2616
      %v2644 = vadd.f32 %v2581, %v2616
      %v2645 = vadd.f32 %v2582, %v2616
      %v2646 = vadd.f32 %v2583, %v2616
      %v2647 = vadd.f32 %v2584, %v2616
      %v2648 = vadd.f32 %v2585, %v2616
      %v2649 = vadd.f32 %v2586, %v2616
      %v2650 = vadd.f32 %v2587, %v2616
      %v2651 = vadd.f32 %v2588, %v2616
      %v2652 = vadd.f32 %v2589, %v2616
      %v2653 = vadd.f32 %v2590, %v2616
      %v2654 = vadd.f32 %v2591, %v2616
      %v2655 = vadd.f32 %v2592, %v2616
      %v2656 = vadd.f32 %v2593, %v2616
      %v2657 = vadd.f32 %v2594, %v2616
      %v2658 = vadd.f32 %v2595, %v2616
      %v2659 = vadd.f32 %v2596, %v2616
      %v2660 = vadd.f32 %v2597, %v2616
      %v2661 = vadd.f32 %v2598, %v2616
      %v2662 = vadd.f32 %v2599, %v2616
      %v2663 = vadd.f32 %v2600, %v2616
      %v2664 = vadd.f32 %v2601, %v2616
      %v2665 = vadd.f32 %v2602, %v2616
      %v2666 = vadd.f32 %v2603, %v2616
      %v2667 = vadd.f32 %v2604, %v2616
      %v2668 = vadd.f32 %v2605, %v2616
      %v2669 = vadd.f32 %v2606, %v2616
      %v2670 = vadd.f32 %v2607, %v2616
      %v2671 = vadd.f32 %v2608, %v2616
      %v2672 = vadd.f32 %v2609, %v2616
      %v2673 = vadd.f32 %v2610, %v2616
      %v2674 = vmax.f32 %v2618, 0.0
      %v2675 = vmax.f32 %v2619, 0.0
      %v2676 = vmax.f32 %v2620, 0.0
      %v2677 = vmax.f32 %v2621, 0.0
      %v2678 = vmax.f32 %v2622, 0.0
      %v2679 = vmax.f32 %v2623, 0.0
      %v2680 = vmax.f32 %v2624, 0.0
      %v2681 = vmax.f32 %v2625, 0.0
      %v2682 = vmax.f32 %v2626, 0.0
      %v2683 = vmax.f32 %v2627, 0.0
      %v2684 = vmax.f32 %v2628, 0.0
      %v2685 = vmax.f32 %v2629, 0.0
      %v2686 = vmax.f32 %v2630, 0.0
      %v2687 = vmax.f32 %v2631, 0.0
      %v2688 = vmax.f32 %v2632, 0.0
      %v2689 = vmax.f32 %v2633, 0.0
      %v2690 = vmax.f32 %v2634, 0.0
      %v2691 = vmax.f32 %v2635, 0.0
      %v2692 = vmax.f32 %v2636, 0.0
      %v2693 = vmax.f32 %v2637, 0.0
      %v2694 = vmax.f32 %v2638, 0.0
      %v2695 = vmax.f32 %v2639, 0.0
      %v2696 = vmax.f32 %v2640, 0.0
      %v2697 = vmax.f32 %v2641, 0.0
      %v2698 = vmax.f32 %v2642, 0.0
      %v2699 = vmax.f32 %v2643, 0.0
      %v2700 = vmax.f32 %v2644, 0.0
      %v2701 = vmax.f32 %v2645, 0.0
      %v2702 = vmax.f32 %v2646, 0.0
      %v2703 = vmax.f32 %v2647, 0.0
      %v2704 = vmax.f32 %v2648, 0.0
      %v2705 = vmax.f32 %v2649, 0.0
      %v2706 = vmax.f32 %v2650, 0.0
      %v2707 = vmax.f32 %v2651, 0.0
      %v2708 = vmax.f32 %v2652, 0.0
      %v2709 = vmax.f32 %v2653, 0.0
      %v2710 = vmax.f32 %v2654, 0.0
      %v2711 = vmax.f32 %v2655, 0.0
      %v2712 = vmax.f32 %v2656, 0.0
      %v2713 = vmax.f32 %v2657, 0.0
      %v2714 = vmax.f32 %v2658, 0.0
      %v2715 = vmax.f32 %v2659, 0.0
      %v2716 = vmax.f32 %v2660, 0.0
      %v2717 = vmax.f32 %v2661, 0.0
      %v2718 = vmax.f32 %v2662, 0.0
      %v2719 = vmax.f32 %v2663, 0.0
      %v2720 = vmax.f32 %v2664, 0.0
      %v2721 = vmax.f32 %v2665, 0.0
      %v2722 = vmax.f32 %v2666, 0.0
      %v2723 = vmax.f32 %v2667, 0.0
      %v2724 = vmax.f32 %v2668, 0.0
      %v2725 = vmax.f32 %v2669, 0.0
      %v2726 = vmax.f32 %v2670, 0.0
      %v2727 = vmax.f32 %v2671, 0.0
      %v2728 = vmax.f32 %v2672, 0.0
      %v2729 = vmax.f32 %v2673, 0.0
      %v2730 = vld [vmem:[%s3] sm:$0xff]
      %v2731 = vld [vmem:[%s3 + $0x8] sm:$0xff]
      %v2732 = vld [vmem:[%s3 + $0x10] sm:$0xff]
      %v2733 = vld [vmem:[%s3 + $0x18] sm:$0xff]
      %v2734 = vld [vmem:[%s3 + $0x20] sm:$0xff]
      %v2735 = vld [vmem:[%s3 + $0x28] sm:$0xff]
      %v2736 = vld [vmem:[%s3 + $0x30] sm:$0xff]
      %v2737 = vld [vmem:[%s3 + $0x38] sm:$0xff]
      %v2738 = vld [vmem:[%s3 + $0x40] sm:$0xff]
      %v2739 = vld [vmem:[%s3 + $0x48] sm:$0xff]
      %v2740 = vld [vmem:[%s3 + $0x50] sm:$0xff]
      %v2741 = vld [vmem:[%s3 + $0x58] sm:$0xff]
      %v2742 = vld [vmem:[%s3 + $0x60] sm:$0xff]
      %v2743 = vld [vmem:[%s3 + $0x68] sm:$0xff]
      %v2744 = vld [vmem:[%s3 + $0x70] sm:$0xff]
      %v2745 = vld [vmem:[%s3 + $0x78] sm:$0xff]
      %v2746 = vld [vmem:[%s3 + $0x80] sm:$0xff]
      %v2747 = vld [vmem:[%s3 + $0x88] sm:$0xff]
      %v2748 = vld [vmem:[%s3 + $0x90] sm:$0xff]
      %v2749 = vld [vmem:[%s3 + $0x98] sm:$0xff]
      %v2750 = vld [vmem:[%s3 + $0xa0] sm:$0xff]
      %v2751 = vld [vmem:[%s3 + $0xa8] sm:$0xff]
      %v2752 = vld [vmem:[%s3 + $0xb0] sm:$0xff]
      %v2753 = vld [vmem:[%s3 + $0xb8] sm:$0xff]
      %v2754 = vld [vmem:[%s3 + $0xc0] sm:$0xff]
      %v2755 = vld [vmem:[%s3 + $0xc8] sm:$0xff]
      %v2756 = vld [vmem:[%s3 + $0xd0] sm:$0xff]
      %v2757 = vld [vmem:[%s3 + $0xd8] sm:$0xff]
      %v2758 = vld [vmem:[%s3 + $0xe0] sm:$0xff]
      %v2759 = vld [vmem:[%s3 + $0xe8] sm:$0xff]
      %v2760 = vld [vmem:[%s3 + $0xf0] sm:$0xff]
      %v2761 = vld [vmem:[%s3 + $0xf8] sm:$0xff]
      %v2762 = vld [vmem:[%s3 + $0x100] sm:$0xff]
      %v2763 = vld [vmem:[%s3 + $0x108] sm:$0xff]
      %v2764 = vld [vmem:[%s3 + $0x110] sm:$0xff]
      %v2765 = vld [vmem:[%s3 + $0x118] sm:$0xff]
      %v2766 = vld [vmem:[%s3 + $0x120] sm:$0xff]
      %v2767 = vld [vmem:[%s3 + $0x128] sm:$0xff]
      %v2768 = vld [vmem:[%s3 + $0x130] sm:$0xff]
      %v2769 = vld [vmem:[%s3 + $0x138] sm:$0xff]
      %v2770 = vld [vmem:[%s3 + $0x140] sm:$0xff]
      %v2771 = vld [vmem:[%s3 + $0x148] sm:$0xff]
      %v2772 = vld [vmem:[%s3 + $0x150] sm:$0xff]
      %v2773 = vld [vmem:[%s3 + $0x158] sm:$0xff]
      %v2774 = vld [vmem:[%s3 + $0x160] sm:$0xff]
      %v2775 = vld [vmem:[%s3 + $0x168] sm:$0xff]
      %v2776 = vld [vmem:[%s3 + $0x170] sm:$0xff]
      %v2777 = vld [vmem:[%s3 + $0x178] sm:$0xff]
      %v2778 = vld [vmem:[%s3 + $0x180] sm:$0xff]
      %v2779 = vld [vmem:[%s3 + $0x188] sm:$0xff]
      %v2780 = vld [vmem:[%s3 + $0x190] sm:$0xff]
      %v2781 = vld [vmem:[%s3 + $0x198] sm:$0xff]
      %v2782 = vld [vmem:[%s3 + $0x1a0] sm:$0xff]
      %v2783 = vld [vmem:[%s3 + $0x1a8] sm:$0xff]
      %v2784 = vld [vmem:[%s3 + $0x1b0] sm:$0xff]
      %v2785 = vld [vmem:[%s3 + $0x1b8] sm:$0xff]
      %v2786 = vld [vmem:[%s3 + $0x1c0] sm:$0xff]
      %v2787 = vld [vmem:[%s3 + $0x1c8] sm:$0xff]
      %v2788 = vld [vmem:[%s3 + $0x1d0] sm:$0xff]
      %v2789 = vld [vmem:[%s3 + $0x1d8] sm:$0xff]
      %v2790 = vld [vmem:[%s3 + $0x1e0] sm:$0xff]
      %v2791 = vld [vmem:[%s3 + $0x1e8] sm:$0xff]
      %v2792 = vld [vmem:[%s3 + $0x1f0] sm:$0xff]
      %v2793 = vld [vmem:[%s3 + $0x1f8] sm:$0xff]
      %v2794 = vld [vmem:[%s3 + $0x200] sm:$0xff]
      %v2795 = vld [vmem:[%s3 + $0x208] sm:$0xff]
      %v2796 = vld [vmem:[%s3 + $0x210] sm:$0xff]
      %v2797 = vld [vmem:[%s3 + $0x218] sm:$0xff]
      %v2798 = vld [vmem:[%s3 + $0x220] sm:$0xff]
      %v2799 = vld [vmem:[%s3 + $0x228] sm:$0xff]
      %v2800 = vld [vmem:[%s3 + $0x230] sm:$0xff]
      %v2801 = vld [vmem:[%s3 + $0x238] sm:$0xff]
      %v2802 = vld [vmem:[%s3 + $0x240] sm:$0xff]
      %v2803 = vld [vmem:[%s3 + $0x248] sm:$0xff]
      %v2804 = vld [vmem:[%s3 + $0x250] sm:$0xff]
      %v2805 = vld [vmem:[%s3 + $0x258] sm:$0xff]
      %v2806 = vld [vmem:[%s3 + $0x260] sm:$0xff]
      %v2807 = vld [vmem:[%s3 + $0x268] sm:$0xff]
      %v2808 = vld [vmem:[%s3 + $0x270] sm:$0xff]
      %v2809 = vld [vmem:[%s3 + $0x278] sm:$0xff]
      %v2810 = vld [vmem:[%s3 + $0x280] sm:$0xff]
      %v2811 = vld [vmem:[%s3 + $0x288] sm:$0xff]
      %v2812 = vld [vmem:[%s3 + $0x290] sm:$0xff]
      %v2813 = vld [vmem:[%s3 + $0x298] sm:$0xff]
      %v2814 = vld [vmem:[%s3 + $0x2a0] sm:$0xff]
      %v2815 = vld [vmem:[%s3 + $0x2a8] sm:$0xff]
      %v2816 = vld [vmem:[%s3 + $0x2b0] sm:$0xff]
      %v2817 = vld [vmem:[%s3 + $0x2b8] sm:$0xff]
      %v2818 = vld [vmem:[%s3 + $0x2c0] sm:$0xff]
      %v2819 = vld [vmem:[%s3 + $0x2c8] sm:$0xff]
      %v2820 = vld [vmem:[%s3 + $0x2d0] sm:$0xff]
      %v2821 = vld [vmem:[%s3 + $0x2d8] sm:$0xff]
      %v2822 = vld [vmem:[%s3 + $0x2e0] sm:$0xff]
      %v2823 = vld [vmem:[%s3 + $0x2e8] sm:$0xff]
      %v2824 = vld [vmem:[%s3 + $0x2f0] sm:$0xff]
      %v2825 = vld [vmem:[%s3 + $0x2f8] sm:$0xff]
      %2826 = vmatprep.subr.mxu0 %v2731
      %2827 = vmatpush1.msra.mxu0 %v2730
      %2828 = vmatprep.subr.mxu0 %v2733
      %2829 = vmatpush1.msra.mxu0 %v2732
      %2830 = vmatprep.subr.mxu0 %v2735
      %2831 = vmatpush1.msra.mxu0 %v2734
      %2832 = vmatprep.subr.mxu0 %v2737
      %2833 = vmatpush1.msra.mxu0 %v2736
      %2834 = vmatprep.subr.mxu0 %v2739
      %2835 = vmatpush1.msra.mxu0 %v2738
      %2836 = vmatprep.subr.mxu0 %v2741
      %2837 = vmatpush1.msra.mxu0 %v2740
      %2838 = vmatprep.subr.mxu0 %v2743
      %2839 = vmatpush1.msra.mxu0 %v2742
      %2840 = vmatprep.subr.mxu0 %v2745
      %2841 = vmatpush1.msra.mxu0 %v2744
      %2842 = vmatprep.subr.mxu0 %v2747
      %2843 = vmatpush1.msra.mxu0 %v2746
      %2844 = vmatprep.subr.mxu0 %v2749
      %2845 = vmatpush1.msra.mxu0 %v2748
      %2846 = vmatprep.subr.mxu0 %v2751
      %2847 = vmatpush1.msra.mxu0 %v2750
      %2848 = vmatprep.subr.mxu0 %v2753
      %2849 = vmatpush1.msra.mxu0 %v2752
      %2850 = vmatprep.subr.mxu0 %v2755
      %2851 = vmatpush1.msra.mxu0 %v2754
      %2852 = vmatprep.subr.mxu0 %v2757
      %2853 = vmatpush1.msra.mxu0 %v2756
      %2854 = vmatprep.subr.mxu0 %v2759
      %2855 = vmatpush1.msra.mxu0 %v2758
      %2856 = vmatprep.subr.mxu0 %v2761
      %2857 = vmatpush1.msra.mxu0 %v2760
      %2858 = vmatprep.subr.mxu0 %v2763
      %2859 = vmatpush1.msra.mxu0 %v2762
      %2860 = vmatprep.subr.mxu0 %v2765
      %2861 = vmatpush1.msra.mxu0 %v2764
      %2862 = vmatprep.subr.mxu0 %v2767
      %2863 = vmatpush1.msra.mxu0 %v2766
      %2864 = vmatprep.subr.mxu0 %v2769
      %2865 = vmatpush1.msra.mxu0 %v2768
      %2866 = vmatprep.subr.mxu0 %v2771
      %2867 = vmatpush1.msra.mxu0 %v2770
      %2868 = vmatprep.subr.mxu0 %v2773
      %2869 = vmatpush1.msra.mxu0 %v2772
      %2870 = vmatprep.subr.mxu0 %v2775
      %2871 = vmatpush1.msra.mxu0 %v2774
      %2872 = vmatprep.subr.mxu0 %v2777
      %2873 = vmatpush1.msra.mxu0 %v2776
      %2874 = vmatprep.subr.mxu0 %v2779
      %2875 = vmatpush1.msra.mxu0 %v2778
      %2876 = vmatprep.subr.mxu0 %v2781
      %2877 = vmatpush1.msra.mxu0 %v2780
      %2878 = vmatprep.subr.mxu0 %v2783
      %2879 = vmatpush1.msra.mxu0 %v2782
      %2880 = vmatprep.subr.mxu0 %v2785
      %2881 = vmatpush1.msra.mxu0 %v2784
      %2882 = vmatprep.subr.mxu0 %v2787
      %2883 = vmatpush1.msra.mxu0 %v2786
      %2884 = vmatprep.subr.mxu0 %v2789
      %2885 = vmatpush1.msra.mxu0 %v2788
      %2886 = vmatprep.subr.mxu0 %v2791
      %2887 = vmatpush1.msra.mxu0 %v2790
      %2888 = vmatprep.subr.mxu0 %v2793
      %2889 = vmatpush1.msra.mxu0 %v2792
      %2890 = vmatprep.mubr.f32.mxu0 %v2674
      %2891 = vmatmul.mubr.f32.gmra.mrb[0].mxu0 0.0
      %v2892 = vpop.f32.mrb[0].mxu0
      %v2893 = vadd.f32 0.0, %v2892
      %v2894 = vpop.f32.mrb[0].mxu0
      %v2895 = vadd.f32 0.0, %v2894
      %2896 = vmatprep.mubr.f32.mxu0 %v2675
      %2897 = vmatmul.mubr.f32.gmra.mrb[0].mxu0 0.0
      %v2898 = vpop.f32.mrb[0].mxu0
      %v2899 = vadd.f32 0.0, %v2898
      %v2900 = vpop.f32.mrb[0].mxu0
      %v2901 = vadd.f32 0.0, %v2900
      %2902 = vmatprep.mubr.f32.mxu0 %v2676
      %2903 = vmatmul.mubr.f32.gmra.mrb[0].mxu0 0.0
      %v2904 = vpop.f32.mrb[0].mxu0
      %v2905 = vadd.f32 0.0, %v2904
      %v2906 = vpop.f32.mrb[0].mxu0
      %v2907 = vadd.f32 0.0, %v2906
      %2908 = vmatprep.mubr.f32.mxu0 %v2677
      %2909 = vmatmul.mubr.f32.gmra.mrb[0].mxu0 0.0
      %v2910 = vpop.f32.mrb[0].mxu0
      %v2911 = vadd.f32 0.0, %v2910
      %v2912 = vpop.f32.mrb[0].mxu0
      %v2913 = vadd.f32 0.0, %v2912
      %2914 = vmatprep.mubr.f32.mxu0 %v2678
      %2915 = vmatmul.mubr.f32.gmra.mrb[0].mxu0 %v2702
      %v2916 = vpop.f32.mrb[0].mxu0
      %v2917 = vadd.f32 0.0, %v2916
      %v2918 = vpop.f32.mrb[0].mxu0
      %v2919 = vadd.f32 0.0, %v2918
      %2920 = vmatprep.mubr.f32.mxu0 %v2679
      %2921 = vmatmul.mubr.f32.gmra.mrb[0].mxu0 %v2703
      %v2922 = vpop.f32.mrb[0].mxu0
      %v2923 = vadd.f32 0.0, %v2922
      %v2924 = vpop.f32.mrb[0].mxu0
      %v2925 = vadd.f32 0.0, %v2924
      %2926 = vmatprep.mubr.f32.mxu0 %v2680
      %2927 = vmatmul.mubr.f32.gmra.mrb[0].mxu0 %v2704
      %v2928 = vpop.f32.mrb[0].mxu0
      %v2929 = vadd.f32 0.0, %v2928
      %v2930 = vpop.f32.mrb[0].mxu0
      %v2931 = vadd.f32 0.0, %v2930
      %2932 = vmatprep.mubr.f32.mxu0 %v2681
      %2933 = vmatmul.mubr.f32.gmra.mrb[0].mxu0 %v2705
      %v2934 = vpop.f32.mrb[0].mxu0
      %v2935 = vadd.f32 0.0, %v2934
      %v2936 = vpop.f32.mrb[0].mxu0
      %v2937 = vadd.f32 0.0, %v2936
      %2938 = vmatprep.mubr.f32.mxu0 %v2682
      %2939 = vmatmul.mubr.f32.gmra.mrb[0].mxu0 %v2706
      %v2940 = vpop.f32.mrb[0].mxu0
      %v2941 = vadd.f32 0.0, %v2940
      %v2942 = vpop.f32.mrb[0].mxu0
      %v2943 = vadd.f32 0.0, %v2942
      %2944 = vmatprep.mubr.f32.mxu0 %v2683
      %2945 = vmatmul.mubr.f32.gmra.mrb[0].mxu0 %v2707
      %v2946 = vpop.f32.mrb[0].mxu0
      %v2947 = vadd.f32 0.0, %v2946
      %v2948 = vpop.f32.mrb[0].mxu0
      %v2949 = vadd.f32 0.0, %v2948
      %2950 = vmatprep.mubr.f32.mxu0 %v2684
      %2951 = vmatmul.mubr.f32.gmra.mrb[0].mxu0 %v2708
      %v2952 = vpop.f32.mrb[0].mxu0
      %v2953 = vadd.f32 0.0, %v2952
      %v2954 = vpop.f32.mrb[0].mxu0
      %v2955 = vadd.f32 0.0, %v2954
      %2956 = vmatprep.mubr.f32.mxu0 %v2685
      %2957 = vmatmul.mubr.f32.gmra.mrb[0].mxu0 %v2709
      %v2958 = vpop.f32.mrb[0].mxu0
      %v2959 = vadd.f32 0.0, %v2958
      %v2960 = vpop.f32.mrb[0].mxu0
      %v2961 = vadd.f32 0.0, %v2960
      %2962 = vmatprep.mubr.f32.mxu0 %v2686
      %2963 = vmatmul.mubr.f32.gmra.mrb[0].mxu0 %v2710
      %v2964 = vpop.f32.mrb[0].mxu0
      %v2965 = vadd.f32 0.0, %v2964
      %v2966 = vpop.f32.mrb[0].mxu0
      %v2967 = vadd.f32 0.0, %v2966
      %2968 = vmatprep.mubr.f32.mxu0 %v2687
      %2969 = vmatmul.mubr.f32.gmra.mrb[0].mxu0 %v2711
      %v2970 = vpop.f32.mrb[0].mxu0
      %v2971 = vadd.f32 0.0, %v2970
      %v2972 = vpop.f32.mrb[0].mxu0
      %v2973 = vadd.f32 0.0, %v2972
      %2974 = vmatprep.mubr.f32.mxu0 %v2688
      %2975 = vmatmul.mubr.f32.gmra.mrb[0].mxu0 %v2712
      %v2976 = vpop.f32.mrb[0].mxu0
      %v2977 = vadd.f32 0.0, %v2976
      %v2978 = vpop.f32.mrb[0].mxu0
      %v2979 = vadd.f32 0.0, %v2978
      %2980 = vmatprep.mubr.f32.mxu0 %v2689
      %2981 = vmatmul.mubr.f32.gmra.mrb[0].mxu0 %v2713
      %v2982 = vpop.f32.mrb[0].mxu0
      %v2983 = vadd.f32 0.0, %v2982
      %v2984 = vpop.f32.mrb[0].mxu0
      %v2985 = vadd.f32 0.0, %v2984
      %2986 = vmatprep.mubr.f32.mxu0 %v2690
      %2987 = vmatmul.mubr.f32.gmra.mrb[0].mxu0 %v2714
      %v2988 = vpop.f32.mrb[0].mxu0
      %v2989 = vadd.f32 0.0, %v2988
      %v2990 = vpop.f32.mrb[0].mxu0
      %v2991 = vadd.f32 0.0, %v2990
      %2992 = vmatprep.mubr.f32.mxu0 %v2691
      %2993 = vmatmul.mubr.f32.gmra.mrb[0].mxu0 %v2715
      %v2994 = vpop.f32.mrb[0].mxu0
      %v2995 = vadd.f32 0.0, %v2994
      %v2996 = vpop.f32.mrb[0].mxu0
      %v2997 = vadd.f32 0.0, %v2996
      %2998 = vmatprep.mubr.f32.mxu0 %v2692
      %2999 = vmatmul.mubr.f32.gmra.mrb[0].mxu0 %v2716
      %v3000 = vpop.f32.mrb[0].mxu0
      %v3001 = vadd.f32 0.0, %v3000
      %v3002 = vpop.f32.mrb[0].mxu0
      %v3003 = vadd.f32 0.0, %v3002
      %3004 = vmatprep.mubr.f32.mxu0 %v2693
      %3005 = vmatmul.mubr.f32.gmra.mrb[0].mxu0 %v2717
      %v3006 = vpop.f32.mrb[0].mxu0
      %v3007 = vadd.f32 0.0, %v3006
      %v3008 = vpop.f32.mrb[0].mxu0
      %v3009 = vadd.f32 0.0, %v3008
      %3010 = vmatprep.mubr.f32.mxu0 %v2694
      %3011 = vmatmul.mubr.f32.gmra.mrb[0].mxu0 %v2718
      %v3012 = vpop.f32.mrb[0].mxu0
      %v3013 = vadd.f32 0.0, %v3012
      %v3014 = vpop.f32.mrb[0].mxu0
      %v3015 = vadd.f32 0.0, %v3014
      %3016 = vmatprep.mubr.f32.mxu0 %v2695
      %3017 = vmatmul.mubr.f32.gmra.mrb[0].mxu0 %v2719
      %v3018 = vpop.f32.mrb[0].mxu0
      %v3019 = vadd.f32 0.0, %v3018
      %v3020 = vpop.f32.mrb[0].mxu0
      %v3021 = vadd.f32 0.0, %v3020
      %3022 = vmatprep.mubr.f32.mxu0 %v2696
      %3023 = vmatmul.mubr.f32.gmra.mrb[0].mxu0 %v2720
      %v3024 = vpop.f32.mrb[0].mxu0
      %v3025 = vadd.f32 0.0, %v3024
      %v3026 = vpop.f32.mrb[0].mxu0
      %v3027 = vadd.f32 0.0, %v3026
      %3028 = vmatprep.mubr.f32.mxu0 %v2697
      %3029 = vmatmul.mubr.f32.gmra.mrb[0].mxu0 %v2721
      %v3030 = vpop.f32.mrb[0].mxu0
      %v3031 = vadd.f32 0.0, %v3030
      %v3032 = vpop.f32.mrb[0].mxu0
      %v3033 = vadd.f32 0.0, %v3032
      %3034 = vmatprep.mubr.f32.mxu0 %v2698
      %3035 = vmatmul.mubr.f32.gmra.mrb[0].mxu0 %v2722
      %v3036 = vpop.f32.mrb[0].mxu0
      %v3037 = vadd.f32 0.0, %v3036
      %v3038 = vpop.f32.mrb[0].mxu0
      %v3039 = vadd.f32 0.0, %v3038
      %3040 = vmatprep.mubr.f32.mxu0 %v2699
      %3041 = vmatmul.mubr.f32.gmra.mrb[0].mxu0 %v2723
      %v3042 = vpop.f32.mrb[0].mxu0
      %v3043 = vadd.f32 0.0, %v3042
      %v3044 = vpop.f32.mrb[0].mxu0
      %v3045 = vadd.f32 0.0, %v3044
      %3046 = vmatprep.mubr.f32.mxu0 %v2700
      %3047 = vmatmul.mubr.f32.gmra.mrb[0].mxu0 %v2724
      %v3048 = vpop.f32.mrb[0].mxu0
      %v3049 = vadd.f32 0.0, %v3048
      %v3050 = vpop.f32.mrb[0].mxu0
      %v3051 = vadd.f32 0.0, %v3050
      %3052 = vmatprep.mubr.f32.mxu0 %v2701
      %3053 = vmatmul.mubr.f32.gmra.mrb[0].mxu0 %v2725
      %v3054 = vpop.f32.mrb[0].mxu0
      %v3055 = vadd.f32 0.0, %v3054
      %v3056 = vpop.f32.mrb[0].mxu0
      %v3057 = vadd.f32 0.0, %v3056
      %3058 = vmatprep.mubr.f32.mxu0 %v2702
      %3059 = vmatmul.mubr.f32.gmra.mrb[0].mxu0 %v2674
      %v3060 = vpop.f32.mrb[0].mxu0
      %v3061 = vadd.f32 0.0, %v3060
      %v3062 = vpop.f32.mrb[0].mxu0
      %v3063 = vadd.f32 0.0, %v3062
      %3064 = vmatprep.mubr.f32.mxu0 %v2703
      %3065 = vmatmul.mubr.f32.gmra.mrb[0].mxu0 %v2675
      %v3066 = vpop.f32.mrb[0].mxu0
      %v3067 = vadd.f32 0.0, %v3066
      %v3068 = vpop.f32.mrb[0].mxu0
      %v3069 = vadd.f32 0.0, %v3068
      %3070 = vmatprep.mubr.f32.mxu0 %v2704
      %3071 = vmatmul.mubr.f32.gmra.mrb[0].mxu0 %v2676
      %v3072 = vpop.f32.mrb[0].mxu0
      %v3073 = vadd.f32 0.0, %v3072
      %v3074 = vpop.f32.mrb[0].mxu0
      %v3075 = vadd.f32 0.0, %v3074
      %3076 = vmatprep.mubr.f32.mxu0 %v2705
      %3077 = vmatmul.mubr.f32.gmra.mrb[0].mxu0 %v2677
      %v3078 = vpop.f32.mrb[0].mxu0
      %v3079 = vadd.f32 0.0, %v3078
      %v3080 = vpop.f32.mrb[0].mxu0
      %v3081 = vadd.f32 0.0, %v3080
      %3082 = vmatprep.mubr.f32.mxu0 %v2706
      %3083 = vmatmul.mubr.f32.gmra.mrb[0].mxu0 %v2678
      %v3084 = vpop.f32.mrb[0].mxu0
      %v3085 = vadd.f32 0.0, %v3084
      %v3086 = vpop.f32.mrb[0].mxu0
      %v3087 = vadd.f32 0.0, %v3086
      %3088 = vmatprep.mubr.f32.mxu0 %v2707
      %3089 = vmatmul.mubr.f32.gmra.mrb[0].mxu0 %v2679
      %v3090 = vpop.f32.mrb[0].mxu0
      %v3091 = vadd.f32 0.0, %v3090
      %v3092 = vpop.f32.mrb[0].mxu0
      %v3093 = vadd.f32 0.0, %v3092
      %3094 = vmatprep.mubr.f32.mxu0 %v2708
      %3095 = vmatmul.mubr.f32.gmra.mrb[0].mxu0 %v2680
      %v3096 = vpop.f32.mrb[0].mxu0
      %v3097 = vadd.f32 0.0, %v3096
      %v3098 = vpop.f32.mrb[0].mxu0
      %v3099 = vadd.f32 0.0, %v3098
      %3100 = vmatprep.mubr.f32.mxu0 %v2709
      %3101 = vmatmul.mubr.f32.gmra.mrb[0].mxu0 %v2681
      %v3102 = vpop.f32.mrb[0].mxu0
      %v3103 = vadd.f32 0.0, %v3102
      %v3104 = vpop.f32.mrb[0].mxu0
      %v3105 = vadd.f32 0.0, %v3104
      %3106 = vmatprep.mubr.f32.mxu0 %v2710
      %3107 = vmatmul.mubr.f32.gmra.mrb[0].mxu0 %v2682
      %v3108 = vpop.f32.mrb[0].mxu0
      %v3109 = vadd.f32 0.0, %v3108
      %v3110 = vpop.f32.mrb[0].mxu0
      %v3111 = vadd.f32 0.0, %v3110
      %3112 = vmatprep.mubr.f32.mxu0 %v2711
      %3113 = vmatmul.mubr.f32.gmra.mrb[0].mxu0 %v2683
      %v3114 = vpop.f32.mrb[0].mxu0
      %v3115 = vadd.f32 0.0, %v3114
      %v3116 = vpop.f32.mrb[0].mxu0
      %v3117 = vadd.f32 0.0, %v3116
      %3118 = vmatprep.mubr.f32.mxu0 %v2712
      %3119 = vmatmul.mubr.f32.gmra.mrb[0].mxu0 %v2684
      %v3120 = vpop.f32.mrb[0].mxu0
      %v3121 = vadd.f32 0.0, %v3120
      %v3122 = vpop.f32.mrb[0].mxu0
      %v3123 = vadd.f32 0.0, %v3122
      %3124 = vmatprep.mubr.f32.mxu0 %v2713
      %3125 = vmatmul.mubr.f32.gmra.mrb[0].mxu0 %v2685
      %v3126 = vpop.f32.mrb[0].mxu0
      %v3127 = vadd.f32 0.0, %v3126
      %v3128 = vpop.f32.mrb[0].mxu0
      %v3129 = vadd.f32 0.0, %v3128
      %3130 = vmatprep.mubr.f32.mxu0 %v2714
      %3131 = vmatmul.mubr.f32.gmra.mrb[0].mxu0 %v2686
      %v3132 = vpop.f32.mrb[0].mxu0
      %v3133 = vadd.f32 0.0, %v3132
      %v3134 = vpop.f32.mrb[0].mxu0
      %v3135 = vadd.f32 0.0, %v3134
      %3136 = vmatprep.mubr.f32.mxu0 %v2715
      %3137 = vmatmul.mubr.f32.gmra.mrb[0].mxu0 %v2687
      %v3138 = vpop.f32.mrb[0].mxu0
      %v3139 = vadd.f32 0.0, %v3138
      %v3140 = vpop.f32.mrb[0].mxu0
      %v3141 = vadd.f32 0.0, %v3140
      %3142 = vmatprep.mubr.f32.mxu0 %v2716
      %3143 = vmatmul.mubr.f32.gmra.mrb[0].mxu0 %v2688
      %v3144 = vpop.f32.mrb[0].mxu0
      %v3145 = vadd.f32 0.0, %v3144
      %v3146 = vpop.f32.mrb[0].mxu0
      %v3147 = vadd.f32 0.0, %v3146
      %3148 = vmatprep.mubr.f32.mxu0 %v2717
      %3149 = vmatmul.mubr.f32.gmra.mrb[0].mxu0 %v2689
      %v3150 = vpop.f32.mrb[0].mxu0
      %v3151 = vadd.f32 0.0, %v3150
      %v3152 = vpop.f32.mrb[0].mxu0
      %v3153 = vadd.f32 0.0, %v3152
      %3154 = vmatprep.mubr.f32.mxu0 %v2718
      %3155 = vmatmul.mubr.f32.gmra.mrb[0].mxu0 %v2690
      %v3156 = vpop.f32.mrb[0].mxu0
      %v3157 = vadd.f32 0.0, %v3156
      %v3158 = vpop.f32.mrb[0].mxu0
      %v3159 = vadd.f32 0.0, %v3158
      %3160 = vmatprep.mubr.f32.mxu0 %v2719
      %3161 = vmatmul.mubr.f32.gmra.mrb[0].mxu0 %v2691
      %v3162 = vpop.f32.mrb[0].mxu0
      %v3163 = vadd.f32 0.0, %v3162
      %v3164 = vpop.f32.mrb[0].mxu0
      %v3165 = vadd.f32 0.0, %v3164
      %3166 = vmatprep.mubr.f32.mxu0 %v2720
      %3167 = vmatmul.mubr.f32.gmra.mrb[0].mxu0 %v2692
      %v3168 = vpop.f32.mrb[0].mxu0
      %v3169 = vadd.f32 0.0, %v3168
      %v3170 = vpop.f32.mrb[0].mxu0
      %v3171 = vadd.f32 0.0, %v3170
      %3172 = vmatprep.mubr.f32.mxu0 %v2721
      %3173 = vmatmul.mubr.f32.gmra.mrb[0].mxu0 %v2693
      %v3174 = vpop.f32.mrb[0].mxu0
      %v3175 = vadd.f32 0.0, %v3174
      %v3176 = vpop.f32.mrb[0].mxu0
      %v3177 = vadd.f32 0.0, %v3176
      %3178 = vmatprep.mubr.f32.mxu0 %v2722
      %3179 = vmatmul.mubr.f32.gmra.mrb[0].mxu0 %v2694
      %v3180 = vpop.f32.mrb[0].mxu0
      %v3181 = vadd.f32 0.0, %v3180
      %v3182 = vpop.f32.mrb[0].mxu0
      %v3183 = vadd.f32 0.0, %v3182
      %3184 = vmatprep.mubr.f32.mxu0 %v2723
      %3185 = vmatmul.mubr.f32.gmra.mrb[0].mxu0 %v2695
      %v3186 = vpop.f32.mrb[0].mxu0
      %v3187 = vadd.f32 0.0, %v3186
      %v3188 = vpop.f32.mrb[0].mxu0
      %v3189 = vadd.f32 0.0, %v3188
      %3190 = vmatprep.mubr.f32.mxu0 %v2724
      %3191 = vmatmul.mubr.f32.gmra.mrb[0].mxu0 %v2696
      %v3192 = vpop.f32.mrb[0].mxu0
      %v3193 = vadd.f32 0.0, %v3192
      %v3194 = vpop.f32.mrb[0].mxu0
      %v3195 = vadd.f32 0.0, %v3194
      %3196 = vmatprep.mubr.f32.mxu0 %v2725
      %3197 = vmatmul.mubr.f32.gmra.mrb[0].mxu0 %v2697
      %v3198 = vpop.f32.mrb[0].mxu0
      %v3199 = vadd.f32 0.0, %v3198
      %v3200 = vpop.f32.mrb[0].mxu0
      %v3201 = vadd.f32 0.0, %v3200
      %3202 = vmatprep.mubr.f32.mxu0 %v2726
      %3203 = vmatmul.mubr.f32.gmra.mrb[0].mxu0 %v2698
      %v3204 = vpop.f32.mrb[0].mxu0
      %v3205 = vadd.f32 0.0, %v3204
      %v3206 = vpop.f32.mrb[0].mxu0
      %v3207 = vadd.f32 0.0, %v3206
      %3208 = vmatprep.mubr.f32.mxu0 %v2727
      %3209 = vmatmul.mubr.f32.gmra.mrb[0].mxu0 %v2699
      %v3210 = vpop.f32.mrb[0].mxu0
      %v3211 = vadd.f32 0.0, %v3210
      %v3212 = vpop.f32.mrb[0].mxu0
      %v3213 = vadd.f32 0.0, %v3212
      %3214 = vmatprep.mubr.f32.mxu0 %v2728
      %3215 = vmatmul.mubr.f32.gmra.mrb[0].mxu0 %v2700
      %v3216 = vpop.f32.mrb[0].mxu0
      %v3217 = vadd.f32 0.0, %v3216
      %v3218 = vpop.f32.mrb[0].mxu0
      %v3219 = vadd.f32 0.0, %v3218
      %3220 = vmatprep.mubr.f32.mxu0 %v2729
      %3221 = vmatmul.mubr.f32.gmra.mrb[0].mxu0 %v2701
      %v3222 = vpop.f32.mrb[0].mxu0
      %v3223 = vadd.f32 0.0, %v3222
      %v3224 = vpop.f32.mrb[0].mxu0
      %v3225 = vadd.f32 0.0, %v3224
      %3226 = vdwg.mxu0
      %3227 = vmatprep.subr.mxu0 %v2795
      %3228 = vmatpush1.msra.mxu0 %v2794
      %3229 = vmatprep.subr.mxu0 %v2797
      %3230 = vmatpush1.msra.mxu0 %v2796
      %3231 = vmatprep.subr.mxu0 %v2799
      %3232 = vmatpush1.msra.mxu0 %v2798
      %3233 = vmatprep.subr.mxu0 %v2801
      %3234 = vmatpush1.msra.mxu0 %v2800
      %3235 = vmatprep.subr.mxu0 %v2803
      %3236 = vmatpush1.msra.mxu0 %v2802
      %3237 = vmatprep.subr.mxu0 %v2805
      %3238 = vmatpush1.msra.mxu0 %v2804
      %3239 = vmatprep.subr.mxu0 %v2807
      %3240 = vmatpush1.msra.mxu0 %v2806
      %3241 = vmatprep.subr.mxu0 %v2809
      %3242 = vmatpush1.msra.mxu0 %v2808
      %3243 = vmatprep.subr.mxu0 %v2811
      %3244 = vmatpush1.msra.mxu0 %v2810
      %3245 = vmatprep.subr.mxu0 %v2813
      %3246 = vmatpush1.msra.mxu0 %v2812
      %3247 = vmatprep.subr.mxu0 %v2815
      %3248 = vmatpush1.msra.mxu0 %v2814
      %3249 = vmatprep.subr.mxu0 %v2817
      %3250 = vmatpush1.msra.mxu0 %v2816
      %3251 = vmatprep.subr.mxu0 %v2819
      %3252 = vmatpush1.msra.mxu0 %v2818
      %3253 = vmatprep.subr.mxu0 %v2821
      %3254 = vmatpush1.msra.mxu0 %v2820
      %3255 = vmatprep.subr.mxu0 %v2823
      %3256 = vmatpush1.msra.mxu0 %v2822
      %3257 = vmatprep.subr.mxu0 %v2825
      %3258 = vmatpush1.msra.mxu0 %v2824
      %3259 = vmatprep.subr.mxu0 0.0
      %3260 = vmatpush1.msra.mxu0 0.0
      %3261 = vmatprep.subr.mxu0 0.0
      %3262 = vmatpush1.msra.mxu0 0.0
      %3263 = vmatprep.subr.mxu0 0.0
      %3264 = vmatpush1.msra.mxu0 0.0
      %3265 = vmatprep.subr.mxu0 0.0
      %3266 = vmatpush1.msra.mxu0 0.0
      %3267 = vmatprep.subr.mxu0 0.0
      %3268 = vmatpush1.msra.mxu0 0.0
      %3269 = vmatprep.subr.mxu0 0.0
      %3270 = vmatpush1.msra.mxu0 0.0
      %3271 = vmatprep.subr.mxu0 0.0
      %3272 = vmatpush1.msra.mxu0 0.0
      %3273 = vmatprep.subr.mxu0 0.0
      %3274 = vmatpush1.msra.mxu0 0.0
      %3275 = vmatprep.subr.mxu0 0.0
      %3276 = vmatpush1.msra.mxu0 0.0
      %3277 = vmatprep.subr.mxu0 0.0
      %3278 = vmatpush1.msra.mxu0 0.0
      %3279 = vmatprep.subr.mxu0 0.0
      %3280 = vmatpush1.msra.mxu0 0.0
      %3281 = vmatprep.subr.mxu0 0.0
      %3282 = vmatpush1.msra.mxu0 0.0
      %3283 = vmatprep.subr.mxu0 0.0
      %3284 = vmatpush1.msra.mxu0 0.0
      %3285 = vmatprep.subr.mxu0 0.0
      %3286 = vmatpush1.msra.mxu0 0.0
      %3287 = vmatprep.subr.mxu0 0.0
      %3288 = vmatpush1.msra.mxu0 0.0
      %3289 = vmatprep.subr.mxu0 0.0
      %3290 = vmatpush1.msra.mxu0 0.0
      %3291 = vmatprep.mubr.f32.mxu0 0.0
      %3292 = vmatmul.mubr.f32.gmra.mrb[0].mxu0 %v2702
      %v3293 = vpop.f32.mrb[0].mxu0
      %v3294 = vadd.f32 %v2893, %v3293
      %v3295 = vpop.f32.mrb[0].mxu0
      %v3296 = vadd.f32 %v2895, %v3295
      %3297 = vmatprep.mubr.f32.mxu0 0.0
      %3298 = vmatmul.mubr.f32.gmra.mrb[0].mxu0 %v2703
      %v3299 = vpop.f32.mrb[0].mxu0
      %v3300 = vadd.f32 %v2899, %v3299
      %v3301 = vpop.f32.mrb[0].mxu0
      %v3302 = vadd.f32 %v2901, %v3301
      %3303 = vmatprep.mubr.f32.mxu0 0.0
      %3304 = vmatmul.mubr.f32.gmra.mrb[0].mxu0 %v2704
      %v3305 = vpop.f32.mrb[0].mxu0
      %v3306 = vadd.f32 %v2905, %v3305
      %v3307 = vpop.f32.mrb[0].mxu0
      %v3308 = vadd.f32 %v2907, %v3307
      %3309 = vmatprep.mubr.f32.mxu0 0.0
      %3310 = vmatmul.mubr.f32.gmra.mrb[0].mxu0 %v2705
      %v3311 = vpop.f32.mrb[0].mxu0
      %v3312 = vadd.f32 %v2911, %v3311
      %v3313 = vpop.f32.mrb[0].mxu0
      %v3314 = vadd.f32 %v2913, %v3313
      %3315 = vmatprep.mubr.f32.mxu0 0.0
      %3316 = vmatmul.mubr.f32.gmra.mrb[0].mxu0 %v2706
      %v3317 = vpop.f32.mrb[0].mxu0
      %v3318 = vadd.f32 %v2917, %v3317
      %v3319 = vpop.f32.mrb[0].mxu0
      %v3320 = vadd.f32 %v2919, %v3319
      %3321 = vmatprep.mubr.f32.mxu0 0.0
      %3322 = vmatmul.mubr.f32.gmra.mrb[0].mxu0 %v2707
      %v3323 = vpop.f32.mrb[0].mxu0
      %v3324 = vadd.f32 %v2923, %v3323
      %v3325 = vpop.f32.mrb[0].mxu0
      %v3326 = vadd.f32 %v2925, %v3325
      %3327 = vmatprep.mubr.f32.mxu0 0.0
      %3328 = vmatmul.mubr.f32.gmra.mrb[0].mxu0 %v2708
      %v3329 = vpop.f32.mrb[0].mxu0
      %v3330 = vadd.f32 %v2929, %v3329
      %v3331 = vpop.f32.mrb[0].mxu0
      %v3332 = vadd.f32 %v2931, %v3331
      %3333 = vmatprep.mubr.f32.mxu0 0.0
      %3334 = vmatmul.mubr.f32.gmra.mrb[0].mxu0 %v2709
      %v3335 = vpop.f32.mrb[0].mxu0
      %v3336 = vadd.f32 %v2935, %v3335
      %v3337 = vpop.f32.mrb[0].mxu0
      %v3338 = vadd.f32 %v2937, %v3337
      %3339 = vmatprep.mubr.f32.mxu0 0.0
      %3340 = vmatmul.mubr.f32.gmra.mrb[0].mxu0 %v2710
      %v3341 = vpop.f32.mrb[0].mxu0
      %v3342 = vadd.f32 %v2941, %v3341
      %v3343 = vpop.f32.mrb[0].mxu0
      %v3344 = vadd.f32 %v2943, %v3343
      %3345 = vmatprep.mubr.f32.mxu0 0.0
      %3346 = vmatmul.mubr.f32.gmra.mrb[0].mxu0 %v2711
      %v3347 = vpop.f32.mrb[0].mxu0
      %v3348 = vadd.f32 %v2947, %v3347
      %v3349 = vpop.f32.mrb[0].mxu0
      %v3350 = vadd.f32 %v2949, %v3349
      %3351 = vmatprep.mubr.f32.mxu0 0.0
      %3352 = vmatmul.mubr.f32.gmra.mrb[0].mxu0 %v2712
      %v3353 = vpop.f32.mrb[0].mxu0
      %v3354 = vadd.f32 %v2953, %v3353
      %v3355 = vpop.f32.mrb[0].mxu0
      %v3356 = vadd.f32 %v2955, %v3355
      %3357 = vmatprep.mubr.f32.mxu0 0.0
      %3358 = vmatmul.mubr.f32.gmra.mrb[0].mxu0 %v2713
      %v3359 = vpop.f32.mrb[0].mxu0
      %v3360 = vadd.f32 %v2959, %v3359
      %v3361 = vpop.f32.mrb[0].mxu0
      %v3362 = vadd.f32 %v2961, %v3361
      %3363 = vmatprep.mubr.f32.mxu0 0.0
      %3364 = vmatmul.mubr.f32.gmra.mrb[0].mxu0 %v2714
      %v3365 = vpop.f32.mrb[0].mxu0
      %v3366 = vadd.f32 %v2965, %v3365
      %v3367 = vpop.f32.mrb[0].mxu0
      %v3368 = vadd.f32 %v2967, %v3367
      %3369 = vmatprep.mubr.f32.mxu0 0.0
      %3370 = vmatmul.mubr.f32.gmra.mrb[0].mxu0 %v2715
      %v3371 = vpop.f32.mrb[0].mxu0
      %v3372 = vadd.f32 %v2971, %v3371
      %v3373 = vpop.f32.mrb[0].mxu0
      %v3374 = vadd.f32 %v2973, %v3373
      %3375 = vmatprep.mubr.f32.mxu0 0.0
      %3376 = vmatmul.mubr.f32.gmra.mrb[0].mxu0 %v2716
      %v3377 = vpop.f32.mrb[0].mxu0
      %v3378 = vadd.f32 %v2977, %v3377
      %v3379 = vpop.f32.mrb[0].mxu0
      %v3380 = vadd.f32 %v2979, %v3379
      %3381 = vmatprep.mubr.f32.mxu0 0.0
      %3382 = vmatmul.mubr.f32.gmra.mrb[0].mxu0 %v2717
      %v3383 = vpop.f32.mrb[0].mxu0
      %v3384 = vadd.f32 %v2983, %v3383
      %v3385 = vpop.f32.mrb[0].mxu0
      %v3386 = vadd.f32 %v2985, %v3385
      %3387 = vmatprep.mubr.f32.mxu0 0.0
      %3388 = vmatmul.mubr.f32.gmra.mrb[0].mxu0 %v2718
      %v3389 = vpop.f32.mrb[0].mxu0
      %v3390 = vadd.f32 %v2989, %v3389
      %v3391 = vpop.f32.mrb[0].mxu0
      %v3392 = vadd.f32 %v2991, %v3391
      %3393 = vmatprep.mubr.f32.mxu0 0.0
      %3394 = vmatmul.mubr.f32.gmra.mrb[0].mxu0 %v2719
      %v3395 = vpop.f32.mrb[0].mxu0
      %v3396 = vadd.f32 %v2995, %v3395
      %v3397 = vpop.f32.mrb[0].mxu0
      %v3398 = vadd.f32 %v2997, %v3397
      %3399 = vmatprep.mubr.f32.mxu0 0.0
      %3400 = vmatmul.mubr.f32.gmra.mrb[0].mxu0 %v2720
      %v3401 = vpop.f32.mrb[0].mxu0
      %v3402 = vadd.f32 %v3001, %v3401
      %v3403 = vpop.f32.mrb[0].mxu0
      %v3404 = vadd.f32 %v3003, %v3403
      %3405 = vmatprep.mubr.f32.mxu0 0.0
      %3406 = vmatmul.mubr.f32.gmra.mrb[0].mxu0 %v2721
      %v3407 = vpop.f32.mrb[0].mxu0
      %v3408 = vadd.f32 %v3007, %v3407
      %v3409 = vpop.f32.mrb[0].mxu0
      %v3410 = vadd.f32 %v3009, %v3409
      %3411 = vmatprep.mubr.f32.mxu0 0.0
      %3412 = vmatmul.mubr.f32.gmra.mrb[0].mxu0 %v2722
      %v3413 = vpop.f32.mrb[0].mxu0
      %v3414 = vadd.f32 %v3013, %v3413
      %v3415 = vpop.f32.mrb[0].mxu0
      %v3416 = vadd.f32 %v3015, %v3415
      %3417 = vmatprep.mubr.f32.mxu0 0.0
      %3418 = vmatmul.mubr.f32.gmra.mrb[0].mxu0 %v2723
      %v3419 = vpop.f32.mrb[0].mxu0
      %v3420 = vadd.f32 %v3019, %v3419
      %v3421 = vpop.f32.mrb[0].mxu0
      %v3422 = vadd.f32 %v3021, %v3421
      %3423 = vmatprep.mubr.f32.mxu0 0.0
      %3424 = vmatmul.mubr.f32.gmra.mrb[0].mxu0 %v2724
      %v3425 = vpop.f32.mrb[0].mxu0
      %v3426 = vadd.f32 %v3025, %v3425
      %v3427 = vpop.f32.mrb[0].mxu0
      %v3428 = vadd.f32 %v3027, %v3427
      %3429 = vmatprep.mubr.f32.mxu0 0.0
      %3430 = vmatmul.mubr.f32.gmra.mrb[0].mxu0 %v2725
      %v3431 = vpop.f32.mrb[0].mxu0
      %v3432 = vadd.f32 %v3031, %v3431
      %v3433 = vpop.f32.mrb[0].mxu0
      %v3434 = vadd.f32 %v3033, %v3433
      %3435 = vmatprep.mubr.f32.mxu0 0.0
      %3436 = vmatmul.mubr.f32.gmra.mrb[0].mxu0 %v2726
      %v3437 = vpop.f32.mrb[0].mxu0
      %v3438 = vadd.f32 %v3037, %v3437
      %v3439 = vpop.f32.mrb[0].mxu0
      %v3440 = vadd.f32 %v3039, %v3439
      %3441 = vmatprep.mubr.f32.mxu0 0.0
      %3442 = vmatmul.mubr.f32.gmra.mrb[0].mxu0 %v2727
      %v3443 = vpop.f32.mrb[0].mxu0
      %v3444 = vadd.f32 %v3043, %v3443
      %v3445 = vpop.f32.mrb[0].mxu0
      %v3446 = vadd.f32 %v3045, %v3445
      %3447 = vmatprep.mubr.f32.mxu0 0.0
      %3448 = vmatmul.mubr.f32.gmra.mrb[0].mxu0 %v2728
      %v3449 = vpop.f32.mrb[0].mxu0
      %v3450 = vadd.f32 %v3049, %v3449
      %v3451 = vpop.f32.mrb[0].mxu0
      %v3452 = vadd.f32 %v3051, %v3451
      %3453 = vmatprep.mubr.f32.mxu0 0.0
      %3454 = vmatmul.mubr.f32.gmra.mrb[0].mxu0 %v2729
      %v3455 = vpop.f32.mrb[0].mxu0
      %v3456 = vadd.f32 %v3055, %v3455
      %v3457 = vpop.f32.mrb[0].mxu0
      %v3458 = vadd.f32 %v3057, %v3457
      %3459 = vmatprep.mubr.f32.mxu0 0.0
      %3460 = vmatmul.mubr.f32.gmra.mrb[0].mxu0 %v2678
      %v3461 = vpop.f32.mrb[0].mxu0
      %v3462 = vadd.f32 %v3061, %v3461
      %v3463 = vpop.f32.mrb[0].mxu0
      %v3464 = vadd.f32 %v3063, %v3463
      %3465 = vmatprep.mubr.f32.mxu0 0.0
      %3466 = vmatmul.mubr.f32.gmra.mrb[0].mxu0 %v2679
      %v3467 = vpop.f32.mrb[0].mxu0
      %v3468 = vadd.f32 %v3067, %v3467
      %v3469 = vpop.f32.mrb[0].mxu0
      %v3470 = vadd.f32 %v3069, %v3469
      %3471 = vmatprep.mubr.f32.mxu0 0.0
      %3472 = vmatmul.mubr.f32.gmra.mrb[0].mxu0 %v2680
      %v3473 = vpop.f32.mrb[0].mxu0
      %v3474 = vadd.f32 %v3073, %v3473
      %v3475 = vpop.f32.mrb[0].mxu0
      %v3476 = vadd.f32 %v3075, %v3475
      %3477 = vmatprep.mubr.f32.mxu0 0.0
      %3478 = vmatmul.mubr.f32.gmra.mrb[0].mxu0 %v2681
      %v3479 = vpop.f32.mrb[0].mxu0
      %v3480 = vadd.f32 %v3079, %v3479
      %v3481 = vpop.f32.mrb[0].mxu0
      %v3482 = vadd.f32 %v3081, %v3481
      %3483 = vmatprep.mubr.f32.mxu0 0.0
      %3484 = vmatmul.mubr.f32.gmra.mrb[0].mxu0 %v2682
      %v3485 = vpop.f32.mrb[0].mxu0
      %v3486 = vadd.f32 %v3085, %v3485
      %v3487 = vpop.f32.mrb[0].mxu0
      %v3488 = vadd.f32 %v3087, %v3487
      %3489 = vmatprep.mubr.f32.mxu0 0.0
      %3490 = vmatmul.mubr.f32.gmra.mrb[0].mxu0 %v2683
      %v3491 = vpop.f32.mrb[0].mxu0
      %v3492 = vadd.f32 %v3091, %v3491
      %v3493 = vpop.f32.mrb[0].mxu0
      %v3494 = vadd.f32 %v3093, %v3493
      %3495 = vmatprep.mubr.f32.mxu0 0.0
      %3496 = vmatmul.mubr.f32.gmra.mrb[0].mxu0 %v2684
      %v3497 = vpop.f32.mrb[0].mxu0
      %v3498 = vadd.f32 %v3097, %v3497
      %v3499 = vpop.f32.mrb[0].mxu0
      %v3500 = vadd.f32 %v3099, %v3499
      %3501 = vmatprep.mubr.f32.mxu0 0.0
      %3502 = vmatmul.mubr.f32.gmra.mrb[0].mxu0 %v2685
      %v3503 = vpop.f32.mrb[0].mxu0
      %v3504 = vadd.f32 %v3103, %v3503
      %v3505 = vpop.f32.mrb[0].mxu0
      %v3506 = vadd.f32 %v3105, %v3505
      %3507 = vmatprep.mubr.f32.mxu0 0.0
      %3508 = vmatmul.mubr.f32.gmra.mrb[0].mxu0 %v2686
      %v3509 = vpop.f32.mrb[0].mxu0
      %v3510 = vadd.f32 %v3109, %v3509
      %v3511 = vpop.f32.mrb[0].mxu0
      %v3512 = vadd.f32 %v3111, %v3511
      %3513 = vmatprep.mubr.f32.mxu0 0.0
      %3514 = vmatmul.mubr.f32.gmra.mrb[0].mxu0 %v2687
      %v3515 = vpop.f32.mrb[0].mxu0
      %v3516 = vadd.f32 %v3115, %v3515
      %v3517 = vpop.f32.mrb[0].mxu0
      %v3518 = vadd.f32 %v3117, %v3517
      %3519 = vmatprep.mubr.f32.mxu0 0.0
      %3520 = vmatmul.mubr.f32.gmra.mrb[0].mxu0 %v2688
      %v3521 = vpop.f32.mrb[0].mxu0
      %v3522 = vadd.f32 %v3121, %v3521
      %v3523 = vpop.f32.mrb[0].mxu0
      %v3524 = vadd.f32 %v3123, %v3523
      %3525 = vmatprep.mubr.f32.mxu0 0.0
      %3526 = vmatmul.mubr.f32.gmra.mrb[0].mxu0 %v2689
      %v3527 = vpop.f32.mrb[0].mxu0
      %v3528 = vadd.f32 %v3127, %v3527
      %v3529 = vpop.f32.mrb[0].mxu0
      %v3530 = vadd.f32 %v3129, %v3529
      %3531 = vmatprep.mubr.f32.mxu0 0.0
      %3532 = vmatmul.mubr.f32.gmra.mrb[0].mxu0 %v2690
      %v3533 = vpop.f32.mrb[0].mxu0
      %v3534 = vadd.f32 %v3133, %v3533
      %v3535 = vpop.f32.mrb[0].mxu0
      %v3536 = vadd.f32 %v3135, %v3535
      %3537 = vmatprep.mubr.f32.mxu0 0.0
      %3538 = vmatmul.mubr.f32.gmra.mrb[0].mxu0 %v2691
      %v3539 = vpop.f32.mrb[0].mxu0
      %v3540 = vadd.f32 %v3139, %v3539
      %v3541 = vpop.f32.mrb[0].mxu0
      %v3542 = vadd.f32 %v3141, %v3541
      %3543 = vmatprep.mubr.f32.mxu0 0.0
      %3544 = vmatmul.mubr.f32.gmra.mrb[0].mxu0 %v2692
      %v3545 = vpop.f32.mrb[0].mxu0
      %v3546 = vadd.f32 %v3145, %v3545
      %v3547 = vpop.f32.mrb[0].mxu0
      %v3548 = vadd.f32 %v3147, %v3547
      %3549 = vmatprep.mubr.f32.mxu0 0.0
      %3550 = vmatmul.mubr.f32.gmra.mrb[0].mxu0 %v2693
      %v3551 = vpop.f32.mrb[0].mxu0
      %v3552 = vadd.f32 %v3151, %v3551
      %v3553 = vpop.f32.mrb[0].mxu0
      %v3554 = vadd.f32 %v3153, %v3553
      %3555 = vmatprep.mubr.f32.mxu0 0.0
      %3556 = vmatmul.mubr.f32.gmra.mrb[0].mxu0 %v2694
      %v3557 = vpop.f32.mrb[0].mxu0
      %v3558 = vadd.f32 %v3157, %v3557
      %v3559 = vpop.f32.mrb[0].mxu0
      %v3560 = vadd.f32 %v3159, %v3559
      %3561 = vmatprep.mubr.f32.mxu0 0.0
      %3562 = vmatmul.mubr.f32.gmra.mrb[0].mxu0 %v2695
      %v3563 = vpop.f32.mrb[0].mxu0
      %v3564 = vadd.f32 %v3163, %v3563
      %v3565 = vpop.f32.mrb[0].mxu0
      %v3566 = vadd.f32 %v3165, %v3565
      %3567 = vmatprep.mubr.f32.mxu0 0.0
      %3568 = vmatmul.mubr.f32.gmra.mrb[0].mxu0 %v2696
      %v3569 = vpop.f32.mrb[0].mxu0
      %v3570 = vadd.f32 %v3169, %v3569
      %v3571 = vpop.f32.mrb[0].mxu0
      %v3572 = vadd.f32 %v3171, %v3571
      %3573 = vmatprep.mubr.f32.mxu0 0.0
      %3574 = vmatmul.mubr.f32.gmra.mrb[0].mxu0 %v2697
      %v3575 = vpop.f32.mrb[0].mxu0
      %v3576 = vadd.f32 %v3175, %v3575
      %v3577 = vpop.f32.mrb[0].mxu0
      %v3578 = vadd.f32 %v3177, %v3577
      %3579 = vmatprep.mubr.f32.mxu0 0.0
      %3580 = vmatmul.mubr.f32.gmra.mrb[0].mxu0 %v2698
      %v3581 = vpop.f32.mrb[0].mxu0
      %v3582 = vadd.f32 %v3181, %v3581
      %v3583 = vpop.f32.mrb[0].mxu0
      %v3584 = vadd.f32 %v3183, %v3583
      %3585 = vmatprep.mubr.f32.mxu0 0.0
      %3586 = vmatmul.mubr.f32.gmra.mrb[0].mxu0 %v2699
      %v3587 = vpop.f32.mrb[0].mxu0
      %v3588 = vadd.f32 %v3187, %v3587
      %v3589 = vpop.f32.mrb[0].mxu0
      %v3590 = vadd.f32 %v3189, %v3589
      %3591 = vmatprep.mubr.f32.mxu0 0.0
      %3592 = vmatmul.mubr.f32.gmra.mrb[0].mxu0 %v2700
      %v3593 = vpop.f32.mrb[0].mxu0
      %v3594 = vadd.f32 %v3193, %v3593
      %v3595 = vpop.f32.mrb[0].mxu0
      %v3596 = vadd.f32 %v3195, %v3595
      %3597 = vmatprep.mubr.f32.mxu0 0.0
      %3598 = vmatmul.mubr.f32.gmra.mrb[0].mxu0 %v2701
      %v3599 = vpop.f32.mrb[0].mxu0
      %v3600 = vadd.f32 %v3199, %v3599
      %v3601 = vpop.f32.mrb[0].mxu0
      %v3602 = vadd.f32 %v3201, %v3601
      %3603 = vmatprep.mubr.f32.mxu0 0.0
      %3604 = vmatmul.mubr.f32.gmra.mrb[0].mxu0 0.0
      %v3605 = vpop.f32.mrb[0].mxu0
      %v3606 = vadd.f32 %v3205, %v3605
      %v3607 = vpop.f32.mrb[0].mxu0
      %v3608 = vadd.f32 %v3207, %v3607
      %3609 = vmatprep.mubr.f32.mxu0 0.0
      %3610 = vmatmul.mubr.f32.gmra.mrb[0].mxu0 0.0
      %v3611 = vpop.f32.mrb[0].mxu0
      %v3612 = vadd.f32 %v3211, %v3611
      %v3613 = vpop.f32.mrb[0].mxu0
      %v3614 = vadd.f32 %v3213, %v3613
      %3615 = vmatprep.mubr.f32.mxu0 0.0
      %3616 = vmatmul.mubr.f32.gmra.mrb[0].mxu0 0.0
      %v3617 = vpop.f32.mrb[0].mxu0
      %v3618 = vadd.f32 %v3217, %v3617
      %v3619 = vpop.f32.mrb[0].mxu0
      %v3620 = vadd.f32 %v3219, %v3619
      %3621 = vmatprep.mubr.f32.mxu0 0.0
      %3622 = vmatmul.mubr.f32.gmra.mrb[0].mxu0 0.0
      %v3623 = vpop.f32.mrb[0].mxu0
      %v3624 = vadd.f32 %v3223, %v3623
      %v3625 = vpop.f32.mrb[0].mxu0
      %v3626 = vadd.f32 %v3225, %v3625
      %3627 = vdwg.mxu0
      %v3628 = vmax.f32 %v3294, %v3462
      %v3629 = vmax.f32 %v3296, %v3464
      %v3630 = vmax.f32 %v3300, %v3468
      %v3631 = vmax.f32 %v3302, %v3470
      %v3632 = vmax.f32 %v3306, %v3474
      %v3633 = vmax.f32 %v3308, %v3476
      %v3634 = vmax.f32 %v3312, %v3480
      %v3635 = vmax.f32 %v3314, %v3482
      %v3636 = vmax.f32 %v3318, %v3486
      %v3637 = vmax.f32 %v3320, %v3488
      %v3638 = vmax.f32 %v3324, %v3492
      %v3639 = vmax.f32 %v3326, %v3494
      %v3640 = vmax.f32 %v3330, %v3498
      %v3641 = vmax.f32 %v3332, %v3500
      %v3642 = vmax.f32 %v3336, %v3504
      %v3643 = vmax.f32 %v3338, %v3506
      %v3644 = vmax.f32 %v3342, %v3510
      %v3645 = vmax.f32 %v3344, %v3512
      %v3646 = vmax.f32 %v3348, %v3516
      %v3647 = vmax.f32 %v3350, %v3518
      %v3648 = vmax.f32 %v3354, %v3522
      %v3649 = vmax.f32 %v3356, %v3524
      %v3650 = vmax.f32 %v3360, %v3528
      %v3651 = vmax.f32 %v3362, %v3530
      %v3652 = vmax.f32 %v3366, %v3534
      %v3653 = vmax.f32 %v3368, %v3536
      %v3654 = vmax.f32 %v3372, %v3540
      %v3655 = vmax.f32 %v3374, %v3542
      %v3656 = vmax.f32 %v3378, %v3546
      %v3657 = vmax.f32 %v3380, %v3548
      %v3658 = vmax.f32 %v3384, %v3552
      %v3659 = vmax.f32 %v3386, %v3554
      %v3660 = vmax.f32 %v3390, %v3558
      %v3661 = vmax.f32 %v3392, %v3560
      %v3662 = vmax.f32 %v3396, %v3564
      %v3663 = vmax.f32 %v3398, %v3566
      %v3664 = vmax.f32 %v3402, %v3570
      %v3665 = vmax.f32 %v3404, %v3572
      %v3666 = vmax.f32 %v3408, %v3576
      %v3667 = vmax.f32 %v3410, %v3578
      %v3668 = vmax.f32 %v3414, %v3582
      %v3669 = vmax.f32 %v3416, %v3584
      %v3670 = vmax.f32 %v3420, %v3588
      %v3671 = vmax.f32 %v3422, %v3590
      %v3672 = vmax.f32 %v3426, %v3594
      %v3673 = vmax.f32 %v3428, %v3596
      %v3674 = vmax.f32 %v3432, %v3600
      %v3675 = vmax.f32 %v3434, %v3602
      %v3676 = vmax.f32 %v3438, %v3606
      %v3677 = vmax.f32 %v3440, %v3608
      %v3678 = vmax.f32 %v3444, %v3612
      %v3679 = vmax.f32 %v3446, %v3614
      %v3680 = vmax.f32 %v3450, %v3618
      %v3681 = vmax.f32 %v3452, %v3620
      %v3682 = vmax.f32 %v3456, %v3624
      %v3683 = vmax.f32 %v3458, %v3626
      %v3684 = vmax.f32 %v3628, %v3629
      %v3685 = vmax.f32 %v3630, %v3631
      %v3686 = vmax.f32 %v3632, %v3633
      %v3687 = vmax.f32 %v3634, %v3635
      %v3688 = vmax.f32 %v3636, %v3637
      %v3689 = vmax.f32 %v3638, %v3639
      %v3690 = vmax.f32 %v3640, %v3641
      %v3691 = vmax.f32 %v3642, %v3643
      %v3692 = vmax.f32 %v3644, %v3645
      %v3693 = vmax.f32 %v3646, %v3647
      %v3694 = vmax.f32 %v3648, %v3649
      %v3695 = vmax.f32 %v3650, %v3651
      %v3696 = vmax.f32 %v3652, %v3653
      %v3697 = vmax.f32 %v3654, %v3655
      %v3698 = vmax.f32 %v3656, %v3657
      %v3699 = vmax.f32 %v3658, %v3659
      %v3700 = vmax.f32 %v3660, %v3661
      %v3701 = vmax.f32 %v3662, %v3663
      %v3702 = vmax.f32 %v3664, %v3665
      %v3703 = vmax.f32 %v3666, %v3667
      %v3704 = vmax.f32 %v3668, %v3669
      %v3705 = vmax.f32 %v3670, %v3671
      %v3706 = vmax.f32 %v3672, %v3673
      %v3707 = vmax.f32 %v3674, %v3675
      %v3708 = vmax.f32 %v3676, %v3677
      %v3709 = vmax.f32 %v3678, %v3679
      %v3710 = vmax.f32 %v3680, %v3681
      %v3711 = vmax.f32 %v3682, %v3683
      %v3712 = vld [vmem:[%s4] sm:$0x1]
      %v3714 = vlaneseq
      %v3715 = vshrl.u32 %v3714, 7
      %v3716 = vsub.s32 0, %v3715
      %v3717 = vrot.slane %v3712, %v3716
      %v3719 = vadd.f32 %v3684, %v3717
      %v3720 = vadd.f32 %v3685, %v3717
      %v3721 = vadd.f32 %v3686, %v3717
      %v3722 = vadd.f32 %v3687, %v3717
      %v3723 = vadd.f32 %v3688, %v3717
      %v3724 = vadd.f32 %v3689, %v3717
      %v3725 = vadd.f32 %v3690, %v3717
      %v3726 = vadd.f32 %v3691, %v3717
      %v3727 = vadd.f32 %v3692, %v3717
      %v3728 = vadd.f32 %v3693, %v3717
      %v3729 = vadd.f32 %v3694, %v3717
      %v3730 = vadd.f32 %v3695, %v3717
      %v3731 = vadd.f32 %v3696, %v3717
      %v3732 = vadd.f32 %v3697, %v3717
      %v3733 = vadd.f32 %v3698, %v3717
      %v3734 = vadd.f32 %v3699, %v3717
      %v3735 = vadd.f32 %v3700, %v3717
      %v3736 = vadd.f32 %v3701, %v3717
      %v3737 = vadd.f32 %v3702, %v3717
      %v3738 = vadd.f32 %v3703, %v3717
      %v3739 = vadd.f32 %v3704, %v3717
      %v3740 = vadd.f32 %v3705, %v3717
      %v3741 = vadd.f32 %v3706, %v3717
      %v3742 = vadd.f32 %v3707, %v3717
      %v3743 = vadd.f32 %v3708, %v3717
      %v3744 = vadd.f32 %v3709, %v3717
      %v3745 = vadd.f32 %v3710, %v3717
      %v3746 = vadd.f32 %v3711, %v3717
      %v3747 = vmax.f32 %v3719, 0.0
      %v3748 = vmax.f32 %v3720, 0.0
      %v3749 = vmax.f32 %v3721, 0.0
      %v3750 = vmax.f32 %v3722, 0.0
      %v3751 = vmax.f32 %v3723, 0.0
      %v3752 = vmax.f32 %v3724, 0.0
      %v3753 = vmax.f32 %v3725, 0.0
      %v3754 = vmax.f32 %v3726, 0.0
      %v3755 = vmax.f32 %v3727, 0.0
      %v3756 = vmax.f32 %v3728, 0.0
      %v3757 = vmax.f32 %v3729, 0.0
      %v3758 = vmax.f32 %v3730, 0.0
      %v3759 = vmax.f32 %v3731, 0.0
      %v3760 = vmax.f32 %v3732, 0.0
      %v3761 = vmax.f32 %v3733, 0.0
      %v3762 = vmax.f32 %v3734, 0.0
      %v3763 = vmax.f32 %v3735, 0.0
      %v3764 = vmax.f32 %v3736, 0.0
      %v3765 = vmax.f32 %v3737, 0.0
      %v3766 = vmax.f32 %v3738, 0.0
      %v3767 = vmax.f32 %v3739, 0.0
      %v3768 = vmax.f32 %v3740, 0.0
      %v3769 = vmax.f32 %v3741, 0.0
      %v3770 = vmax.f32 %v3742, 0.0
      %v3771 = vmax.f32 %v3743, 0.0
      %v3772 = vmax.f32 %v3744, 0.0
      %v3773 = vmax.f32 %v3745, 0.0
      %v3774 = vmax.f32 %v3746, 0.0
      %v3775 = vld [vmem:[%s5] sm:$0xff]
      %v3776 = vld [vmem:[%s5 + $0x8] sm:$0xff]
      %v3777 = vld [vmem:[%s5 + $0x10] sm:$0xff]
      %v3778 = vld [vmem:[%s5 + $0x18] sm:$0xff]
      %v3779 = vld [vmem:[%s5 + $0x20] sm:$0xff]
      %v3780 = vld [vmem:[%s5 + $0x28] sm:$0xff]
      %v3781 = vld [vmem:[%s5 + $0x30] sm:$0xff]
      %v3782 = vld [vmem:[%s5 + $0x38] sm:$0xff]
      %v3783 = vld [vmem:[%s5 + $0x40] sm:$0xff]
      %v3784 = vld [vmem:[%s5 + $0x48] sm:$0xff]
      %v3785 = vld [vmem:[%s5 + $0x50] sm:$0xff]
      %v3786 = vld [vmem:[%s5 + $0x58] sm:$0xff]
      %v3787 = vld [vmem:[%s5 + $0x60] sm:$0xff]
      %v3788 = vld [vmem:[%s5 + $0x68] sm:$0xff]
      %v3789 = vld [vmem:[%s5 + $0x70] sm:$0xff]
      %v3790 = vld [vmem:[%s5 + $0x78] sm:$0xff]
      %v3791 = vld [vmem:[%s5 + $0x80] sm:$0xff]
      %v3792 = vld [vmem:[%s5 + $0x88] sm:$0xff]
      %v3793 = vld [vmem:[%s5 + $0x90] sm:$0xff]
      %v3794 = vld [vmem:[%s5 + $0x98] sm:$0xff]
      %v3795 = vld [vmem:[%s5 + $0xa0] sm:$0xff]
      %v3796 = vld [vmem:[%s5 + $0xa8] sm:$0xff]
      %v3797 = vld [vmem:[%s5 + $0xb0] sm:$0xff]
      %v3798 = vld [vmem:[%s5 + $0xb8] sm:$0xff]
      %v3799 = vld [vmem:[%s5 + $0xc0] sm:$0xff]
      %v3800 = vld [vmem:[%s5 + $0xc8] sm:$0xff]
      %v3801 = vld [vmem:[%s5 + $0xd0] sm:$0xff]
      %v3802 = vld [vmem:[%s5 + $0xd8] sm:$0xff]
      %v3803 = vld [vmem:[%s5 + $0xe0] sm:$0xff]
      %v3804 = vld [vmem:[%s5 + $0xe8] sm:$0xff]
      %v3805 = vld [vmem:[%s5 + $0xf0] sm:$0xff]
      %v3806 = vld [vmem:[%s5 + $0xf8] sm:$0xff]
      %v3807 = vld [vmem:[%s5 + $0x100] sm:$0xff]
      %v3808 = vld [vmem:[%s5 + $0x108] sm:$0xff]
      %v3809 = vld [vmem:[%s5 + $0x110] sm:$0xff]
      %v3810 = vld [vmem:[%s5 + $0x118] sm:$0xff]
      %v3811 = vld [vmem:[%s5 + $0x120] sm:$0xff]
      %v3812 = vld [vmem:[%s5 + $0x128] sm:$0xff]
      %v3813 = vld [vmem:[%s5 + $0x130] sm:$0xff]
      %v3814 = vld [vmem:[%s5 + $0x138] sm:$0xff]
      %v3815 = vld [vmem:[%s5 + $0x140] sm:$0xff]
      %v3816 = vld [vmem:[%s5 + $0x148] sm:$0xff]
      %v3817 = vld [vmem:[%s5 + $0x150] sm:$0xff]
      %v3818 = vld [vmem:[%s5 + $0x158] sm:$0xff]
      %v3819 = vld [vmem:[%s5 + $0x160] sm:$0xff]
      %v3820 = vld [vmem:[%s5 + $0x168] sm:$0xff]
      %v3821 = vld [vmem:[%s5 + $0x170] sm:$0xff]
      %v3822 = vld [vmem:[%s5 + $0x178] sm:$0xff]
      %v3823 = vld [vmem:[%s5 + $0x180] sm:$0xff]
      %v3824 = vld [vmem:[%s5 + $0x188] sm:$0xff]
      %v3825 = vld [vmem:[%s5 + $0x190] sm:$0xff]
      %v3826 = vld [vmem:[%s5 + $0x198] sm:$0xff]
      %v3827 = vld [vmem:[%s5 + $0x1a0] sm:$0xff]
      %v3828 = vld [vmem:[%s5 + $0x1a8] sm:$0xff]
      %v3829 = vld [vmem:[%s5 + $0x1b0] sm:$0xff]
      %v3830 = vld [vmem:[%s5 + $0x1b8] sm:$0xff]
      %v3831 = vld [vmem:[%s5 + $0x1c0] sm:$0xff]
      %v3832 = vld [vmem:[%s5 + $0x1c8] sm:$0xff]
      %v3833 = vld [vmem:[%s5 + $0x1d0] sm:$0xff]
      %v3834 = vld [vmem:[%s5 + $0x1d8] sm:$0xff]
      %v3835 = vld [vmem:[%s5 + $0x1e0] sm:$0xff]
      %v3836 = vld [vmem:[%s5 + $0x1e8] sm:$0xff]
      %v3837 = vld [vmem:[%s5 + $0x1f0] sm:$0xff]
      %v3838 = vld [vmem:[%s5 + $0x1f8] sm:$0xff]
      %v3839 = vld [vmem:[%s5 + $0x200] sm:$0xff]
      %v3840 = vld [vmem:[%s5 + $0x208] sm:$0xff]
      %v3841 = vld [vmem:[%s5 + $0x210] sm:$0xff]
      %v3842 = vld [vmem:[%s5 + $0x218] sm:$0xff]
      %v3843 = vld [vmem:[%s5 + $0x220] sm:$0xff]
      %v3844 = vld [vmem:[%s5 + $0x228] sm:$0xff]
      %v3845 = vld [vmem:[%s5 + $0x230] sm:$0xff]
      %v3846 = vld [vmem:[%s5 + $0x238] sm:$0xff]
      %v3847 = vld [vmem:[%s5 + $0x240] sm:$0xff]
      %v3848 = vld [vmem:[%s5 + $0x248] sm:$0xff]
      %v3849 = vld [vmem:[%s5 + $0x250] sm:$0xff]
      %v3850 = vld [vmem:[%s5 + $0x258] sm:$0xff]
      %v3851 = vld [vmem:[%s5 + $0x260] sm:$0xff]
      %v3852 = vld [vmem:[%s5 + $0x268] sm:$0xff]
      %v3853 = vld [vmem:[%s5 + $0x270] sm:$0xff]
      %v3854 = vld [vmem:[%s5 + $0x278] sm:$0xff]
      %v3855 = vld [vmem:[%s5 + $0x280] sm:$0xff]
      %v3856 = vld [vmem:[%s5 + $0x288] sm:$0xff]
      %v3857 = vld [vmem:[%s5 + $0x290] sm:$0xff]
      %v3858 = vld [vmem:[%s5 + $0x298] sm:$0xff]
      %v3859 = vld [vmem:[%s5 + $0x2a0] sm:$0xff]
      %v3860 = vld [vmem:[%s5 + $0x2a8] sm:$0xff]
      %v3861 = vld [vmem:[%s5 + $0x2b0] sm:$0xff]
      %v3862 = vld [vmem:[%s5 + $0x2b8] sm:$0xff]
      %v3863 = vld [vmem:[%s5 + $0x2c0] sm:$0xff]
      %v3864 = vld [vmem:[%s5 + $0x2c8] sm:$0xff]
      %v3865 = vld [vmem:[%s5 + $0x2d0] sm:$0xff]
      %v3866 = vld [vmem:[%s5 + $0x2d8] sm:$0xff]
      %v3867 = vld [vmem:[%s5 + $0x2e0] sm:$0xff]
      %v3868 = vld [vmem:[%s5 + $0x2e8] sm:$0xff]
      %v3869 = vld [vmem:[%s5 + $0x2f0] sm:$0xff]
      %v3870 = vld [vmem:[%s5 + $0x2f8] sm:$0xff]
      %v3871 = vld [vmem:[%s5 + $0x300] sm:$0xff]
      %v3872 = vld [vmem:[%s5 + $0x308] sm:$0xff]
      %v3873 = vld [vmem:[%s5 + $0x310] sm:$0xff]
      %v3874 = vld [vmem:[%s5 + $0x318] sm:$0xff]
      %v3875 = vld [vmem:[%s5 + $0x320] sm:$0xff]
      %v3876 = vld [vmem:[%s5 + $0x328] sm:$0xff]
      %v3877 = vld [vmem:[%s5 + $0x330] sm:$0xff]
      %v3878 = vld [vmem:[%s5 + $0x338] sm:$0xff]
      %v3879 = vld [vmem:[%s5 + $0x340] sm:$0xff]
      %v3880 = vld [vmem:[%s5 + $0x348] sm:$0xff]
      %v3881 = vld [vmem:[%s5 + $0x350] sm:$0xff]
      %v3882 = vld [vmem:[%s5 + $0x358] sm:$0xff]
      %v3883 = vld [vmem:[%s5 + $0x360] sm:$0xff]
      %v3884 = vld [vmem:[%s5 + $0x368] sm:$0xff]
      %v3885 = vld [vmem:[%s5 + $0x370] sm:$0xff]
      %v3886 = vld [vmem:[%s5 + $0x378] sm:$0xff]
      %v3887 = vld [vmem:[%s6] sm:$0x1]
      %v3889 = vlaneseq
      %v3890 = vshrl.u32 %v3889, 7
      %v3891 = vsub.s32 0, %v3890
      %v3892 = vrot.slane %v3887, %v3891
      %3894 = vmatprep.subr.mxu0 0.0
      %3895 = vmatpush1.msra.mxu0 %v3775
      %3896 = vmatprep.subr.mxu0 0.0
      %3897 = vmatpush1.msra.mxu0 %v3776
      %3898 = vmatprep.subr.mxu0 0.0
      %3899 = vmatpush1.msra.mxu0 %v3777
      %3900 = vmatprep.subr.mxu0 0.0
      %3901 = vmatpush1.msra.mxu0 %v3778
      %3902 = vmatprep.subr.mxu0 0.0
      %3903 = vmatpush1.msra.mxu0 %v3779
      %3904 = vmatprep.subr.mxu0 0.0
      %3905 = vmatpush1.msra.mxu0 %v3780
      %3906 = vmatprep.subr.mxu0 0.0
      %3907 = vmatpush1.msra.mxu0 %v3781
      %3908 = vmatprep.subr.mxu0 0.0
      %3909 = vmatpush1.msra.mxu0 %v3782
      %3910 = vmatprep.subr.mxu0 0.0
      %3911 = vmatpush1.msra.mxu0 %v3783
      %3912 = vmatprep.subr.mxu0 0.0
      %3913 = vmatpush1.msra.mxu0 %v3784
      %3914 = vmatprep.subr.mxu0 0.0
      %3915 = vmatpush1.msra.mxu0 %v3785
      %3916 = vmatprep.subr.mxu0 0.0
      %3917 = vmatpush1.msra.mxu0 %v3786
      %3918 = vmatprep.subr.mxu0 0.0
      %3919 = vmatpush1.msra.mxu0 %v3787
      %3920 = vmatprep.subr.mxu0 0.0
      %3921 = vmatpush1.msra.mxu0 %v3788
      %3922 = vmatprep.subr.mxu0 0.0
      %3923 = vmatpush1.msra.mxu0 %v3789
      %3924 = vmatprep.subr.mxu0 0.0
      %3925 = vmatpush1.msra.mxu0 %v3790
      %3926 = vmatprep.subr.mxu0 0.0
      %3927 = vmatpush1.msra.mxu0 %v3791
      %3928 = vmatprep.subr.mxu0 0.0
      %3929 = vmatpush1.msra.mxu0 %v3792
      %3930 = vmatprep.subr.mxu0 0.0
      %3931 = vmatpush1.msra.mxu0 %v3793
      %3932 = vmatprep.subr.mxu0 0.0
      %3933 = vmatpush1.msra.mxu0 %v3794
      %3934 = vmatprep.subr.mxu0 0.0
      %3935 = vmatpush1.msra.mxu0 %v3795
      %3936 = vmatprep.subr.mxu0 0.0
      %3937 = vmatpush1.msra.mxu0 %v3796
      %3938 = vmatprep.subr.mxu0 0.0
      %3939 = vmatpush1.msra.mxu0 %v3797
      %3940 = vmatprep.subr.mxu0 0.0
      %3941 = vmatpush1.msra.mxu0 %v3798
      %3942 = vmatprep.subr.mxu0 0.0
      %3943 = vmatpush1.msra.mxu0 %v3799
      %3944 = vmatprep.subr.mxu0 0.0
      %3945 = vmatpush1.msra.mxu0 %v3800
      %3946 = vmatprep.subr.mxu0 0.0
      %3947 = vmatpush1.msra.mxu0 %v3801
      %3948 = vmatprep.subr.mxu0 0.0
      %3949 = vmatpush1.msra.mxu0 %v3802
      %3950 = vmatprep.subr.mxu0 0.0
      %3951 = vmatpush1.msra.mxu0 %v3803
      %3952 = vmatprep.subr.mxu0 0.0
      %3953 = vmatpush1.msra.mxu0 %v3804
      %3954 = vmatprep.subr.mxu0 0.0
      %3955 = vmatpush1.msra.mxu0 %v3805
      %3956 = vmatprep.subr.mxu0 0.0
      %3957 = vmatpush1.msra.mxu0 %v3806
      %3958 = vmatprep.mubr.f32.mxu0 %v3751
      %3959 = vmatmul.mubr.f32.gmra.mrb[0].mxu0 %v3747
      %v3960 = vpop.f32.mrb[0].mxu0
      %v3961 = vadd.f32 %v3892, %v3960
      %v3962 = vpop.f32.mrb[0].mxu0
      %3963 = vmatprep.mubr.f32.mxu0 %v3752
      %3964 = vmatmul.mubr.f32.gmra.mrb[0].mxu0 %v3748
      %v3965 = vpop.f32.mrb[0].mxu0
      %v3966 = vadd.f32 %v3892, %v3965
      %v3967 = vpop.f32.mrb[0].mxu0
      %3968 = vmatprep.mubr.f32.mxu0 %v3753
      %3969 = vmatmul.mubr.f32.gmra.mrb[0].mxu0 %v3749
      %v3970 = vpop.f32.mrb[0].mxu0
      %v3971 = vadd.f32 %v3892, %v3970
      %v3972 = vpop.f32.mrb[0].mxu0
      %3973 = vmatprep.mubr.f32.mxu0 %v3754
      %3974 = vmatmul.mubr.f32.gmra.mrb[0].mxu0 %v3750
      %v3975 = vpop.f32.mrb[0].mxu0
      %v3976 = vadd.f32 %v3892, %v3975
      %v3977 = vpop.f32.mrb[0].mxu0
      %3978 = vdwg.mxu0
      %3979 = vmatprep.subr.mxu0 0.0
      %3980 = vmatpush1.msra.mxu0 %v3807
      %3981 = vmatprep.subr.mxu0 0.0
      %3982 = vmatpush1.msra.mxu0 %v3808
      %3983 = vmatprep.subr.mxu0 0.0
      %3984 = vmatpush1.msra.mxu0 %v3809
      %3985 = vmatprep.subr.mxu0 0.0
      %3986 = vmatpush1.msra.mxu0 %v3810
      %3987 = vmatprep.subr.mxu0 0.0
      %3988 = vmatpush1.msra.mxu0 %v3811
      %3989 = vmatprep.subr.mxu0 0.0
      %3990 = vmatpush1.msra.mxu0 %v3812
      %3991 = vmatprep.subr.mxu0 0.0
      %3992 = vmatpush1.msra.mxu0 %v3813
      %3993 = vmatprep.subr.mxu0 0.0
      %3994 = vmatpush1.msra.mxu0 %v3814
      %3995 = vmatprep.subr.mxu0 0.0
      %3996 = vmatpush1.msra.mxu0 %v3815
      %3997 = vmatprep.subr.mxu0 0.0
      %3998 = vmatpush1.msra.mxu0 %v3816
      %3999 = vmatprep.subr.mxu0 0.0
      %4000 = vmatpush1.msra.mxu0 %v3817
      %4001 = vmatprep.subr.mxu0 0.0
      %4002 = vmatpush1.msra.mxu0 %v3818
      %4003 = vmatprep.subr.mxu0 0.0
      %4004 = vmatpush1.msra.mxu0 %v3819
      %4005 = vmatprep.subr.mxu0 0.0
      %4006 = vmatpush1.msra.mxu0 %v3820
      %4007 = vmatprep.subr.mxu0 0.0
      %4008 = vmatpush1.msra.mxu0 %v3821
      %4009 = vmatprep.subr.mxu0 0.0
      %4010 = vmatpush1.msra.mxu0 %v3822
      %4011 = vmatprep.subr.mxu0 0.0
      %4012 = vmatpush1.msra.mxu0 %v3823
      %4013 = vmatprep.subr.mxu0 0.0
      %4014 = vmatpush1.msra.mxu0 %v3824
      %4015 = vmatprep.subr.mxu0 0.0
      %4016 = vmatpush1.msra.mxu0 %v3825
      %4017 = vmatprep.subr.mxu0 0.0
      %4018 = vmatpush1.msra.mxu0 %v3826
      %4019 = vmatprep.subr.mxu0 0.0
      %4020 = vmatpush1.msra.mxu0 %v3827
      %4021 = vmatprep.subr.mxu0 0.0
      %4022 = vmatpush1.msra.mxu0 %v3828
      %4023 = vmatprep.subr.mxu0 0.0
      %4024 = vmatpush1.msra.mxu0 %v3829
      %4025 = vmatprep.subr.mxu0 0.0
      %4026 = vmatpush1.msra.mxu0 %v3830
      %4027 = vmatprep.subr.mxu0 0.0
      %4028 = vmatpush1.msra.mxu0 %v3831
      %4029 = vmatprep.subr.mxu0 0.0
      %4030 = vmatpush1.msra.mxu0 %v3832
      %4031 = vmatprep.subr.mxu0 0.0
      %4032 = vmatpush1.msra.mxu0 %v3833
      %4033 = vmatprep.subr.mxu0 0.0
      %4034 = vmatpush1.msra.mxu0 %v3834
      %4035 = vmatprep.subr.mxu0 0.0
      %4036 = vmatpush1.msra.mxu0 %v3835
      %4037 = vmatprep.subr.mxu0 0.0
      %4038 = vmatpush1.msra.mxu0 %v3836
      %4039 = vmatprep.subr.mxu0 0.0
      %4040 = vmatpush1.msra.mxu0 %v3837
      %4041 = vmatprep.subr.mxu0 0.0
      %4042 = vmatpush1.msra.mxu0 %v3838
      %4043 = vmatprep.mubr.f32.mxu0 %v3759
      %4044 = vmatmul.mubr.f32.gmra.mrb[0].mxu0 %v3755
      %v4045 = vpop.f32.mrb[0].mxu0
      %v4046 = vadd.f32 %v3961, %v4045
      %v4047 = vpop.f32.mrb[0].mxu0
      %4048 = vmatprep.mubr.f32.mxu0 %v3760
      %4049 = vmatmul.mubr.f32.gmra.mrb[0].mxu0 %v3756
      %v4050 = vpop.f32.mrb[0].mxu0
      %v4051 = vadd.f32 %v3966, %v4050
      %v4052 = vpop.f32.mrb[0].mxu0
      %4053 = vmatprep.mubr.f32.mxu0 %v3761
      %4054 = vmatmul.mubr.f32.gmra.mrb[0].mxu0 %v3757
      %v4055 = vpop.f32.mrb[0].mxu0
      %v4056 = vadd.f32 %v3971, %v4055
      %v4057 = vpop.f32.mrb[0].mxu0
      %4058 = vmatprep.mubr.f32.mxu0 %v3762
      %4059 = vmatmul.mubr.f32.gmra.mrb[0].mxu0 %v3758
      %v4060 = vpop.f32.mrb[0].mxu0
      %v4061 = vadd.f32 %v3976, %v4060
      %v4062 = vpop.f32.mrb[0].mxu0
      %4063 = vdwg.mxu0
      %4064 = vmatprep.subr.mxu0 0.0
      %4065 = vmatpush1.msra.mxu0 %v3839
      %4066 = vmatprep.subr.mxu0 0.0
      %4067 = vmatpush1.msra.mxu0 %v3840
      %4068 = vmatprep.subr.mxu0 0.0
      %4069 = vmatpush1.msra.mxu0 %v3841
      %4070 = vmatprep.subr.mxu0 0.0
      %4071 = vmatpush1.msra.mxu0 %v3842
      %4072 = vmatprep.subr.mxu0 0.0
      %4073 = vmatpush1.msra.mxu0 %v3843
      %4074 = vmatprep.subr.mxu0 0.0
      %4075 = vmatpush1.msra.mxu0 %v3844
      %4076 = vmatprep.subr.mxu0 0.0
      %4077 = vmatpush1.msra.mxu0 %v3845
      %4078 = vmatprep.subr.mxu0 0.0
      %4079 = vmatpush1.msra.mxu0 %v3846
      %4080 = vmatprep.subr.mxu0 0.0
      %4081 = vmatpush1.msra.mxu0 %v3847
      %4082 = vmatprep.subr.mxu0 0.0
      %4083 = vmatpush1.msra.mxu0 %v3848
      %4084 = vmatprep.subr.mxu0 0.0
      %4085 = vmatpush1.msra.mxu0 %v3849
      %4086 = vmatprep.subr.mxu0 0.0
      %4087 = vmatpush1.msra.mxu0 %v3850
      %4088 = vmatprep.subr.mxu0 0.0
      %4089 = vmatpush1.msra.mxu0 %v3851
      %4090 = vmatprep.subr.mxu0 0.0
      %4091 = vmatpush1.msra.mxu0 %v3852
      %4092 = vmatprep.subr.mxu0 0.0
      %4093 = vmatpush1.msra.mxu0 %v3853
      %4094 = vmatprep.subr.mxu0 0.0
      %4095 = vmatpush1.msra.mxu0 %v3854
      %4096 = vmatprep.subr.mxu0 0.0
      %4097 = vmatpush1.msra.mxu0 %v3855
      %4098 = vmatprep.subr.mxu0 0.0
      %4099 = vmatpush1.msra.mxu0 %v3856
      %4100 = vmatprep.subr.mxu0 0.0
      %4101 = vmatpush1.msra.mxu0 %v3857
      %4102 = vmatprep.subr.mxu0 0.0
      %4103 = vmatpush1.msra.mxu0 %v3858
      %4104 = vmatprep.subr.mxu0 0.0
      %4105 = vmatpush1.msra.mxu0 %v3859
      %4106 = vmatprep.subr.mxu0 0.0
      %4107 = vmatpush1.msra.mxu0 %v3860
      %4108 = vmatprep.subr.mxu0 0.0
      %4109 = vmatpush1.msra.mxu0 %v3861
      %4110 = vmatprep.subr.mxu0 0.0
      %4111 = vmatpush1.msra.mxu0 %v3862
      %4112 = vmatprep.subr.mxu0 0.0
      %4113 = vmatpush1.msra.mxu0 %v3863
      %4114 = vmatprep.subr.mxu0 0.0
      %4115 = vmatpush1.msra.mxu0 %v3864
      %4116 = vmatprep.subr.mxu0 0.0
      %4117 = vmatpush1.msra.mxu0 %v3865
      %4118 = vmatprep.subr.mxu0 0.0
      %4119 = vmatpush1.msra.mxu0 %v3866
      %4120 = vmatprep.subr.mxu0 0.0
      %4121 = vmatpush1.msra.mxu0 %v3867
      %4122 = vmatprep.subr.mxu0 0.0
      %4123 = vmatpush1.msra.mxu0 %v3868
      %4124 = vmatprep.subr.mxu0 0.0
      %4125 = vmatpush1.msra.mxu0 %v3869
      %4126 = vmatprep.subr.mxu0 0.0
      %4127 = vmatpush1.msra.mxu0 %v3870
      %4128 = vmatprep.mubr.f32.mxu0 %v3767
      %4129 = vmatmul.mubr.f32.gmra.mrb[0].mxu0 %v3763
      %v4130 = vpop.f32.mrb[0].mxu0
      %v4131 = vadd.f32 %v4046, %v4130
      %v4132 = vpop.f32.mrb[0].mxu0
      %4133 = vmatprep.mubr.f32.mxu0 %v3768
      %4134 = vmatmul.mubr.f32.gmra.mrb[0].mxu0 %v3764
      %v4135 = vpop.f32.mrb[0].mxu0
      %v4136 = vadd.f32 %v4051, %v4135
      %v4137 = vpop.f32.mrb[0].mxu0
      %4138 = vmatprep.mubr.f32.mxu0 %v3769
      %4139 = vmatmul.mubr.f32.gmra.mrb[0].mxu0 %v3765
      %v4140 = vpop.f32.mrb[0].mxu0
      %v4141 = vadd.f32 %v4056, %v4140
      %v4142 = vpop.f32.mrb[0].mxu0
      %4143 = vmatprep.mubr.f32.mxu0 %v3770
      %4144 = vmatmul.mubr.f32.gmra.mrb[0].mxu0 %v3766
      %v4145 = vpop.f32.mrb[0].mxu0
      %v4146 = vadd.f32 %v4061, %v4145
      %v4147 = vpop.f32.mrb[0].mxu0
      %4148 = vdwg.mxu0
      %4149 = vmatprep.subr.mxu0 0.0
      %4150 = vmatpush1.msra.mxu0 %v3871
      %4151 = vmatprep.subr.mxu0 0.0
      %4152 = vmatpush1.msra.mxu0 %v3872
      %4153 = vmatprep.subr.mxu0 0.0
      %4154 = vmatpush1.msra.mxu0 %v3873
      %4155 = vmatprep.subr.mxu0 0.0
      %4156 = vmatpush1.msra.mxu0 %v3874
      %4157 = vmatprep.subr.mxu0 0.0
      %4158 = vmatpush1.msra.mxu0 %v3875
      %4159 = vmatprep.subr.mxu0 0.0
      %4160 = vmatpush1.msra.mxu0 %v3876
      %4161 = vmatprep.subr.mxu0 0.0
      %4162 = vmatpush1.msra.mxu0 %v3877
      %4163 = vmatprep.subr.mxu0 0.0
      %4164 = vmatpush1.msra.mxu0 %v3878
      %4165 = vmatprep.subr.mxu0 0.0
      %4166 = vmatpush1.msra.mxu0 %v3879
      %4167 = vmatprep.subr.mxu0 0.0
      %4168 = vmatpush1.msra.mxu0 %v3880
      %4169 = vmatprep.subr.mxu0 0.0
      %4170 = vmatpush1.msra.mxu0 %v3881
      %4171 = vmatprep.subr.mxu0 0.0
      %4172 = vmatpush1.msra.mxu0 %v3882
      %4173 = vmatprep.subr.mxu0 0.0
      %4174 = vmatpush1.msra.mxu0 %v3883
      %4175 = vmatprep.subr.mxu0 0.0
      %4176 = vmatpush1.msra.mxu0 %v3884
      %4177 = vmatprep.subr.mxu0 0.0
      %4178 = vmatpush1.msra.mxu0 %v3885
      %4179 = vmatprep.subr.mxu0 0.0
      %4180 = vmatpush1.msra.mxu0 %v3886
      %4181 = vmatprep.subr.mxu0 0.0
      %4182 = vmatpush1.msra.mxu0 0.0
      %4183 = vmatprep.subr.mxu0 0.0
      %4184 = vmatpush1.msra.mxu0 0.0
      %4185 = vmatprep.subr.mxu0 0.0
      %4186 = vmatpush1.msra.mxu0 0.0
      %4187 = vmatprep.subr.mxu0 0.0
      %4188 = vmatpush1.msra.mxu0 0.0
      %4189 = vmatprep.subr.mxu0 0.0
      %4190 = vmatpush1.msra.mxu0 0.0
      %4191 = vmatprep.subr.mxu0 0.0
      %4192 = vmatpush1.msra.mxu0 0.0
      %4193 = vmatprep.subr.mxu0 0.0
      %4194 = vmatpush1.msra.mxu0 0.0
      %4195 = vmatprep.subr.mxu0 0.0
      %4196 = vmatpush1.msra.mxu0 0.0
      %4197 = vmatprep.subr.mxu0 0.0
      %4198 = vmatpush1.msra.mxu0 0.0
      %4199 = vmatprep.subr.mxu0 0.0
      %4200 = vmatpush1.msra.mxu0 0.0
      %4201 = vmatprep.subr.mxu0 0.0
      %4202 = vmatpush1.msra.mxu0 0.0
      %4203 = vmatprep.subr.mxu0 0.0
      %4204 = vmatpush1.msra.mxu0 0.0
      %4205 = vmatprep.subr.mxu0 0.0
      %4206 = vmatpush1.msra.mxu0 0.0
      %4207 = vmatprep.subr.mxu0 0.0
      %4208 = vmatpush1.msra.mxu0 0.0
      %4209 = vmatprep.subr.mxu0 0.0
      %4210 = vmatpush1.msra.mxu0 0.0
      %4211 = vmatprep.subr.mxu0 0.0
      %4212 = vmatpush1.msra.mxu0 0.0
      %4213 = vmatprep.mubr.f32.mxu0 0.0
      %4214 = vmatmul.mubr.f32.gmra.mrb[0].mxu0 %v3771
      %v4215 = vpop.f32.mrb[0].mxu0
      %v4216 = vadd.f32 %v4131, %v4215
      %v4217 = vpop.f32.mrb[0].mxu0
      %4218 = vmatprep.mubr.f32.mxu0 0.0
      %4219 = vmatmul.mubr.f32.gmra.mrb[0].mxu0 %v3772
      %v4220 = vpop.f32.mrb[0].mxu0
      %v4221 = vadd.f32 %v4136, %v4220
      %v4222 = vpop.f32.mrb[0].mxu0
      %4223 = vmatprep.mubr.f32.mxu0 0.0
      %4224 = vmatmul.mubr.f32.gmra.mrb[0].mxu0 %v3773
      %v4225 = vpop.f32.mrb[0].mxu0
      %v4226 = vadd.f32 %v4141, %v4225
      %v4227 = vpop.f32.mrb[0].mxu0
      %4228 = vmatprep.mubr.f32.mxu0 0.0
      %4229 = vmatmul.mubr.f32.gmra.mrb[0].mxu0 %v3774
      %v4230 = vpop.f32.mrb[0].mxu0
      %v4231 = vadd.f32 %v4146, %v4230
      %v4232 = vpop.f32.mrb[0].mxu0
      %4233 = vdwg.mxu0
      %v4234 = vmax.f32 %v4216, 0.0
      %v4235 = vmax.f32 %v4221, 0.0
      %v4236 = vmax.f32 %v4226, 0.0
      %v4237 = vmax.f32 %v4231, 0.0
      %v4238 = vld [vmem:[%s7] sm:$0xff]
      %v4239 = vld [vmem:[%s7 + $0x8] sm:$0xff]
      %v4240 = vld [vmem:[%s7 + $0x10] sm:$0xff]
      %v4241 = vld [vmem:[%s7 + $0x18] sm:$0xff]
      %v4242 = vld [vmem:[%s7 + $0x20] sm:$0xff]
      %v4243 = vld [vmem:[%s7 + $0x28] sm:$0xff]
      %v4244 = vld [vmem:[%s7 + $0x30] sm:$0xff]
      %v4245 = vld [vmem:[%s7 + $0x38] sm:$0xff]
      %v4246 = vld [vmem:[%s8] sm:$0x1]
      %v4248 = vlaneseq
      %v4249 = vshrl.u32 %v4248, 7
      %v4250 = vsub.s32 0, %v4249
      %v4251 = vrot.slane %v4246, %v4250
      %vm4253 = vcmask 523264
      %v4255 = vsel %vm4253, %v4234, 0
      %v4258 = vsel %vm4253, %v4235, 0
      %v4261 = vsel %vm4253, %v4236, 0
      %v4264 = vsel %vm4253, %v4237, 0
      %4266 = vmatprep.subr.mxu0 0.0
      %4267 = vmatpush1.msra.mxu0 %v4238
      %4268 = vmatprep.subr.mxu0 0.0
      %4269 = vmatpush1.msra.mxu0 %v4239
      %4270 = vmatprep.subr.mxu0 0.0
      %4271 = vmatpush1.msra.mxu0 %v4240
      %4272 = vmatprep.subr.mxu0 0.0
      %4273 = vmatpush1.msra.mxu0 %v4241
      %4274 = vmatprep.subr.mxu0 0.0
      %4275 = vmatpush1.msra.mxu0 %v4242
      %4276 = vmatprep.subr.mxu0 0.0
      %4277 = vmatpush1.msra.mxu0 %v4243
      %4278 = vmatprep.subr.mxu0 0.0
      %4279 = vmatpush1.msra.mxu0 %v4244
      %4280 = vmatprep.subr.mxu0 0.0
      %4281 = vmatpush1.msra.mxu0 %v4245
      %4282 = vmatprep.subr.mxu0 0.0
      %4283 = vmatpush1.msra.mxu0 0.0
      %4284 = vmatprep.subr.mxu0 0.0
      %4285 = vmatpush1.msra.mxu0 0.0
      %4286 = vmatprep.subr.mxu0 0.0
      %4287 = vmatpush1.msra.mxu0 0.0
      %4288 = vmatprep.subr.mxu0 0.0
      %4289 = vmatpush1.msra.mxu0 0.0
      %4290 = vmatprep.subr.mxu0 0.0
      %4291 = vmatpush1.msra.mxu0 0.0
      %4292 = vmatprep.subr.mxu0 0.0
      %4293 = vmatpush1.msra.mxu0 0.0
      %4294 = vmatprep.subr.mxu0 0.0
      %4295 = vmatpush1.msra.mxu0 0.0
      %4296 = vmatprep.subr.mxu0 0.0
      %4297 = vmatpush1.msra.mxu0 0.0
      %4298 = vmatprep.subr.mxu0 0.0
      %4299 = vmatpush1.msra.mxu0 0.0
      %4300 = vmatprep.subr.mxu0 0.0
      %4301 = vmatpush1.msra.mxu0 0.0
      %4302 = vmatprep.subr.mxu0 0.0
      %4303 = vmatpush1.msra.mxu0 0.0
      %4304 = vmatprep.subr.mxu0 0.0
      %4305 = vmatpush1.msra.mxu0 0.0
      %4306 = vmatprep.subr.mxu0 0.0
      %4307 = vmatpush1.msra.mxu0 0.0
      %4308 = vmatprep.subr.mxu0 0.0
      %4309 = vmatpush1.msra.mxu0 0.0
      %4310 = vmatprep.subr.mxu0 0.0
      %4311 = vmatpush1.msra.mxu0 0.0
      %4312 = vmatprep.subr.mxu0 0.0
      %4313 = vmatpush1.msra.mxu0 0.0
      %4314 = vmatprep.subr.mxu0 0.0
      %4315 = vmatpush1.msra.mxu0 0.0
      %4316 = vmatprep.subr.mxu0 0.0
      %4317 = vmatpush1.msra.mxu0 0.0
      %4318 = vmatprep.subr.mxu0 0.0
      %4319 = vmatpush1.msra.mxu0 0.0
      %4320 = vmatprep.subr.mxu0 0.0
      %4321 = vmatpush1.msra.mxu0 0.0
      %4322 = vmatprep.subr.mxu0 0.0
      %4323 = vmatpush1.msra.mxu0 0.0
      %4324 = vmatprep.subr.mxu0 0.0
      %4325 = vmatpush1.msra.mxu0 0.0
      %4326 = vmatprep.subr.mxu0 0.0
      %4327 = vmatpush1.msra.mxu0 0.0
      %4328 = vmatprep.subr.mxu0 0.0
      %4329 = vmatpush1.msra.mxu0 0.0
      %4330 = vmatprep.mubr.f32.mxu0 0.0
      %4331 = vmatmul.mubr.f32.gmra.mrb[0].mxu0 %v4255
      %v4332 = vpop.f32.mrb[0].mxu0
      %v4333 = vadd.f32 %v4251, %v4332
      %v4334 = vpop.f32.mrb[0].mxu0
      %4335 = vmatprep.mubr.f32.mxu0 0.0
      %4336 = vmatmul.mubr.f32.gmra.mrb[0].mxu0 %v4258
      %v4337 = vpop.f32.mrb[0].mxu0
      %v4338 = vadd.f32 %v4251, %v4337
      %v4339 = vpop.f32.mrb[0].mxu0
      %4340 = vmatprep.mubr.f32.mxu0 0.0
      %4341 = vmatmul.mubr.f32.gmra.mrb[0].mxu0 %v4261
      %v4342 = vpop.f32.mrb[0].mxu0
      %v4343 = vadd.f32 %v4251, %v4342
      %v4344 = vpop.f32.mrb[0].mxu0
      %4345 = vmatprep.mubr.f32.mxu0 0.0
      %4346 = vmatmul.mubr.f32.gmra.mrb[0].mxu0 %v4264
      %v4347 = vpop.f32.mrb[0].mxu0
      %v4348 = vadd.f32 %v4251, %v4347
      %v4349 = vpop.f32.mrb[0].mxu0
      %4350 = vdwg.mxu0
      %v4351 = vmax.f32 %v4333, 0.0
      %v4352 = vmax.f32 %v4338, 0.0
      %v4353 = vmax.f32 %v4343, 0.0
      %v4354 = vmax.f32 %v4348, 0.0
      %v4355 = vld [vmem:[%s9] sm:$0xff]
      %v4356 = vld [vmem:[%s9 + $0x8] sm:$0xff]
      %v4357 = vld [vmem:[%s9 + $0x10] sm:$0xff]
      %v4358 = vld [vmem:[%s9 + $0x18] sm:$0xff]
      %v4359 = vld [vmem:[%s10] sm:$0x1]
      %v4361 = vlaneseq
      %v4362 = vshrl.u32 %v4361, 7
      %v4363 = vsub.s32 0, %v4362
      %v4364 = vrot.slane %v4359, %v4363
      %vm4366 = vcmask 261120
      %v4368 = vsel %vm4366, %v4351, 0
      %v4371 = vsel %vm4366, %v4352, 0
      %v4374 = vsel %vm4366, %v4353, 0
      %v4377 = vsel %vm4366, %v4354, 0
      %4379 = vmatprep.subr.mxu0 0.0
      %4380 = vmatpush1.msra.mxu0 %v4355
      %4381 = vmatprep.subr.mxu0 0.0
      %4382 = vmatpush1.msra.mxu0 %v4356
      %4383 = vmatprep.subr.mxu0 0.0
      %4384 = vmatpush1.msra.mxu0 %v4357
      %4385 = vmatprep.subr.mxu0 0.0
      %4386 = vmatpush1.msra.mxu0 %v4358
      %4387 = vmatprep.subr.mxu0 0.0
      %4388 = vmatpush1.msra.mxu0 0.0
      %4389 = vmatprep.subr.mxu0 0.0
      %4390 = vmatpush1.msra.mxu0 0.0
      %4391 = vmatprep.subr.mxu0 0.0
      %4392 = vmatpush1.msra.mxu0 0.0
      %4393 = vmatprep.subr.mxu0 0.0
      %4394 = vmatpush1.msra.mxu0 0.0
      %4395 = vmatprep.subr.mxu0 0.0
      %4396 = vmatpush1.msra.mxu0 0.0
      %4397 = vmatprep.subr.mxu0 0.0
      %4398 = vmatpush1.msra.mxu0 0.0
      %4399 = vmatprep.subr.mxu0 0.0
      %4400 = vmatpush1.msra.mxu0 0.0
      %4401 = vmatprep.subr.mxu0 0.0
      %4402 = vmatpush1.msra.mxu0 0.0
      %4403 = vmatprep.subr.mxu0 0.0
      %4404 = vmatpush1.msra.mxu0 0.0
      %4405 = vmatprep.subr.mxu0 0.0
      %4406 = vmatpush1.msra.mxu0 0.0
      %4407 = vmatprep.subr.mxu0 0.0
      %4408 = vmatpush1.msra.mxu0 0.0
      %4409 = vmatprep.subr.mxu0 0.0
      %4410 = vmatpush1.msra.mxu0 0.0
      %4411 = vmatprep.subr.mxu0 0.0
      %4412 = vmatpush1.msra.mxu0 0.0
      %4413 = vmatprep.subr.mxu0 0.0
      %4414 = vmatpush1.msra.mxu0 0.0
      %4415 = vmatprep.subr.mxu0 0.0
      %4416 = vmatpush1.msra.mxu0 0.0
      %4417 = vmatprep.subr.mxu0 0.0
      %4418 = vmatpush1.msra.mxu0 0.0
      %4419 = vmatprep.subr.mxu0 0.0
      %4420 = vmatpush1.msra.mxu0 0.0
      %4421 = vmatprep.subr.mxu0 0.0
      %4422 = vmatpush1.msra.mxu0 0.0
      %4423 = vmatprep.subr.mxu0 0.0
      %4424 = vmatpush1.msra.mxu0 0.0
      %4425 = vmatprep.subr.mxu0 0.0
      %4426 = vmatpush1.msra.mxu0 0.0
      %4427 = vmatprep.subr.mxu0 0.0
      %4428 = vmatpush1.msra.mxu0 0.0
      %4429 = vmatprep.subr.mxu0 0.0
      %4430 = vmatpush1.msra.mxu0 0.0
      %4431 = vmatprep.subr.mxu0 0.0
      %4432 = vmatpush1.msra.mxu0 0.0
      %4433 = vmatprep.subr.mxu0 0.0
      %4434 = vmatpush1.msra.mxu0 0.0
      %4435 = vmatprep.subr.mxu0 0.0
      %4436 = vmatpush1.msra.mxu0 0.0
      %4437 = vmatprep.subr.mxu0 0.0
      %4438 = vmatpush1.msra.mxu0 0.0
      %4439 = vmatprep.subr.mxu0 0.0
      %4440 = vmatpush1.msra.mxu0 0.0
      %4441 = vmatprep.subr.mxu0 0.0
      %4442 = vmatpush1.msra.mxu0 0.0
      %4443 = vmatprep.mubr.f32.mxu0 0.0
      %4444 = vmatmul.mubr.f32.gmra.mrb[0].mxu0 %v4368
      %v4445 = vpop.f32.mrb[0].mxu0
      %v4446 = vadd.f32 %v4364, %v4445
      %v4447 = vpop.f32.mrb[0].mxu0
      %4448 = vmatprep.mubr.f32.mxu0 0.0
      %4449 = vmatmul.mubr.f32.gmra.mrb[0].mxu0 %v4371
      %v4450 = vpop.f32.mrb[0].mxu0
      %v4451 = vadd.f32 %v4364, %v4450
      %v4452 = vpop.f32.mrb[0].mxu0
      %4453 = vmatprep.mubr.f32.mxu0 0.0
      %4454 = vmatmul.mubr.f32.gmra.mrb[0].mxu0 %v4374
      %v4455 = vpop.f32.mrb[0].mxu0
      %v4456 = vadd.f32 %v4364, %v4455
      %v4457 = vpop.f32.mrb[0].mxu0
      %4458 = vmatprep.mubr.f32.mxu0 0.0
      %4459 = vmatmul.mubr.f32.gmra.mrb[0].mxu0 %v4377
      %v4460 = vpop.f32.mrb[0].mxu0
      %v4461 = vadd.f32 %v4364, %v4460
      %v4462 = vpop.f32.mrb[0].mxu0
      %4463 = vdwg.mxu0
      %4464 = vst [vmem:[%s391] sm:$0xff] %v4446
      %4465 = vst [vmem:[%s391 + $0x8] sm:$0xff] %v4451
      %4466 = vst [vmem:[%s391 + $0x10] sm:$0xff] %v4456
      %4467 = vst [vmem:[%s391 + $0x18] sm:$0xff] %v4461
      %s4468 = smul.u32 4, %s22
      %p4469 = scmp.lt.s32.totalorder %s4468, 7
      %s4470 = scalar_select %p4469, %s4468, 7
      %s4471 = smul.addr %s4470, 8
      %s4472 = scalar_lea.vmem %s11, %s4471
      // Predicated region
      $region65: #{example_model_forward.1} parent=63 // pred_check
        %p4473 = pneg %p276
      $region66: #{example_model_forward.1} parent=63 // pred_check_branch
        %4475 = sbr.rel (%p4473) target = $region68
      $region67: #{example_model_forward.1} parent=63 // pred_region
        %s4476 = smul.u32 4, %s22
      $region68: #{example_model_forward.1} parent=63 // pred_fallthru
        _
    $region64: #{example_model_forward.1} parent=5 // pred_fallthru
      _
    %p4477 = scmp.le.s32.totalorder 2, %s17
    // Predicated region
    $region69: #{example_model_forward.1} parent=5 // pred_check
      %p4478 = pneg %p4477
    $region70: #{example_model_forward.1} parent=5 // pred_check_branch
      %4480 = sbr.rel (%p4478) target = $region72
    $region71: #{example_model_forward.1} parent=5 // pred_region
      %s4481 = ssub.s32 %s17, 2
      // Predicated region
      $region73: #{example_model_forward.1} parent=71 // pred_check
        %p4482 = pneg %p282
      $region74: #{example_model_forward.1} parent=71 // pred_check_branch
        %4484 = sbr.rel (%p4482) target = $region76
      $region75: #{example_model_forward.1} parent=71 // pred_region
        %s4485 = smul.u32 4, %s23
        %p4486 = scmp.lt.s32.totalorder %s4485, 7
        %s4487 = scalar_select %p4486, %s4485, 7
        %s4488 = smul.addr %s4487, 8
        %s4489 = scalar_lea.vmem %s11, %s4488
      $region76: #{example_model_forward.1} parent=71 // pred_fallthru
        _
    $region72: #{example_model_forward.1} parent=5 // pred_fallthru
      _
  $region6: #{example_model_forward.1} parent=0 // loop_footer
    %s21 = sadd.s32 1, %s17
  $region7: #{example_model_forward.1} parent=0 // loop_footer_branch
    %16 = sbr.rel target = $region3
  $region8: #{example_model_forward.1} parent=0 // loop_exit
    _

</llo_original>
